<compile_context>
chip_gen: v6e
topology: v6e:2x2x1
jax: 0.10.0
libtpu: 0.0.40
codegen_flags: <defaults>
</compile_context>

<pallas_src>
import functools

import jax
import jax.numpy as jnp
import numpy as np
from jax import lax
from jax.experimental import pallas as pl
from jax.experimental.pallas import tpu as pltpu

LANE = 128


def _round_up(x, m):
    return ((x + m - 1) // m) * m


# ----------------------------------------------------------------------------- #
# Kernel 1: direct conv (stride 1) as kh*kw shifted-tap matmuls, cout tiled
# 128-wide, f32 VMEM-scratch accumulator, optional bias, optional fused BN
# partial statistics (sum / sum-of-squares per block).
# ----------------------------------------------------------------------------- #
def _conv_kernel(x_ref, w_ref, b_ref, o_ref, *rest, kh_size, kw_size, th, ow,
                 cin, tcout, add_bias, emit_stats):
    if emit_stats:
        stat_ref, acc_ref = rest
    else:
        (acc_ref,) = rest

    rt = pl.program_id(2)
    row0 = rt * th
    if th % 8 == 0:
        row0 = pl.multiple_of(row0, 8)

    for i in range(kh_size):
        for j in range(kw_size):
            patch = x_ref[pl.ds(row0 + i, th), j:j + ow, :]        # (th, ow, cin) bf16
            # Merge only the two major dims (cin stays on the lane dim); Mosaic
            # needs a 2-D lhs for the MXU matmul.
            # TODO(synk): for very small cin (first YOLO layer) an im2col that
            # folds kh*kw into the contraction dim would use the MXU better.
            lhs = patch.reshape(th * ow, cin)
            contrib = jnp.dot(lhs, w_ref[i, j],
                              preferred_element_type=jnp.float32)  # (th*ow, tcout) f32
            if i == 0 and j == 0:
                acc_ref[...] = contrib
            else:
                acc_ref[...] += contrib

    acc = acc_ref[...]
    if add_bias:                      # only on the bn_act=False path
        acc = acc + b_ref[...]        # (1, tcout) broadcast

    o_ref[...] = acc.reshape(th, ow, tcout).astype(o_ref.dtype)

    if emit_stats:
        s = jnp.sum(acc, axis=0, keepdims=True)          # (1, tcout)
        sq = jnp.sum(acc * acc, axis=0, keepdims=True)   # (1, tcout)
        row = lax.broadcasted_iota(jnp.int32, (8, tcout), 0)
        stat_ref[...] = jnp.where(
            row == 0, jnp.broadcast_to(s, (8, tcout)),
            jnp.where(row == 1, jnp.broadcast_to(sq, (8, tcout)), 0.0))


# ----------------------------------------------------------------------------- #
# Kernel 2: per-channel affine (precomputed scale/shift from the fused BN stats)
# + LeakyReLU(0.1), on a lane-dense (rows, cout_p) 2-D view.
# ----------------------------------------------------------------------------- #
def _bn_apply_kernel(y_ref, scale_ref, shift_ref, o_ref, *, slope):
    z = y_ref[...] * scale_ref[...] + shift_ref[...]
    o_ref[...] = jnp.where(z >= 0, z, slope * z)


# ----------------------------------------------------------------------------- #
# Wrapper: layout plumbing (NCHW<->NHWC, bf16 cast, cout padding), pallas_call
# plumbing, and the tiny stats fold.
# ----------------------------------------------------------------------------- #
def conv_block_forward(x_nchw, w_oihw, bias, gamma, beta, *, bn_act=True,
                       padding=1, eps=1e-5, slope=0.1,
                       row_tile=8, cout_tile=LANE, norm_row_tile=256):
    # TODO(synk): only stride=1 is implemented (the YOLO Conv default 3x3/pad=1).
    n, cin, h, w = x_nchw.shape
    cout, cin_w, kh, kw = w_oihw.shape
    assert cin == cin_w
    oh = h + 2 * padding - kh + 1
    ow = w + 2 * padding - kw + 1

    # NHWC (C on lanes), bf16 inputs/weights; accumulate in f32 inside the kernel.
    x_nhwc = jnp.transpose(x_nchw, (0, 2, 3, 1)).astype(jnp.bfloat16)
    x_pad = jnp.pad(x_nhwc, ((0, 0), (padding, padding), (padding, padding), (0, 0)))
    hp, wp = h + 2 * padding, w + 2 * padding

    # OIHW -> HWIO, cout zero-padded to a lane multiple (lane-dense stores,
    # 128-wide MXU output tiles); tiled 128 per grid step.
    cout_p = _round_up(cout, cout_tile)
    tcout = cout_tile
    n_ct = cout_p // tcout
    w_hwio = jnp.transpose(w_oihw, (2, 3, 1, 0)).astype(jnp.bfloat16)
    w_hwio = jnp.pad(w_hwio, ((0, 0), (0, 0), (0, 0), (0, cout_p - cout)))

    if bias is None:
        bias = jnp.zeros((cout,), jnp.float32)
    bias2d = jnp.pad(bias.astype(jnp.float32), (0, cout_p - cout)).reshape(1, cout_p)

    # Output-row tiling; the padded image of one batch element stays resident in
    # VMEM across its row/cout tiles (fetched once per batch element).
    th = row_tile if (oh % row_tile == 0) else oh
    n_rt = oh // th

    emit_stats = bool(bn_act)

    conv_out_shape = jax.ShapeDtypeStruct((n, oh, ow, cout_p), jnp.float32)
    o_spec = pl.BlockSpec((pl.Squeezed(), th, ow, tcout),
                          lambda b, ct, rt: (b, rt, 0, ct))
    if emit_stats:
        # 8-row stripe per (batch, row-tile): row 0 = partial sum, row 1 = partial
        # sum of squares (8 rows keeps the block (8,128)-aligned).
        out_shape = (conv_out_shape,
                     jax.ShapeDtypeStruct((n * n_rt * 8, cout_p), jnp.float32))
        out_specs = [o_spec,
                     pl.BlockSpec((8, tcout), lambda b, ct, rt: (b * n_rt + rt, ct))]
    else:
        out_shape = conv_out_shape
        out_specs = o_spec

    conv_call = pl.pallas_call(
        functools.partial(_conv_kernel, kh_size=kh, kw_size=kw, th=th, ow=ow,
                          cin=cin, tcout=tcout, add_bias=not bn_act,
                          emit_stats=emit_stats),
        out_shape=out_shape,
        grid=(n, n_ct, n_rt),
        in_specs=[
            pl.BlockSpec((pl.Squeezed(), hp, wp, cin), lambda b, ct, rt: (b, 0, 0, 0)),
            pl.BlockSpec((kh, kw, cin, tcout), lambda b, ct, rt: (0, 0, 0, ct)),
            pl.BlockSpec((1, tcout), lambda b, ct, rt: (0, ct)),
        ],
        out_specs=out_specs,
        scratch_shapes=[pltpu.VMEM((th * ow, tcout), jnp.float32)],
        compiler_params=pltpu.CompilerParams(
            dimension_semantics=("parallel", "parallel", "parallel"),
            vmem_limit_bytes=32 * 1024 * 1024),
    )

    if not emit_stats:
        conv_out = conv_call(x_pad, w_hwio, bias2d)
        return jnp.transpose(conv_out[..., :cout], (0, 3, 1, 2))

    conv_out, stats = conv_call(x_pad, w_hwio, bias2d)

    # Fold the (tiny) per-block partials into per-channel mean/var (biased, PyTorch
    # training-mode BN), and build the fused scale/shift.
    stats = stats.reshape(n * n_rt, 8, cout_p)
    cnt = jnp.float32(n * oh * ow)
    mean = jnp.sum(stats[:, 0, :], axis=0) / cnt
    var = jnp.maximum(jnp.sum(stats[:, 1, :], axis=0) / cnt - mean * mean, 0.0)
    gamma_p = jnp.pad(gamma.astype(jnp.float32), (0, cout_p - cout))
    beta_p = jnp.pad(beta.astype(jnp.float32), (0, cout_p - cout))
    scale = gamma_p * lax.rsqrt(var + eps)
    shift = beta_p - mean * scale

    # Pass 2: normalize + LeakyReLU on a lane-dense (rows, cout_p) view.
    rows = n * oh * ow
    tr = norm_row_tile
    if rows % tr != 0 or tr % 8 != 0:
        tr = rows
    z2 = pl.pallas_call(
        functools.partial(_bn_apply_kernel, slope=slope),
        out_shape=jax.ShapeDtypeStruct((rows, cout_p), jnp.float32),
        grid=(rows // tr,),
        in_specs=[pl.BlockSpec((tr, cout_p), lambda i: (i, 0)),
                  pl.BlockSpec((1, cout_p), lambda i: (0, 0)),
                  pl.BlockSpec((1, cout_p), lambda i: (0, 0))],
        out_specs=pl.BlockSpec((tr, cout_p), lambda i: (i, 0)),
        compiler_params=pltpu.CompilerParams(dimension_semantics=("parallel",)),
    )(conv_out.reshape(rows, cout_p), scale.reshape(1, cout_p),
      shift.reshape(1, cout_p))

    out_nhwc = z2.reshape(n, oh, ow, cout_p)[..., :cout]
    return jnp.transpose(out_nhwc, (0, 3, 1, 2))   # back to NCHW


# ----------------------------------------------------------------------------- #
# Pure-JAX reference (mirrors the PyTorch forward; same bf16 inputs, f32 accum).
# ----------------------------------------------------------------------------- #
def _reference(x, w, bias, gamma, beta, *, bn_act=True, padding=1, eps=1e-5, slope=0.1):
    xb = x.astype(jnp.bfloat16)
    wb = w.astype(jnp.bfloat16)
    y = lax.conv_general_dilated(
        xb, wb, window_strides=(1, 1), padding=[(padding, padding)] * 2,
        dimension_numbers=("NCHW", "OIHW", "NCHW"),
        preferred_element_type=jnp.float32)
    if not bn_act:
        return y + bias[None, :, None, None]
    mean = jnp.mean(y, axis=(0, 2, 3), keepdims=True)
    var = jnp.mean(jnp.square(y - mean), axis=(0, 2, 3), keepdims=True)
    z = (y - mean) / jnp.sqrt(var + eps)
    z = z * gamma[None, :, None, None] + beta[None, :, None, None]
    return jnp.where(z >= 0, z, slope * z)


if __name__ == "__main__":
    key = jax.random.PRNGKey(0)
    k_x, k_w, k_g, k_b = jax.random.split(key, 4)

    # Small shapes consistent with the module: Conv(in=4, out=8, kernel_size=3, padding=1)
    N, CIN, H, W = 2, 4, 16, 16
    COUT, KH, KW, PAD = 8, 3, 3, 1

    x = jax.random.normal(k_x, (N, CIN, H, W), jnp.float32)
    w = jax.random.normal(k_w, (COUT, CIN, KH, KW), jnp.float32) * 0.1
    gamma = 1.0 + 0.1 * jax.random.normal(k_g, (COUT,), jnp.float32)
    beta = 0.1 * jax.random.normal(k_b, (COUT,), jnp.float32)

    # bn_act=True path: Conv (no bias) -> BatchNorm(batch stats) -> LeakyReLU(0.1)
    out = conv_block_forward(x, w, None, gamma, beta, bn_act=True, padding=PAD)
    out = jax.block_until_ready(out)
    ref = _reference(x, w, None, gamma, beta, bn_act=True, padding=PAD)
    np.testing.assert_allclose(np.asarray(out), np.asarray(ref), rtol=5e-4, atol=5e-4)

    # bn_act=False path: plain Conv with bias.
    bias2 = 0.05 * jnp.arange(COUT, dtype=jnp.float32)
    out2 = jax.block_until_ready(
        conv_block_forward(x, w, bias2, None, None, bn_act=False, padding=PAD))
    ref2 = _reference(x, w, bias2, None, None, bn_act=False, padding=PAD)
    np.testing.assert_allclose(np.asarray(out2), np.asarray(ref2), rtol=5e-4, atol=5e-4)

    print("KERNEL_OK")
</pallas_src>

<mosaic_0001>
module attributes {stable_mosaic.version = 11 : i64} {
  func.func @_conv_kernel(%arg0: i32, %arg1: i32, %arg2: i32, %arg3: memref<1x18x18x4xbf16, #tpu.memory_space<vmem>>, %arg4: memref<3x3x4x128xbf16, #tpu.memory_space<vmem>>, %arg5: memref<1x128xf32, #tpu.memory_space<vmem>>, %arg6: memref<1x8x16x128xf32, #tpu.memory_space<vmem>>, %arg7: memref<8x128xf32, #tpu.memory_space<vmem>>, %arg8: memref<128x128xf32, #tpu.memory_space<vmem>>) attributes {dimension_semantics = [#tpu.dimension_semantics<parallel>, #tpu.dimension_semantics<parallel>, #tpu.dimension_semantics<parallel>], iteration_bounds = array<i64: 2, 1, 2>, scalar_prefetch = 0 : i64, scratch_operands = 1 : i64, tpu.core_type = #tpu.core_type<tc>, window_params = [{transform_indices = @transform_0, window_bounds = array<i64: 1, 18, 18, 4>}, {transform_indices = @transform_1, window_bounds = array<i64: 3, 3, 4, 128>}, {transform_indices = @transform_2, window_bounds = array<i64: 1, 128>}, {transform_indices = @transform_3, window_bounds = array<i64: 1, 8, 16, 128>}, {transform_indices = @transform_4, window_bounds = array<i64: 8, 128>}]} {
    %c8_i32 = arith.constant 8 : i32
    %0 = arith.muli %arg2, %c8_i32 : i32
    %1 = tpu.assume_multiple %0, 8 : i32
    %c0_i32 = arith.constant 0 : i32
    %2 = arith.addi %1, %c0_i32 : i32
    %c0 = arith.constant 0 : index
    %3 = arith.index_cast %2 : i32 to index
    %c0_0 = arith.constant 0 : index
    %c0_1 = arith.constant 0 : index
    %4 = vector.load %arg3[%c0, %3, %c0_0, %c0_1] : memref<1x18x18x4xbf16, #tpu.memory_space<vmem>>, vector<1x8x16x4xbf16>
    %5 = vector.shape_cast %4 : vector<1x8x16x4xbf16> to vector<8x16x4xbf16>
    %6 = vector.shape_cast %5 : vector<8x16x4xbf16> to vector<128x4xbf16>
    %c0_2 = arith.constant 0 : index
    %c0_3 = arith.constant 0 : index
    %c0_4 = arith.constant 0 : index
    %c0_5 = arith.constant 0 : index
    %7 = vector.load %arg4[%c0_2, %c0_3, %c0_4, %c0_5] : memref<3x3x4x128xbf16, #tpu.memory_space<vmem>>, vector<1x1x4x128xbf16>
    %8 = vector.shape_cast %7 : vector<1x1x4x128xbf16> to vector<4x128xbf16>
    %cst = arith.constant dense<0.000000e+00> : vector<128x128xf32>
    %9 = tpu.matmul %6, %8, %cst {dimension_numbers = #tpu.dot_dimension_numbers<[1], [0], [0], [1], [0, 0, 1, 1], [], []>} : vector<128x4xbf16>, vector<4x128xbf16>, vector<128x128xf32> -> vector<128x128xf32>
    %c0_6 = arith.constant 0 : index
    %c0_7 = arith.constant 0 : index
    %10 = vector.load %arg8[%c0_6, %c0_7] : memref<128x128xf32, #tpu.memory_space<vmem>>, vector<128x128xf32>
    tpu.vector_store %arg8[%c0_6, %c0_7], %9 {strides = array<i32>} : memref<128x128xf32, #tpu.memory_space<vmem>>, vector<128x128xf32>,
    %c0_i32_8 = arith.constant 0 : i32
    %11 = arith.addi %1, %c0_i32_8 : i32
    %c0_9 = arith.constant 0 : index
    %12 = arith.index_cast %11 : i32 to index
    %c1 = arith.constant 1 : index
    %c0_10 = arith.constant 0 : index
    %13 = vector.load %arg3[%c0_9, %12, %c1, %c0_10] : memref<1x18x18x4xbf16, #tpu.memory_space<vmem>>, vector<1x8x16x4xbf16>
    %14 = vector.shape_cast %13 : vector<1x8x16x4xbf16> to vector<8x16x4xbf16>
    %15 = vector.shape_cast %14 : vector<8x16x4xbf16> to vector<128x4xbf16>
    %c0_11 = arith.constant 0 : index
    %c1_12 = arith.constant 1 : index
    %c0_13 = arith.constant 0 : index
    %c0_14 = arith.constant 0 : index
    %16 = vector.load %arg4[%c0_11, %c1_12, %c0_13, %c0_14] : memref<3x3x4x128xbf16, #tpu.memory_space<vmem>>, vector<1x1x4x128xbf16>
    %17 = vector.shape_cast %16 : vector<1x1x4x128xbf16> to vector<4x128xbf16>
    %cst_15 = arith.constant dense<0.000000e+00> : vector<128x128xf32>
    %18 = tpu.matmul %15, %17, %cst_15 {dimension_numbers = #tpu.dot_dimension_numbers<[1], [0], [0], [1], [0, 0, 1, 1], [], []>} : vector<128x4xbf16>, vector<4x128xbf16>, vector<128x128xf32> -> vector<128x128xf32>
    %c0_16 = arith.constant 0 : index
    %c0_17 = arith.constant 0 : index
    %19 = vector.load %arg8[%c0_16, %c0_17] : memref<128x128xf32, #tpu.memory_space<vmem>>, vector<128x128xf32>
    %20 = arith.addf %19, %18 : vector<128x128xf32>
    %c0_18 = arith.constant 0 : index
    %c0_19 = arith.constant 0 : index
    %21 = vector.load %arg8[%c0_18, %c0_19] : memref<128x128xf32, #tpu.memory_space<vmem>>, vector<128x128xf32>
    tpu.vector_store %arg8[%c0_18, %c0_19], %20 {strides = array<i32>} : memref<128x128xf32, #tpu.memory_space<vmem>>, vector<128x128xf32>,
    %c0_i32_20 = arith.constant 0 : i32
    %22 = arith.addi %1, %c0_i32_20 : i32
    %c0_21 = arith.constant 0 : index
    %23 = arith.index_cast %22 : i32 to index
    %c2 = arith.constant 2 : index
    %c0_22 = arith.constant 0 : index
    %24 = vector.load %arg3[%c0_21, %23, %c2, %c0_22] : memref<1x18x18x4xbf16, #tpu.memory_space<vmem>>, vector<1x8x16x4xbf16>
    %25 = vector.shape_cast %24 : vector<1x8x16x4xbf16> to vector<8x16x4xbf16>
    %26 = vector.shape_cast %25 : vector<8x16x4xbf16> to vector<128x4xbf16>
    %c0_23 = arith.constant 0 : index
    %c2_24 = arith.constant 2 : index
    %c0_25 = arith.constant 0 : index
    %c0_26 = arith.constant 0 : index
    %27 = vector.load %arg4[%c0_23, %c2_24, %c0_25, %c0_26] : memref<3x3x4x128xbf16, #tpu.memory_space<vmem>>, vector<1x1x4x128xbf16>
    %28 = vector.shape_cast %27 : vector<1x1x4x128xbf16> to vector<4x128xbf16>
    %cst_27 = arith.constant dense<0.000000e+00> : vector<128x128xf32>
    %29 = tpu.matmul %26, %28, %cst_27 {dimension_numbers = #tpu.dot_dimension_numbers<[1], [0], [0], [1], [0, 0, 1, 1], [], []>} : vector<128x4xbf16>, vector<4x128xbf16>, vector<128x128xf32> -> vector<128x128xf32>
    %c0_28 = arith.constant 0 : index
    %c0_29 = arith.constant 0 : index
    %30 = vector.load %arg8[%c0_28, %c0_29] : memref<128x128xf32, #tpu.memory_space<vmem>>, vector<128x128xf32>
    %31 = arith.addf %30, %29 : vector<128x128xf32>
    %c0_30 = arith.constant 0 : index
    %c0_31 = arith.constant 0 : index
    %32 = vector.load %arg8[%c0_30, %c0_31] : memref<128x128xf32, #tpu.memory_space<vmem>>, vector<128x128xf32>
    tpu.vector_store %arg8[%c0_30, %c0_31], %31 {strides = array<i32>} : memref<128x128xf32, #tpu.memory_space<vmem>>, vector<128x128xf32>,
    %c1_i32 = arith.constant 1 : i32
    %33 = arith.addi %1, %c1_i32 : i32
    %c0_32 = arith.constant 0 : index
    %34 = arith.index_cast %33 : i32 to index
    %c0_33 = arith.constant 0 : index
    %c0_34 = arith.constant 0 : index
    %35 = vector.load %arg3[%c0_32, %34, %c0_33, %c0_34] : memref<1x18x18x4xbf16, #tpu.memory_space<vmem>>, vector<1x8x16x4xbf16>
    %36 = vector.shape_cast %35 : vector<1x8x16x4xbf16> to vector<8x16x4xbf16>
    %37 = vector.shape_cast %36 : vector<8x16x4xbf16> to vector<128x4xbf16>
    %c1_35 = arith.constant 1 : index
    %c0_36 = arith.constant 0 : index
    %c0_37 = arith.constant 0 : index
    %c0_38 = arith.constant 0 : index
    %38 = vector.load %arg4[%c1_35, %c0_36, %c0_37, %c0_38] : memref<3x3x4x128xbf16, #tpu.memory_space<vmem>>, vector<1x1x4x128xbf16>
    %39 = vector.shape_cast %38 : vector<1x1x4x128xbf16> to vector<4x128xbf16>
    %cst_39 = arith.constant dense<0.000000e+00> : vector<128x128xf32>
    %40 = tpu.matmul %37, %39, %cst_39 {dimension_numbers = #tpu.dot_dimension_numbers<[1], [0], [0], [1], [0, 0, 1, 1], [], []>} : vector<128x4xbf16>, vector<4x128xbf16>, vector<128x128xf32> -> vector<128x128xf32>
    %c0_40 = arith.constant 0 : index
    %c0_41 = arith.constant 0 : index
    %41 = vector.load %arg8[%c0_40, %c0_41] : memref<128x128xf32, #tpu.memory_space<vmem>>, vector<128x128xf32>
    %42 = arith.addf %41, %40 : vector<128x128xf32>
    %c0_42 = arith.constant 0 : index
    %c0_43 = arith.constant 0 : index
    %43 = vector.load %arg8[%c0_42, %c0_43] : memref<128x128xf32, #tpu.memory_space<vmem>>, vector<128x128xf32>
    tpu.vector_store %arg8[%c0_42, %c0_43], %42 {strides = array<i32>} : memref<128x128xf32, #tpu.memory_space<vmem>>, vector<128x128xf32>,
    %c1_i32_44 = arith.constant 1 : i32
    %44 = arith.addi %1, %c1_i32_44 : i32
    %c0_45 = arith.constant 0 : index
    %45 = arith.index_cast %44 : i32 to index
    %c1_46 = arith.constant 1 : index
    %c0_47 = arith.constant 0 : index
    %46 = vector.load %arg3[%c0_45, %45, %c1_46, %c0_47] : memref<1x18x18x4xbf16, #tpu.memory_space<vmem>>, vector<1x8x16x4xbf16>
    %47 = vector.shape_cast %46 : vector<1x8x16x4xbf16> to vector<8x16x4xbf16>
    %48 = vector.shape_cast %47 : vector<8x16x4xbf16> to vector<128x4xbf16>
    %c1_48 = arith.constant 1 : index
    %c1_49 = arith.constant 1 : index
    %c0_50 = arith.constant 0 : index
    %c0_51 = arith.constant 0 : index
    %49 = vector.load %arg4[%c1_48, %c1_49, %c0_50, %c0_51] : memref<3x3x4x128xbf16, #tpu.memory_space<vmem>>, vector<1x1x4x128xbf16>
    %50 = vector.shape_cast %49 : vector<1x1x4x128xbf16> to vector<4x128xbf16>
    %cst_52 = arith.constant dense<0.000000e+00> : vector<128x128xf32>
    %51 = tpu.matmul %48, %50, %cst_52 {dimension_numbers = #tpu.dot_dimension_numbers<[1], [0], [0], [1], [0, 0, 1, 1], [], []>} : vector<128x4xbf16>, vector<4x128xbf16>, vector<128x128xf32> -> vector<128x128xf32>
    %c0_53 = arith.constant 0 : index
    %c0_54 = arith.constant 0 : index
    %52 = vector.load %arg8[%c0_53, %c0_54] : memref<128x128xf32, #tpu.memory_space<vmem>>, vector<128x128xf32>
    %53 = arith.addf %52, %51 : vector<128x128xf32>
    %c0_55 = arith.constant 0 : index
    %c0_56 = arith.constant 0 : index
    %54 = vector.load %arg8[%c0_55, %c0_56] : memref<128x128xf32, #tpu.memory_space<vmem>>, vector<128x128xf32>
    tpu.vector_store %arg8[%c0_55, %c0_56], %53 {strides = array<i32>} : memref<128x128xf32, #tpu.memory_space<vmem>>, vector<128x128xf32>,
    %c1_i32_57 = arith.constant 1 : i32
    %55 = arith.addi %1, %c1_i32_57 : i32
    %c0_58 = arith.constant 0 : index
    %56 = arith.index_cast %55 : i32 to index
    %c2_59 = arith.constant 2 : index
    %c0_60 = arith.constant 0 : index
    %57 = vector.load %arg3[%c0_58, %56, %c2_59, %c0_60] : memref<1x18x18x4xbf16, #tpu.memory_space<vmem>>, vector<1x8x16x4xbf16>
    %58 = vector.shape_cast %57 : vector<1x8x16x4xbf16> to vector<8x16x4xbf16>
    %59 = vector.shape_cast %58 : vector<8x16x4xbf16> to vector<128x4xbf16>
    %c1_61 = arith.constant 1 : index
    %c2_62 = arith.constant 2 : index
    %c0_63 = arith.constant 0 : index
    %c0_64 = arith.constant 0 : index
    %60 = vector.load %arg4[%c1_61, %c2_62, %c0_63, %c0_64] : memref<3x3x4x128xbf16, #tpu.memory_space<vmem>>, vector<1x1x4x128xbf16>
    %61 = vector.shape_cast %60 : vector<1x1x4x128xbf16> to vector<4x128xbf16>
    %cst_65 = arith.constant dense<0.000000e+00> : vector<128x128xf32>
    %62 = tpu.matmul %59, %61, %cst_65 {dimension_numbers = #tpu.dot_dimension_numbers<[1], [0], [0], [1], [0, 0, 1, 1], [], []>} : vector<128x4xbf16>, vector<4x128xbf16>, vector<128x128xf32> -> vector<128x128xf32>
    %c0_66 = arith.constant 0 : index
    %c0_67 = arith.constant 0 : index
    %63 = vector.load %arg8[%c0_66, %c0_67] : memref<128x128xf32, #tpu.memory_space<vmem>>, vector<128x128xf32>
    %64 = arith.addf %63, %62 : vector<128x128xf32>
    %c0_68 = arith.constant 0 : index
    %c0_69 = arith.constant 0 : index
    %65 = vector.load %arg8[%c0_68, %c0_69] : memref<128x128xf32, #tpu.memory_space<vmem>>, vector<128x128xf32>
    tpu.vector_store %arg8[%c0_68, %c0_69], %64 {strides = array<i32>} : memref<128x128xf32, #tpu.memory_space<vmem>>, vector<128x128xf32>,
    %c2_i32 = arith.constant 2 : i32
    %66 = arith.addi %1, %c2_i32 : i32
    %c0_70 = arith.constant 0 : index
    %67 = arith.index_cast %66 : i32 to index
    %c0_71 = arith.constant 0 : index
    %c0_72 = arith.constant 0 : index
    %68 = vector.load %arg3[%c0_70, %67, %c0_71, %c0_72] : memref<1x18x18x4xbf16, #tpu.memory_space<vmem>>, vector<1x8x16x4xbf16>
    %69 = vector.shape_cast %68 : vector<1x8x16x4xbf16> to vector<8x16x4xbf16>
    %70 = vector.shape_cast %69 : vector<8x16x4xbf16> to vector<128x4xbf16>
    %c2_73 = arith.constant 2 : index
    %c0_74 = arith.constant 0 : index
    %c0_75 = arith.constant 0 : index
    %c0_76 = arith.constant 0 : index
    %71 = vector.load %arg4[%c2_73, %c0_74, %c0_75, %c0_76] : memref<3x3x4x128xbf16, #tpu.memory_space<vmem>>, vector<1x1x4x128xbf16>
    %72 = vector.shape_cast %71 : vector<1x1x4x128xbf16> to vector<4x128xbf16>
    %cst_77 = arith.constant dense<0.000000e+00> : vector<128x128xf32>
    %73 = tpu.matmul %70, %72, %cst_77 {dimension_numbers = #tpu.dot_dimension_numbers<[1], [0], [0], [1], [0, 0, 1, 1], [], []>} : vector<128x4xbf16>, vector<4x128xbf16>, vector<128x128xf32> -> vector<128x128xf32>
    %c0_78 = arith.constant 0 : index
    %c0_79 = arith.constant 0 : index
    %74 = vector.load %arg8[%c0_78, %c0_79] : memref<128x128xf32, #tpu.memory_space<vmem>>, vector<128x128xf32>
    %75 = arith.addf %74, %73 : vector<128x128xf32>
    %c0_80 = arith.constant 0 : index
    %c0_81 = arith.constant 0 : index
    %76 = vector.load %arg8[%c0_80, %c0_81] : memref<128x128xf32, #tpu.memory_space<vmem>>, vector<128x128xf32>
    tpu.vector_store %arg8[%c0_80, %c0_81], %75 {strides = array<i32>} : memref<128x128xf32, #tpu.memory_space<vmem>>, vector<128x128xf32>,
    %c2_i32_82 = arith.constant 2 : i32
    %77 = arith.addi %1, %c2_i32_82 : i32
    %c0_83 = arith.constant 0 : index
    %78 = arith.index_cast %77 : i32 to index
    %c1_84 = arith.constant 1 : index
    %c0_85 = arith.constant 0 : index
    %79 = vector.load %arg3[%c0_83, %78, %c1_84, %c0_85] : memref<1x18x18x4xbf16, #tpu.memory_space<vmem>>, vector<1x8x16x4xbf16>
    %80 = vector.shape_cast %79 : vector<1x8x16x4xbf16> to vector<8x16x4xbf16>
    %81 = vector.shape_cast %80 : vector<8x16x4xbf16> to vector<128x4xbf16>
    %c2_86 = arith.constant 2 : index
    %c1_87 = arith.constant 1 : index
    %c0_88 = arith.constant 0 : index
    %c0_89 = arith.constant 0 : index
    %82 = vector.load %arg4[%c2_86, %c1_87, %c0_88, %c0_89] : memref<3x3x4x128xbf16, #tpu.memory_space<vmem>>, vector<1x1x4x128xbf16>
    %83 = vector.shape_cast %82 : vector<1x1x4x128xbf16> to vector<4x128xbf16>
    %cst_90 = arith.constant dense<0.000000e+00> : vector<128x128xf32>
    %84 = tpu.matmul %81, %83, %cst_90 {dimension_numbers = #tpu.dot_dimension_numbers<[1], [0], [0], [1], [0, 0, 1, 1], [], []>} : vector<128x4xbf16>, vector<4x128xbf16>, vector<128x128xf32> -> vector<128x128xf32>
    %c0_91 = arith.constant 0 : index
    %c0_92 = arith.constant 0 : index
    %85 = vector.load %arg8[%c0_91, %c0_92] : memref<128x128xf32, #tpu.memory_space<vmem>>, vector<128x128xf32>
    %86 = arith.addf %85, %84 : vector<128x128xf32>
    %c0_93 = arith.constant 0 : index
    %c0_94 = arith.constant 0 : index
    %87 = vector.load %arg8[%c0_93, %c0_94] : memref<128x128xf32, #tpu.memory_space<vmem>>, vector<128x128xf32>
    tpu.vector_store %arg8[%c0_93, %c0_94], %86 {strides = array<i32>} : memref<128x128xf32, #tpu.memory_space<vmem>>, vector<128x128xf32>,
    %c2_i32_95 = arith.constant 2 : i32
    %88 = arith.addi %1, %c2_i32_95 : i32
    %c0_96 = arith.constant 0 : index
    %89 = arith.index_cast %88 : i32 to index
    %c2_97 = arith.constant 2 : index
    %c0_98 = arith.constant 0 : index
    %90 = vector.load %arg3[%c0_96, %89, %c2_97, %c0_98] : memref<1x18x18x4xbf16, #tpu.memory_space<vmem>>, vector<1x8x16x4xbf16>
    %91 = vector.shape_cast %90 : vector<1x8x16x4xbf16> to vector<8x16x4xbf16>
    %92 = vector.shape_cast %91 : vector<8x16x4xbf16> to vector<128x4xbf16>
    %c2_99 = arith.constant 2 : index
    %c2_100 = arith.constant 2 : index
    %c0_101 = arith.constant 0 : index
    %c0_102 = arith.constant 0 : index
    %93 = vector.load %arg4[%c2_99, %c2_100, %c0_101, %c0_102] : memref<3x3x4x128xbf16, #tpu.memory_space<vmem>>, vector<1x1x4x128xbf16>
    %94 = vector.shape_cast %93 : vector<1x1x4x128xbf16> to vector<4x128xbf16>
    %cst_103 = arith.constant dense<0.000000e+00> : vector<128x128xf32>
    %95 = tpu.matmul %92, %94, %cst_103 {dimension_numbers = #tpu.dot_dimension_numbers<[1], [0], [0], [1], [0, 0, 1, 1], [], []>} : vector<128x4xbf16>, vector<4x128xbf16>, vector<128x128xf32> -> vector<128x128xf32>
    %c0_104 = arith.constant 0 : index
    %c0_105 = arith.constant 0 : index
    %96 = vector.load %arg8[%c0_104, %c0_105] : memref<128x128xf32, #tpu.memory_space<vmem>>, vector<128x128xf32>
    %97 = arith.addf %96, %95 : vector<128x128xf32>
    %c0_106 = arith.constant 0 : index
    %c0_107 = arith.constant 0 : index
    %98 = vector.load %arg8[%c0_106, %c0_107] : memref<128x128xf32, #tpu.memory_space<vmem>>, vector<128x128xf32>
    tpu.vector_store %arg8[%c0_106, %c0_107], %97 {strides = array<i32>} : memref<128x128xf32, #tpu.memory_space<vmem>>, vector<128x128xf32>,
    %c0_108 = arith.constant 0 : index
    %c0_109 = arith.constant 0 : index
    %99 = vector.load %arg8[%c0_108, %c0_109] : memref<128x128xf32, #tpu.memory_space<vmem>>, vector<128x128xf32>
    %100 = vector.shape_cast %99 : vector<128x128xf32> to vector<8x16x128xf32>
    %c0_110 = arith.constant 0 : index
    %c0_111 = arith.constant 0 : index
    %c0_112 = arith.constant 0 : index
    %c0_113 = arith.constant 0 : index
    %101 = vector.load %arg6[%c0_110, %c0_111, %c0_112, %c0_113] : memref<1x8x16x128xf32, #tpu.memory_space<vmem>>, vector<1x8x16x128xf32>
    %102 = vector.shape_cast %101 : vector<1x8x16x128xf32> to vector<8x16x128xf32>
    %103 = vector.shape_cast %100 : vector<8x16x128xf32> to vector<1x8x16x128xf32>
    tpu.vector_store %arg6[%c0_110, %c0_111, %c0_112, %c0_113], %103 {strides = array<i32>} : memref<1x8x16x128xf32, #tpu.memory_space<vmem>>, vector<1x8x16x128xf32>,
    %cst_114 = arith.constant dense<0.000000e+00> : vector<128xf32>
    %104 = vector.multi_reduction <add>, %99, %cst_114 [0] : vector<128x128xf32> to vector<128xf32>
    %105 = vector.shape_cast %104 : vector<128xf32> to vector<1x128xf32>
    %106 = arith.mulf %99, %99 : vector<128x128xf32>
    %cst_115 = arith.constant dense<0.000000e+00> : vector<128xf32>
    %107 = vector.multi_reduction <add>, %106, %cst_115 [0] : vector<128x128xf32> to vector<128xf32>
    %108 = vector.shape_cast %107 : vector<128xf32> to vector<1x128xf32>
    %109 = tpu.iota {dimensions = array<i32: 0>} : vector<8x128xi32>
    %c0_i32_116 = arith.constant 0 : i32
    %110 = vector.broadcast %c0_i32_116 : i32 to vector<8x128xi32>
    %111 = arith.cmpi eq, %109, %110 : vector<8x128xi32>
    %112 = vector.shape_cast %105 : vector<1x128xf32> to vector<1x128xf32>
    %113 = vector.broadcast %112 : vector<1x128xf32> to vector<8x128xf32>
    %c1_i32_117 = arith.constant 1 : i32
    %114 = vector.broadcast %c1_i32_117 : i32 to vector<8x128xi32>
    %115 = arith.cmpi eq, %109, %114 : vector<8x128xi32>
    %116 = vector.shape_cast %108 : vector<1x128xf32> to vector<1x128xf32>
    %117 = vector.broadcast %116 : vector<1x128xf32> to vector<8x128xf32>
    %cst_118 = arith.constant 0.000000e+00 : f32
    %118 = vector.broadcast %cst_118 : f32 to vector<8x128xf32>
    %119 = arith.select %115, %117, %118 : vector<8x128xi1>, vector<8x128xf32>
    %120 = arith.select %111, %113, %119 : vector<8x128xi1>, vector<8x128xf32>
    %c0_119 = arith.constant 0 : index
    %c0_120 = arith.constant 0 : index
    %121 = vector.load %arg7[%c0_119, %c0_120] : memref<8x128xf32, #tpu.memory_space<vmem>>, vector<8x128xf32>
    tpu.vector_store %arg7[%c0_119, %c0_120], %120 {strides = array<i32>} : memref<8x128xf32, #tpu.memory_space<vmem>>, vector<8x128xf32>,
    return
  }
  func.func @transform_0(%arg0: i32, %arg1: i32, %arg2: i32) -> (i32, i32, i32, i32) {
    %c0_i32 = arith.constant 0 : i32
    %c0_i32_0 = arith.constant 0 : i32
    %c0_i32_1 = arith.constant 0 : i32
    %c0_i32_2 = arith.constant 0 : i32
    return %arg0, %c0_i32, %c0_i32_0, %c0_i32_1 : i32, i32, i32, i32
  }
  func.func @transform_1(%arg0: i32, %arg1: i32, %arg2: i32) -> (i32, i32, i32, i32) {
    %c0_i32 = arith.constant 0 : i32
    %c0_i32_0 = arith.constant 0 : i32
    %c0_i32_1 = arith.constant 0 : i32
    %c0_i32_2 = arith.constant 0 : i32
    return %c0_i32, %c0_i32_0, %c0_i32_1, %arg1 : i32, i32, i32, i32
  }
  func.func @transform_2(%arg0: i32, %arg1: i32, %arg2: i32) -> (i32, i32) {
    %c0_i32 = arith.constant 0 : i32
    %c0_i32_0 = arith.constant 0 : i32
    return %c0_i32, %arg1 : i32, i32
  }
  func.func @transform_3(%arg0: i32, %arg1: i32, %arg2: i32) -> (i32, i32, i32, i32) {
    %c0_i32 = arith.constant 0 : i32
    %c0_i32_0 = arith.constant 0 : i32
    return %arg0, %arg2, %c0_i32, %arg1 : i32, i32, i32, i32
  }
  func.func @transform_4(%arg0: i32, %arg1: i32, %arg2: i32) -> (i32, i32) {
    %c2_i32 = arith.constant 2 : i32
    %0 = arith.muli %arg0, %c2_i32 : i32
    %1 = arith.addi %0, %arg2 : i32
    %c0_i32 = arith.constant 0 : i32
    return %1, %arg1 : i32, i32
  }
}

</mosaic_0001>

<llo_original>
// kernel: tpu_custom_call.1
$region0: #{tpu_custom_call.1}
  #allocation0 [shape = 'u32[]', space=smem, size = 0x4, offset = 0x4, fixed_abs, tag = 'smem constant byte address 0x4 - core index']
  #allocation1 [shape = 'u32[144,128]{1,0:T(1,128)}', space=vmem, size = 0x12000, scoped, tag = 'internal scratch']
  #allocation2 [shape = 'f32[128,128]{1,0:T(8,128)}', space=vmem, size = 0x10000, scoped, tag = 'scratch operand']
  %s0 = inlined_call_operand.vmem [shape: bf16[2,18,18,4], index: 0, kind: input, shape index: {}]
  %s1 = inlined_call_operand.vmem [shape: bf16[3,3,4,128], index: 1, kind: input, shape index: {}]
  %s2 = inlined_call_operand.vmem [shape: f32[1,128], index: 2, kind: input, shape index: {}]
  %s3 = inlined_call_operand.hbm [shape: f32[2,16,16,128], index: 3, kind: output, shape index: {0}]
  %s4 = inlined_call_operand.hbm [shape: f32[32,128], index: 4, kind: output, shape index: {1}]
  %5 = xla_tuple %s3, %s4
  %s6 = sld [smem:[#allocation0]]
  $region53: #{tpu_custom_call.1} parent=0
    _
  %s8 = ssub.s32 1, %s6
  %s9 = scalar_select 0, %s8, %s6
  $region1: #{tpu_custom_call.1} parent=0
    #allocation3 [shape = 'u8[131072]{0}', space=vmem, size = 0x20000, scoped, tag = 'output window, operand 0']
    #allocation4 [shape = 's32[2]{0}', space=sflag, size = 0x8, scoped, tag = 'scoped memory for tpu_custom_call.1']
    #allocation5 [shape = 'u8[8192]{0}', space=vmem, size = 0x2000, scoped, tag = 'output window, operand 1']
    #allocation6 [shape = 's32[2]{0}', space=sflag, size = 0x8, scoped, tag = 'scoped memory for tpu_custom_call.1']
    %10 = vsyncpa [#allocation4], 0
    %s11 = scalar_lea.sflag [#allocation4], 1
    %12 = vsyncpa %s11, 0
    %13 = vsyncpa [#allocation6], 0
    %s14 = scalar_lea.sflag [#allocation6], 1
    %15 = vsyncpa %s14, 0
    loop: start=0, step=1, limit=6
    $region2: #{tpu_custom_call.1} parent=1 // loop_pre_header
      _
    $region3: #{tpu_custom_call.1} parent=1 // loop_header
      %s17 = sphi 0, %s21
      %p18 = scmp.ge.s32.totalorder %s17, 6
      %s24 = sphi 0, %s43
      %s25 = sphi 0, %s39
      %s26 = sphi 0, %s35
      %s27 = sphi 0, %s24
      %s28 = sphi 0, %s25
      %s29 = sphi 0, %s26
      %s30 = sphi 0, %s27
      %s31 = sphi 0, %s28
      %s32 = sphi 0, %s29
      %s46 = sphi 0, %s48
      %s49 = sphi 0, %s46
      %s50 = sphi 0, %s49
      %s66 = sphi 0, %s50
      %s72 = sphi 0, %s74
      %s75 = sphi 0, %s72
      %s76 = sphi 0, %s75
      %s92 = sphi 0, %s76
      %s98 = sphi 0, %s100
      %s101 = sphi 0, %s98
      %s102 = sphi 0, %s101
      %s118 = sphi 0, %s102
      %s128 = sphi 0, %s130
      %s131 = sphi 0, %s128
      %s132 = sphi 0, %s131
      %s148 = sphi 0, %s132
      %s160 = sphi 0, %s162
      %s163 = sphi 0, %s160
      %s164 = sphi 0, %s163
      %s180 = sphi 0, %s164
    $region4: #{tpu_custom_call.1} parent=1 // loop_header_branch
      %20 = sbr.rel (%p18) target = $region8
    $region5: #{tpu_custom_call.1} parent=1 // loop_body
      %s22 = ssub.s32 %s17, 1
      %s23 = ssub.s32 %s17, 2
      %s33 = sadd.s32 1, %s26
      %p34 = scmp.ge.s32.totalorder %s33, 2
      %s35 = scalar_select %p34, 0, %s33
      %s36 = sadd.s32 1, %s25
      %s37 = scalar_select %p34, %s36, %s25
      %p38 = scmp.ge.s32.totalorder %s37, 1
      %s39 = scalar_select %p38, 0, %s37
      %s40 = sadd.s32 1, %s24
      %s41 = scalar_select %p38, %s40, %s24
      %p42 = scmp.ge.s32.totalorder %s41, 2
      %s43 = scalar_select %p42, 0, %s41
      %s44 = ssub.s32 %s24, %s43
      %p45 = scmp.eq.s32.totalorder %s44, 0
      %s47 = sadd.s32 %s46, 1
      %s48 = scalar_select %p45, %s46, %s47
      %p51 = pneg %p45
      %p52 = scmp.eq.s32.totalorder %s17, 3
      %p53 = por %p51, %p52
      %p54 = scmp.ne.s32.totalorder %s46, %s49
      %p55 = scmp.eq.s32.totalorder %s17, 0
      %p56 = por %p54, %p55
      %p57 = scmp.ne.s32.totalorder %s46, %s49
      %p58 = scmp.eq.s32.totalorder %s22, 3
      %p59 = por %p57, %p58
      %p60 = scmp.ne.s32.totalorder %s49, %s50
      %p61 = scmp.eq.s32.totalorder %s22, 0
      %p62 = por %p60, %p61
      %p63 = scmp.ne.s32.totalorder %s49, %s50
      %p64 = scmp.eq.s32.totalorder %s23, 3
      %p65 = por %p63, %p64
      %p67 = scmp.ne.s32.totalorder %s50, %s66
      %p68 = scmp.eq.s32.totalorder %s23, 0
      %p69 = por %p67, %p68
      %s70 = ssub.s32 %s25, %s39
      %p71 = scmp.eq.s32.totalorder %s70, 0
      %s73 = sadd.s32 %s72, 1
      %s74 = scalar_select %p71, %s72, %s73
      %p77 = pneg %p71
      %p78 = scmp.eq.s32.totalorder %s17, 3
      %p79 = por %p77, %p78
      %p80 = scmp.ne.s32.totalorder %s72, %s75
      %p81 = scmp.eq.s32.totalorder %s17, 0
      %p82 = por %p80, %p81
      %p83 = scmp.ne.s32.totalorder %s72, %s75
      %p84 = scmp.eq.s32.totalorder %s22, 3
      %p85 = por %p83, %p84
      %p86 = scmp.ne.s32.totalorder %s75, %s76
      %p87 = scmp.eq.s32.totalorder %s22, 0
      %p88 = por %p86, %p87
      %p89 = scmp.ne.s32.totalorder %s75, %s76
      %p90 = scmp.eq.s32.totalorder %s23, 3
      %p91 = por %p89, %p90
      %p93 = scmp.ne.s32.totalorder %s76, %s92
      %p94 = scmp.eq.s32.totalorder %s23, 0
      %p95 = por %p93, %p94
      %s96 = ssub.s32 %s25, %s39
      %p97 = scmp.eq.s32.totalorder %s96, 0
      %s99 = sadd.s32 %s98, 1
      %s100 = scalar_select %p97, %s98, %s99
      %p103 = pneg %p97
      %p104 = scmp.eq.s32.totalorder %s17, 3
      %p105 = por %p103, %p104
      %p106 = scmp.ne.s32.totalorder %s98, %s101
      %p107 = scmp.eq.s32.totalorder %s17, 0
      %p108 = por %p106, %p107
      %p109 = scmp.ne.s32.totalorder %s98, %s101
      %p110 = scmp.eq.s32.totalorder %s22, 3
      %p111 = por %p109, %p110
      %p112 = scmp.ne.s32.totalorder %s101, %s102
      %p113 = scmp.eq.s32.totalorder %s22, 0
      %p114 = por %p112, %p113
      %p115 = scmp.ne.s32.totalorder %s101, %s102
      %p116 = scmp.eq.s32.totalorder %s23, 3
      %p117 = por %p115, %p116
      %p119 = scmp.ne.s32.totalorder %s102, %s118
      %p120 = scmp.eq.s32.totalorder %s23, 0
      %p121 = por %p119, %p120
      %s122 = ssub.s32 %s24, %s43
      %s123 = ssub.s32 %s26, %s35
      %s124 = sor.u32 %s122, %s123
      %s125 = ssub.s32 %s25, %s39
      %s126 = sor.u32 %s124, %s125
      %p127 = scmp.eq.s32.totalorder %s126, 0
      %s129 = sadd.s32 %s128, 1
      %s130 = scalar_select %p127, %s128, %s129
      %p133 = pneg %p127
      %p134 = scmp.eq.s32.totalorder %s17, 3
      %p135 = por %p133, %p134
      %p136 = scmp.ne.s32.totalorder %s128, %s131
      %p137 = scmp.eq.s32.totalorder %s17, 0
      %p138 = por %p136, %p137
      %p139 = scmp.ne.s32.totalorder %s128, %s131
      %p140 = scmp.eq.s32.totalorder %s22, 3
      %p141 = por %p139, %p140
      %p142 = scmp.ne.s32.totalorder %s131, %s132
      %p143 = scmp.eq.s32.totalorder %s22, 0
      %p144 = por %p142, %p143
      %p145 = scmp.ne.s32.totalorder %s131, %s132
      %p146 = scmp.eq.s32.totalorder %s23, 3
      %p147 = por %p145, %p146
      %p149 = scmp.ne.s32.totalorder %s132, %s148
      %p150 = scmp.eq.s32.totalorder %s23, 0
      %p151 = por %p149, %p150
      %s152 = smul.u32 %s24, 2
      %s153 = sadd.s32 %s152, %s26
      %s154 = smul.u32 %s43, 2
      %s155 = sadd.s32 %s154, %s35
      %s156 = ssub.s32 %s153, %s155
      %s157 = ssub.s32 %s25, %s39
      %s158 = sor.u32 %s156, %s157
      %p159 = scmp.eq.s32.totalorder %s158, 0
      %s161 = sadd.s32 %s160, 1
      %s162 = scalar_select %p159, %s160, %s161
      %p165 = pneg %p159
      %p166 = scmp.eq.s32.totalorder %s17, 3
      %p167 = por %p165, %p166
      %p168 = scmp.ne.s32.totalorder %s160, %s163
      %p169 = scmp.eq.s32.totalorder %s17, 0
      %p170 = por %p168, %p169
      %p171 = scmp.ne.s32.totalorder %s160, %s163
      %p172 = scmp.eq.s32.totalorder %s22, 3
      %p173 = por %p171, %p172
      %p174 = scmp.ne.s32.totalorder %s163, %s164
      %p175 = scmp.eq.s32.totalorder %s22, 0
      %p176 = por %p174, %p175
      %p177 = scmp.ne.s32.totalorder %s163, %s164
      %p178 = scmp.eq.s32.totalorder %s23, 3
      %p179 = por %p177, %p178
      %p181 = scmp.ne.s32.totalorder %s164, %s180
      %p182 = scmp.eq.s32.totalorder %s23, 0
      %p183 = por %p181, %p182
      %p184 = scmp.le.s32.totalorder 1, %s17
      %p185 = scmp.lt.s32.totalorder %s17, 5
      %p186 = pnand %p184, %p185
      %p187 = pneg %p186
      // Predicated region
      $region9: #{tpu_custom_call.1} parent=5 // pred_check
        _
      $region10: #{tpu_custom_call.1} parent=5 // pred_check_branch
        %189 = sbr.rel (%p186) target = $region12
      $region11: #{tpu_custom_call.1} parent=5 // pred_region
        %s190 = ssub.s32 %s17, 1
        // Predicated region
        $region13: #{tpu_custom_call.1} parent=11 // pred_check
          %p191 = pneg %p88
        $region14: #{tpu_custom_call.1} parent=11 // pred_check_branch
          %193 = sbr.rel (%p191) target = $region16
        $region15: #{tpu_custom_call.1} parent=11 // pred_region
          %p194 = scmp.lt.s32.totalorder %s28, 0
          %s195 = scalar_select %p194, %s28, 0
          %s196 = smul.addr %s195, 2
          %s197 = scalar_lea.vmem %s1, %s196
        $region16: #{tpu_custom_call.1} parent=11 // pred_fallthru
          _
        // Predicated region
        $region17: #{tpu_custom_call.1} parent=11 // pred_check
          %p198 = pneg %p114
        $region18: #{tpu_custom_call.1} parent=11 // pred_check_branch
          %200 = sbr.rel (%p198) target = $region20
        $region19: #{tpu_custom_call.1} parent=11 // pred_region
          %p201 = scmp.lt.s32.totalorder %s28, 0
          %s202 = scalar_select %p201, %s28, 0
          %s203 = scalar_lea.vmem %s2, %s202
        $region20: #{tpu_custom_call.1} parent=11 // pred_fallthru
          _
      $region12: #{tpu_custom_call.1} parent=5 // pred_fallthru
        _
      %p204 = scmp.lt.s32.totalorder %s17, 4
      // Predicated region
      $region21: #{tpu_custom_call.1} parent=5 // pred_check
        %p205 = pneg %p204
      $region22: #{tpu_custom_call.1} parent=5 // pred_check_branch
        %207 = sbr.rel (%p205) target = $region24
      $region23: #{tpu_custom_call.1} parent=5 // pred_region
        // Predicated region
        $region25: #{tpu_custom_call.1} parent=23 // pred_check
          %p208 = pneg %p56
        $region26: #{tpu_custom_call.1} parent=23 // pred_check_branch
          %210 = sbr.rel (%p208) target = $region28
        $region27: #{tpu_custom_call.1} parent=23 // pred_region
          %p211 = scmp.lt.s32.totalorder %s24, 1
          %s212 = scalar_select %p211, %s24, 1
          %s213 = smul.addr %s212, 54
          %s214 = smul.addr %s213, 4
          %s215 = scalar_lea.vmem %s0, %s214
        $region28: #{tpu_custom_call.1} parent=23 // pred_fallthru
          _
      $region24: #{tpu_custom_call.1} parent=5 // pred_fallthru
        _
      %p216 = scmp.le.s32.totalorder 1, %s17
      %p217 = scmp.lt.s32.totalorder %s17, 5
      %p218 = pnand %p216, %p217
      %p219 = pneg %p218
      // Predicated region
      $region29: #{tpu_custom_call.1} parent=5 // pred_check
        _
      $region30: #{tpu_custom_call.1} parent=5 // pred_check_branch
        %221 = sbr.rel (%p218) target = $region32
      $region31: #{tpu_custom_call.1} parent=5 // pred_region
        %s222 = ssub.s32 %s17, 1
        %p223 = scmp.lt.s32.totalorder %s27, 1
        %s224 = scalar_select %p223, %s27, 1
        %s225 = smul.addr %s224, 54
        %s226 = smul.addr %s225, 4
        %s227 = scalar_lea.vmem %s0, %s226
        %p228 = pneg %p62
        %p229 = pneg %p59
        %p230 = scmp.lt.s32.totalorder %s28, 0
        %s231 = scalar_select %p230, %s28, 0
        %s232 = smul.addr %s231, 2
        %s233 = scalar_lea.vmem %s1, %s232
        %p234 = pneg %p88
        %p235 = pneg %p85
        %p236 = scmp.lt.s32.totalorder %s28, 0
        %s237 = scalar_select %p236, %s28, 0
        %s238 = scalar_lea.vmem %s2, %s237
        %p239 = pneg %p114
        %p240 = pneg %p111
        %p241 = pneg %p144
        %p242 = pneg %p141
        %s243 = sand.u32 %s131, 1
        %s244 = scalar_lea.sflag [#allocation4], %s243
        %s245 = sand.u32 %s131, 1
        %s246 = smul.addr %s245, 128
        %s247 = scalar_lea.vmem [#allocation3], %s246
        %p248 = pneg %p176
        %p249 = pneg %p173
        %s250 = sand.u32 %s163, 1
        %s251 = scalar_lea.sflag [#allocation6], %s250
        %s252 = sand.u32 %s163, 1
        %s253 = smul.addr %s252, 8
        %s254 = scalar_lea.vmem [#allocation5], %s253
        %p255 = scmp.lt.s32.totalorder %s27, 1
        %s256 = scalar_select %p255, %s27, 1
        %s257 = smul.addr %s256, 54
        %s258 = smul.addr %s257, 4
        %s259 = scalar_lea.vmem %s0, %s258
        %p260 = scmp.lt.s32.totalorder %s28, 0
        %s261 = scalar_select %p260, %s28, 0
        %s262 = smul.addr %s261, 2
        %s263 = scalar_lea.vmem %s1, %s262
        %p264 = scmp.lt.s32.totalorder %s28, 0
        %s265 = scalar_select %p264, %s28, 0
        %s266 = scalar_lea.vmem %s2, %s265
        %s267 = smul.u32 8, %s29
        %s268 = smul.u32 %s27, 2
        %s269 = sadd.s32 %s268, %s29
        %s271 = smul.u32 %s29, 8
        %s272 = smul.u32 %s271, 3
        %s273 = smul.addr %s272, 4
        %s274 = scalar_lea.vmem %s259, %s273
        %v275 = vld [vmem:[%s274] sm:$0xf]
        %v276 = vld [vmem:[%s274 + $0x4] sm:$0xf]
        %v277 = vld [vmem:[%s274 + $0xc] sm:$0xf]
        %v278 = vld [vmem:[%s274 + $0x10] sm:$0xf]
        %v279 = vld [vmem:[%s274 + $0x18] sm:$0xf]
        %v280 = vld [vmem:[%s274 + $0x1c] sm:$0xf]
        %v281 = vld [vmem:[%s274 + $0x24] sm:$0xf]
        %v282 = vld [vmem:[%s274 + $0x28] sm:$0xf]
        %v283 = vld [vmem:[%s274 + $0x30] sm:$0xf]
        %v284 = vld [vmem:[%s274 + $0x34] sm:$0xf]
        %v285 = vld [vmem:[%s274 + $0x3c] sm:$0xf]
        %v286 = vld [vmem:[%s274 + $0x40] sm:$0xf]
        %v287 = vld [vmem:[%s274 + $0x48] sm:$0xf]
        %v288 = vld [vmem:[%s274 + $0x4c] sm:$0xf]
        %v289 = vld [vmem:[%s274 + $0x54] sm:$0xf]
        %v290 = vld [vmem:[%s274 + $0x58] sm:$0xf]
        %v291 = vld [vmem:[%s263] sm:$0x3]
        %v308 = vunpack.c.l.b16 %v275
        %v309 = vunpack.c.l.b16 %v276
        %v310 = vunpack.c.l.b16 %v277
        %v311 = vunpack.c.l.b16 %v278
        %v312 = vunpack.c.l.b16 %v279
        %v313 = vunpack.c.l.b16 %v280
        %v314 = vunpack.c.l.b16 %v281
        %v315 = vunpack.c.l.b16 %v282
        %v316 = vunpack.c.l.b16 %v283
        %v317 = vunpack.c.l.b16 %v284
        %v318 = vunpack.c.l.b16 %v285
        %v319 = vunpack.c.l.b16 %v286
        %v320 = vunpack.c.l.b16 %v287
        %v321 = vunpack.c.l.b16 %v288
        %v322 = vunpack.c.l.b16 %v289
        %v323 = vunpack.c.l.b16 %v290
        %v324 = vpack.c.b16 %v309, %v308
        %v325 = vpack.c.b16 %v311, %v310
        %v326 = vpack.c.b16 %v313, %v312
        %v327 = vpack.c.b16 %v315, %v314
        %v328 = vpack.c.b16 %v317, %v316
        %v329 = vpack.c.b16 %v319, %v318
        %v330 = vpack.c.b16 %v321, %v320
        %v331 = vpack.c.b16 %v323, %v322
        %vm332 = vcmask 31744
        %v334 = vsel %vm332, %v324, 0
        %v337 = vsel %vm332, %v325, 0
        %v340 = vsel %vm332, %v326, 0
        %v343 = vsel %vm332, %v327, 0
        %v346 = vsel %vm332, %v328, 0
        %v349 = vsel %vm332, %v329, 0
        %v352 = vsel %vm332, %v330, 0
        %v355 = vsel %vm332, %v331, 0
        %vm357 = vcmask 1041408
        %v359 = vsel %vm357, %v291, 0
        %361 = vmatprep.subr.bf16.mxu0 0
        %362 = vmatpush1.bf16.msra.mxu0 0
        %363 = vmatprep.subr.bf16.mxu0 0
        %364 = vmatpush1.bf16.msra.mxu0 0
        %365 = vmatprep.subr.bf16.mxu0 0
        %366 = vmatpush1.bf16.msra.mxu0 0
        %367 = vmatprep.subr.bf16.mxu0 0
        %368 = vmatpush1.bf16.msra.mxu0 0
        %369 = vmatprep.subr.bf16.mxu0 0
        %370 = vmatpush1.bf16.msra.mxu0 0
        %371 = vmatprep.subr.bf16.mxu0 0
        %372 = vmatpush1.bf16.msra.mxu0 0
        %373 = vmatprep.subr.bf16.mxu0 0
        %374 = vmatpush1.bf16.msra.mxu0 0
        %375 = vmatprep.subr.bf16.mxu0 0
        %376 = vmatpush1.bf16.msra.mxu0 %v359
        %377 = vmatprep.subr.bf16.mxu0 0
        %378 = vmatpush2.bf16.msra.mxu0 0
        %379 = vmatprep.subr.bf16.mxu0 0
        %380 = vmatpush2.bf16.msra.mxu0 0
        %381 = vmatprep.subr.bf16.mxu0 0
        %382 = vmatpush2.bf16.msra.mxu0 0
        %383 = vmatprep.subr.bf16.mxu0 0
        %384 = vmatpush2.bf16.msra.mxu0 0
        %385 = vmatprep.subr.bf16.mxu0 0
        %386 = vmatpush2.bf16.msra.mxu0 0
        %387 = vmatprep.subr.bf16.mxu0 0
        %388 = vmatpush2.bf16.msra.mxu0 0
        %389 = vmatprep.subr.bf16.mxu0 0
        %390 = vmatpush2.bf16.msra.mxu0 0
        %391 = vmatprep.subr.bf16.mxu0 0
        %392 = vmatpush2.bf16.msra.mxu0 0
        %393 = vmatprep.mubr.bf16.mxu0 0
        %394 = vmatmul.mubr.bf16.gmra.mxu0 %v334
        %v395 = vpop.f32.mrf.mxu0
        %v396 = vadd.f32 0.0, %v395
        %v397 = vpop.f32.mrf.mxu0
        %v398 = vpop.f32.mrf.mxu0
        %v399 = vadd.f32 0.0, %v398
        %v400 = vpop.f32.mrf.mxu0
        %401 = vmatprep.mubr.bf16.mxu0 0
        %402 = vmatmul.mubr.bf16.gmra.mxu0 %v337
        %v403 = vpop.f32.mrf.mxu0
        %v404 = vadd.f32 0.0, %v403
        %v405 = vpop.f32.mrf.mxu0
        %v406 = vpop.f32.mrf.mxu0
        %v407 = vadd.f32 0.0, %v406
        %v408 = vpop.f32.mrf.mxu0
        %409 = vmatprep.mubr.bf16.mxu0 0
        %410 = vmatmul.mubr.bf16.gmra.mxu0 %v340
        %v411 = vpop.f32.mrf.mxu0
        %v412 = vadd.f32 0.0, %v411
        %v413 = vpop.f32.mrf.mxu0
        %v414 = vpop.f32.mrf.mxu0
        %v415 = vadd.f32 0.0, %v414
        %v416 = vpop.f32.mrf.mxu0
        %417 = vmatprep.mubr.bf16.mxu0 0
        %418 = vmatmul.mubr.bf16.gmra.mxu0 %v343
        %v419 = vpop.f32.mrf.mxu0
        %v420 = vadd.f32 0.0, %v419
        %v421 = vpop.f32.mrf.mxu0
        %v422 = vpop.f32.mrf.mxu0
        %v423 = vadd.f32 0.0, %v422
        %v424 = vpop.f32.mrf.mxu0
        %425 = vmatprep.mubr.bf16.mxu0 0
        %426 = vmatmul.mubr.bf16.gmra.mxu0 %v346
        %v427 = vpop.f32.mrf.mxu0
        %v428 = vadd.f32 0.0, %v427
        %v429 = vpop.f32.mrf.mxu0
        %v430 = vpop.f32.mrf.mxu0
        %v431 = vadd.f32 0.0, %v430
        %v432 = vpop.f32.mrf.mxu0
        %433 = vmatprep.mubr.bf16.mxu0 0
        %434 = vmatmul.mubr.bf16.gmra.mxu0 %v349
        %v435 = vpop.f32.mrf.mxu0
        %v436 = vadd.f32 0.0, %v435
        %v437 = vpop.f32.mrf.mxu0
        %v438 = vpop.f32.mrf.mxu0
        %v439 = vadd.f32 0.0, %v438
        %v440 = vpop.f32.mrf.mxu0
        %441 = vmatprep.mubr.bf16.mxu0 0
        %442 = vmatmul.mubr.bf16.gmra.mxu0 %v352
        %v443 = vpop.f32.mrf.mxu0
        %v444 = vadd.f32 0.0, %v443
        %v445 = vpop.f32.mrf.mxu0
        %v446 = vpop.f32.mrf.mxu0
        %v447 = vadd.f32 0.0, %v446
        %v448 = vpop.f32.mrf.mxu0
        %449 = vmatprep.mubr.bf16.mxu0 0
        %450 = vmatmul.mubr.bf16.gmra.mxu0 %v355
        %v451 = vpop.f32.mrf.mxu0
        %v452 = vadd.f32 0.0, %v451
        %v453 = vpop.f32.mrf.mxu0
        %v454 = vpop.f32.mrf.mxu0
        %v455 = vadd.f32 0.0, %v454
        %v456 = vpop.f32.mrf.mxu0
        %457 = vdwg.mxu0
        %458 = vst [vmem:[#allocation2] sm:$0xff] %v396
        %459 = vst [vmem:[#allocation2 + $0x8] sm:$0xff] %v399
        %460 = vst [vmem:[#allocation2 + $0x10] sm:$0xff] %v404
        %461 = vst [vmem:[#allocation2 + $0x18] sm:$0xff] %v407
        %462 = vst [vmem:[#allocation2 + $0x20] sm:$0xff] %v412
        %463 = vst [vmem:[#allocation2 + $0x28] sm:$0xff] %v415
        %464 = vst [vmem:[#allocation2 + $0x30] sm:$0xff] %v420
        %465 = vst [vmem:[#allocation2 + $0x38] sm:$0xff] %v423
        %466 = vst [vmem:[#allocation2 + $0x40] sm:$0xff] %v428
        %467 = vst [vmem:[#allocation2 + $0x48] sm:$0xff] %v431
        %468 = vst [vmem:[#allocation2 + $0x50] sm:$0xff] %v436
        %469 = vst [vmem:[#allocation2 + $0x58] sm:$0xff] %v439
        %470 = vst [vmem:[#allocation2 + $0x60] sm:$0xff] %v444
        %471 = vst [vmem:[#allocation2 + $0x68] sm:$0xff] %v447
        %472 = vst [vmem:[#allocation2 + $0x70] sm:$0xff] %v452
        %473 = vst [vmem:[#allocation2 + $0x78] sm:$0xff] %v455
        %v474 = vld [vmem:[%s274] sm:$0xf]
        %v475 = vld [vmem:[%s274 + $0x4] sm:$0xf]
        %v476 = vld [vmem:[%s274 + $0x8] sm:$0x1]
        %v477 = vld [vmem:[%s274 + $0xc] sm:$0xf]
        %v478 = vld [vmem:[%s274 + $0x10] sm:$0xf]
        %v479 = vld [vmem:[%s274 + $0x14] sm:$0x1]
        %v480 = vld [vmem:[%s274 + $0x18] sm:$0xf]
        %v481 = vld [vmem:[%s274 + $0x1c] sm:$0xf]
        %v482 = vld [vmem:[%s274 + $0x20] sm:$0x1]
        %v483 = vld [vmem:[%s274 + $0x24] sm:$0xf]
        %v484 = vld [vmem:[%s274 + $0x28] sm:$0xf]
        %v485 = vld [vmem:[%s274 + $0x2c] sm:$0x1]
        %v486 = vld [vmem:[%s274 + $0x30] sm:$0xf]
        %v487 = vld [vmem:[%s274 + $0x34] sm:$0xf]
        %v488 = vld [vmem:[%s274 + $0x38] sm:$0x1]
        %v489 = vld [vmem:[%s274 + $0x3c] sm:$0xf]
        %v490 = vld [vmem:[%s274 + $0x40] sm:$0xf]
        %v491 = vld [vmem:[%s274 + $0x44] sm:$0x1]
        %v492 = vld [vmem:[%s274 + $0x48] sm:$0xf]
        %v493 = vld [vmem:[%s274 + $0x4c] sm:$0xf]
        %v494 = vld [vmem:[%s274 + $0x50] sm:$0x1]
        %v495 = vld [vmem:[%s274 + $0x54] sm:$0xf]
        %v496 = vld [vmem:[%s274 + $0x58] sm:$0xf]
        %v497 = vld [vmem:[%s274 + $0x5c] sm:$0x1]
        %vm498 = vsmask.f32 3328
        %vm499 = vsmask.f32 7440
        %vm500 = vmor %vm498, %vm499
        %v502 = vshrl.u32 %v474, 16
        %v504 = vrot.slane %v502, 4
        %v505 = vshll.u32 %v474, 16
        %v507 = vrot.slane %v505, 5
        %v508 = vor.u32 %v504, %v507
        %v509 = vrot.slane %v508, 4
        %v511 = vshll.u32 %v475, 16
        %v513 = vrot.slane %v511, 5
        %v514 = vsel %vm500, %v509, %v513
        %v515 = vshrl.u32 %v475, 16
        %v517 = vrot.slane %v515, 4
        %v518 = vor.u32 %v517, %v513
        %v519 = vrot.slane %v518, 4
        %v521 = vshll.u32 %v476, 16
        %v523 = vrot.slane %v521, 5
        %v524 = vsel %vm500, %v519, %v523
        %v526 = vshrl.u32 %v477, 16
        %v528 = vrot.slane %v526, 4
        %v529 = vshll.u32 %v477, 16
        %v531 = vrot.slane %v529, 5
        %v532 = vor.u32 %v528, %v531
        %v533 = vrot.slane %v532, 4
        %v535 = vshll.u32 %v478, 16
        %v537 = vrot.slane %v535, 5
        %v538 = vsel %vm500, %v533, %v537
        %v539 = vshrl.u32 %v478, 16
        %v541 = vrot.slane %v539, 4
        %v542 = vor.u32 %v541, %v537
        %v543 = vrot.slane %v542, 4
        %v545 = vshll.u32 %v479, 16
        %v547 = vrot.slane %v545, 5
        %v548 = vsel %vm500, %v543, %v547
        %v550 = vshrl.u32 %v480, 16
        %v552 = vrot.slane %v550, 4
        %v553 = vshll.u32 %v480, 16
        %v555 = vrot.slane %v553, 5
        %v556 = vor.u32 %v552, %v555
        %v557 = vrot.slane %v556, 4
        %v559 = vshll.u32 %v481, 16
        %v561 = vrot.slane %v559, 5
        %v562 = vsel %vm500, %v557, %v561
        %v563 = vshrl.u32 %v481, 16
        %v565 = vrot.slane %v563, 4
        %v566 = vor.u32 %v565, %v561
        %v567 = vrot.slane %v566, 4
        %v569 = vshll.u32 %v482, 16
        %v571 = vrot.slane %v569, 5
        %v572 = vsel %vm500, %v567, %v571
        %v574 = vshrl.u32 %v483, 16
        %v576 = vrot.slane %v574, 4
        %v577 = vshll.u32 %v483, 16
        %v579 = vrot.slane %v577, 5
        %v580 = vor.u32 %v576, %v579
        %v581 = vrot.slane %v580, 4
        %v583 = vshll.u32 %v484, 16
        %v585 = vrot.slane %v583, 5
        %v586 = vsel %vm500, %v581, %v585
        %v587 = vshrl.u32 %v484, 16
        %v589 = vrot.slane %v587, 4
        %v590 = vor.u32 %v589, %v585
        %v591 = vrot.slane %v590, 4
        %v593 = vshll.u32 %v485, 16
        %v595 = vrot.slane %v593, 5
        %v596 = vsel %vm500, %v591, %v595
        %v598 = vshrl.u32 %v486, 16
        %v600 = vrot.slane %v598, 4
        %v601 = vshll.u32 %v486, 16
        %v603 = vrot.slane %v601, 5
        %v604 = vor.u32 %v600, %v603
        %v605 = vrot.slane %v604, 4
        %v607 = vshll.u32 %v487, 16
        %v609 = vrot.slane %v607, 5
        %v610 = vsel %vm500, %v605, %v609
        %v611 = vshrl.u32 %v487, 16
        %v613 = vrot.slane %v611, 4
        %v614 = vor.u32 %v613, %v609
        %v615 = vrot.slane %v614, 4
        %v617 = vshll.u32 %v488, 16
        %v619 = vrot.slane %v617, 5
        %v620 = vsel %vm500, %v615, %v619
        %v622 = vshrl.u32 %v489, 16
        %v624 = vrot.slane %v622, 4
        %v625 = vshll.u32 %v489, 16
        %v627 = vrot.slane %v625, 5
        %v628 = vor.u32 %v624, %v627
        %v629 = vrot.slane %v628, 4
        %v631 = vshll.u32 %v490, 16
        %v633 = vrot.slane %v631, 5
        %v634 = vsel %vm500, %v629, %v633
        %v635 = vshrl.u32 %v490, 16
        %v637 = vrot.slane %v635, 4
        %v638 = vor.u32 %v637, %v633
        %v639 = vrot.slane %v638, 4
        %v641 = vshll.u32 %v491, 16
        %v643 = vrot.slane %v641, 5
        %v644 = vsel %vm500, %v639, %v643
        %v646 = vshrl.u32 %v492, 16
        %v648 = vrot.slane %v646, 4
        %v649 = vshll.u32 %v492, 16
        %v651 = vrot.slane %v649, 5
        %v652 = vor.u32 %v648, %v651
        %v653 = vrot.slane %v652, 4
        %v655 = vshll.u32 %v493, 16
        %v657 = vrot.slane %v655, 5
        %v658 = vsel %vm500, %v653, %v657
        %v659 = vshrl.u32 %v493, 16
        %v661 = vrot.slane %v659, 4
        %v662 = vor.u32 %v661, %v657
        %v663 = vrot.slane %v662, 4
        %v665 = vshll.u32 %v494, 16
        %v667 = vrot.slane %v665, 5
        %v668 = vsel %vm500, %v663, %v667
        %v670 = vshrl.u32 %v495, 16
        %v672 = vrot.slane %v670, 4
        %v673 = vshll.u32 %v495, 16
        %v675 = vrot.slane %v673, 5
        %v676 = vor.u32 %v672, %v675
        %v677 = vrot.slane %v676, 4
        %v679 = vshll.u32 %v496, 16
        %v681 = vrot.slane %v679, 5
        %v682 = vsel %vm500, %v677, %v681
        %v683 = vshrl.u32 %v496, 16
        %v685 = vrot.slane %v683, 4
        %v686 = vor.u32 %v685, %v681
        %v687 = vrot.slane %v686, 4
        %v689 = vshll.u32 %v497, 16
        %v691 = vrot.slane %v689, 5
        %v692 = vsel %vm500, %v687, %v691
        %s693 = scalar_lea.vmem %s263, 2
        %v694 = vld [vmem:[%s693] sm:$0x3]
        %v695 = vunpack.c.l.b16 %v514
        %v696 = vunpack.c.l.b16 %v524
        %v697 = vunpack.c.l.b16 %v538
        %v698 = vunpack.c.l.b16 %v548
        %v699 = vunpack.c.l.b16 %v562
        %v700 = vunpack.c.l.b16 %v572
        %v701 = vunpack.c.l.b16 %v586
        %v702 = vunpack.c.l.b16 %v596
        %v703 = vunpack.c.l.b16 %v610
        %v704 = vunpack.c.l.b16 %v620
        %v705 = vunpack.c.l.b16 %v634
        %v706 = vunpack.c.l.b16 %v644
        %v707 = vunpack.c.l.b16 %v658
        %v708 = vunpack.c.l.b16 %v668
        %v709 = vunpack.c.l.b16 %v682
        %v710 = vunpack.c.l.b16 %v692
        %v711 = vpack.c.b16 %v696, %v695
        %v712 = vpack.c.b16 %v698, %v697
        %v713 = vpack.c.b16 %v700, %v699
        %v714 = vpack.c.b16 %v702, %v701
        %v715 = vpack.c.b16 %v704, %v703
        %v716 = vpack.c.b16 %v706, %v705
        %v717 = vpack.c.b16 %v708, %v707
        %v718 = vpack.c.b16 %v710, %v709
        %v720 = vsel %vm332, %v711, 0
        %v723 = vsel %vm332, %v712, 0
        %v726 = vsel %vm332, %v713, 0
        %v729 = vsel %vm332, %v714, 0
        %v732 = vsel %vm332, %v715, 0
        %v735 = vsel %vm332, %v716, 0
        %v738 = vsel %vm332, %v717, 0
        %v741 = vsel %vm332, %v718, 0
        %v744 = vsel %vm357, %v694, 0
        %746 = vmatprep.subr.bf16.mxu0 0
        %747 = vmatpush1.bf16.msra.mxu0 0
        %748 = vmatprep.subr.bf16.mxu0 0
        %749 = vmatpush1.bf16.msra.mxu0 0
        %750 = vmatprep.subr.bf16.mxu0 0
        %751 = vmatpush1.bf16.msra.mxu0 0
        %752 = vmatprep.subr.bf16.mxu0 0
        %753 = vmatpush1.bf16.msra.mxu0 0
        %754 = vmatprep.subr.bf16.mxu0 0
        %755 = vmatpush1.bf16.msra.mxu0 0
        %756 = vmatprep.subr.bf16.mxu0 0
        %757 = vmatpush1.bf16.msra.mxu0 0
        %758 = vmatprep.subr.bf16.mxu0 0
        %759 = vmatpush1.bf16.msra.mxu0 0
        %760 = vmatprep.subr.bf16.mxu0 0
        %761 = vmatpush1.bf16.msra.mxu0 %v744
        %762 = vmatprep.subr.bf16.mxu0 0
        %763 = vmatpush2.bf16.msra.mxu0 0
        %764 = vmatprep.subr.bf16.mxu0 0
        %765 = vmatpush2.bf16.msra.mxu0 0
        %766 = vmatprep.subr.bf16.mxu0 0
        %767 = vmatpush2.bf16.msra.mxu0 0
        %768 = vmatprep.subr.bf16.mxu0 0
        %769 = vmatpush2.bf16.msra.mxu0 0
        %770 = vmatprep.subr.bf16.mxu0 0
        %771 = vmatpush2.bf16.msra.mxu0 0
        %772 = vmatprep.subr.bf16.mxu0 0
        %773 = vmatpush2.bf16.msra.mxu0 0
        %774 = vmatprep.subr.bf16.mxu0 0
        %775 = vmatpush2.bf16.msra.mxu0 0
        %776 = vmatprep.subr.bf16.mxu0 0
        %777 = vmatpush2.bf16.msra.mxu0 0
        %778 = vmatprep.mubr.bf16.mxu0 0
        %779 = vmatmul.mubr.bf16.gmra.mxu0 %v720
        %v780 = vpop.f32.mrf.mxu0
        %v781 = vadd.f32 0.0, %v780
        %v782 = vpop.f32.mrf.mxu0
        %v783 = vpop.f32.mrf.mxu0
        %v784 = vadd.f32 0.0, %v783
        %v785 = vpop.f32.mrf.mxu0
        %786 = vmatprep.mubr.bf16.mxu0 0
        %787 = vmatmul.mubr.bf16.gmra.mxu0 %v723
        %v788 = vpop.f32.mrf.mxu0
        %v789 = vadd.f32 0.0, %v788
        %v790 = vpop.f32.mrf.mxu0
        %v791 = vpop.f32.mrf.mxu0
        %v792 = vadd.f32 0.0, %v791
        %v793 = vpop.f32.mrf.mxu0
        %794 = vmatprep.mubr.bf16.mxu0 0
        %795 = vmatmul.mubr.bf16.gmra.mxu0 %v726
        %v796 = vpop.f32.mrf.mxu0
        %v797 = vadd.f32 0.0, %v796
        %v798 = vpop.f32.mrf.mxu0
        %v799 = vpop.f32.mrf.mxu0
        %v800 = vadd.f32 0.0, %v799
        %v801 = vpop.f32.mrf.mxu0
        %802 = vmatprep.mubr.bf16.mxu0 0
        %803 = vmatmul.mubr.bf16.gmra.mxu0 %v729
        %v804 = vpop.f32.mrf.mxu0
        %v805 = vadd.f32 0.0, %v804
        %v806 = vpop.f32.mrf.mxu0
        %v807 = vpop.f32.mrf.mxu0
        %v808 = vadd.f32 0.0, %v807
        %v809 = vpop.f32.mrf.mxu0
        %810 = vmatprep.mubr.bf16.mxu0 0
        %811 = vmatmul.mubr.bf16.gmra.mxu0 %v732
        %v812 = vpop.f32.mrf.mxu0
        %v813 = vadd.f32 0.0, %v812
        %v814 = vpop.f32.mrf.mxu0
        %v815 = vpop.f32.mrf.mxu0
        %v816 = vadd.f32 0.0, %v815
        %v817 = vpop.f32.mrf.mxu0
        %818 = vmatprep.mubr.bf16.mxu0 0
        %819 = vmatmul.mubr.bf16.gmra.mxu0 %v735
        %v820 = vpop.f32.mrf.mxu0
        %v821 = vadd.f32 0.0, %v820
        %v822 = vpop.f32.mrf.mxu0
        %v823 = vpop.f32.mrf.mxu0
        %v824 = vadd.f32 0.0, %v823
        %v825 = vpop.f32.mrf.mxu0
        %826 = vmatprep.mubr.bf16.mxu0 0
        %827 = vmatmul.mubr.bf16.gmra.mxu0 %v738
        %v828 = vpop.f32.mrf.mxu0
        %v829 = vadd.f32 0.0, %v828
        %v830 = vpop.f32.mrf.mxu0
        %v831 = vpop.f32.mrf.mxu0
        %v832 = vadd.f32 0.0, %v831
        %v833 = vpop.f32.mrf.mxu0
        %834 = vmatprep.mubr.bf16.mxu0 0
        %835 = vmatmul.mubr.bf16.gmra.mxu0 %v741
        %v836 = vpop.f32.mrf.mxu0
        %v837 = vadd.f32 0.0, %v836
        %v838 = vpop.f32.mrf.mxu0
        %v839 = vpop.f32.mrf.mxu0
        %v840 = vadd.f32 0.0, %v839
        %v841 = vpop.f32.mrf.mxu0
        %842 = vdwg.mxu0
        %v843 = vld [vmem:[#allocation2] sm:$0xff]
        %v844 = vld [vmem:[#allocation2 + $0x8] sm:$0xff]
        %v845 = vld [vmem:[#allocation2 + $0x10] sm:$0xff]
        %v846 = vld [vmem:[#allocation2 + $0x18] sm:$0xff]
        %v847 = vld [vmem:[#allocation2 + $0x20] sm:$0xff]
        %v848 = vld [vmem:[#allocation2 + $0x28] sm:$0xff]
        %v849 = vld [vmem:[#allocation2 + $0x30] sm:$0xff]
        %v850 = vld [vmem:[#allocation2 + $0x38] sm:$0xff]
        %v851 = vld [vmem:[#allocation2 + $0x40] sm:$0xff]
        %v852 = vld [vmem:[#allocation2 + $0x48] sm:$0xff]
        %v853 = vld [vmem:[#allocation2 + $0x50] sm:$0xff]
        %v854 = vld [vmem:[#allocation2 + $0x58] sm:$0xff]
        %v855 = vld [vmem:[#allocation2 + $0x60] sm:$0xff]
        %v856 = vld [vmem:[#allocation2 + $0x68] sm:$0xff]
        %v857 = vld [vmem:[#allocation2 + $0x70] sm:$0xff]
        %v858 = vld [vmem:[#allocation2 + $0x78] sm:$0xff]
        %v859 = vadd.f32 %v843, %v781
        %v860 = vadd.f32 %v844, %v784
        %v861 = vadd.f32 %v845, %v789
        %v862 = vadd.f32 %v846, %v792
        %v863 = vadd.f32 %v847, %v797
        %v864 = vadd.f32 %v848, %v800
        %v865 = vadd.f32 %v849, %v805
        %v866 = vadd.f32 %v850, %v808
        %v867 = vadd.f32 %v851, %v813
        %v868 = vadd.f32 %v852, %v816
        %v869 = vadd.f32 %v853, %v821
        %v870 = vadd.f32 %v854, %v824
        %v871 = vadd.f32 %v855, %v829
        %v872 = vadd.f32 %v856, %v832
        %v873 = vadd.f32 %v857, %v837
        %v874 = vadd.f32 %v858, %v840
        %875 = vst [vmem:[#allocation2] sm:$0xff] %v859
        %876 = vst [vmem:[#allocation2 + $0x8] sm:$0xff] %v860
        %877 = vst [vmem:[#allocation2 + $0x10] sm:$0xff] %v861
        %878 = vst [vmem:[#allocation2 + $0x18] sm:$0xff] %v862
        %879 = vst [vmem:[#allocation2 + $0x20] sm:$0xff] %v863
        %880 = vst [vmem:[#allocation2 + $0x28] sm:$0xff] %v864
        %881 = vst [vmem:[#allocation2 + $0x30] sm:$0xff] %v865
        %882 = vst [vmem:[#allocation2 + $0x38] sm:$0xff] %v866
        %883 = vst [vmem:[#allocation2 + $0x40] sm:$0xff] %v867
        %884 = vst [vmem:[#allocation2 + $0x48] sm:$0xff] %v868
        %885 = vst [vmem:[#allocation2 + $0x50] sm:$0xff] %v869
        %886 = vst [vmem:[#allocation2 + $0x58] sm:$0xff] %v870
        %887 = vst [vmem:[#allocation2 + $0x60] sm:$0xff] %v871
        %888 = vst [vmem:[#allocation2 + $0x68] sm:$0xff] %v872
        %889 = vst [vmem:[#allocation2 + $0x70] sm:$0xff] %v873
        %890 = vst [vmem:[#allocation2 + $0x78] sm:$0xff] %v874
        %v891 = vld [vmem:[%s274] sm:$0xe]
        %v892 = vld [vmem:[%s274 + $0x4] sm:$0xf]
        %v893 = vld [vmem:[%s274 + $0x8] sm:$0x1]
        %v894 = vld [vmem:[%s274 + $0xc] sm:$0xe]
        %v895 = vld [vmem:[%s274 + $0x10] sm:$0xf]
        %v896 = vld [vmem:[%s274 + $0x14] sm:$0x1]
        %v897 = vld [vmem:[%s274 + $0x18] sm:$0xe]
        %v898 = vld [vmem:[%s274 + $0x1c] sm:$0xf]
        %v899 = vld [vmem:[%s274 + $0x20] sm:$0x1]
        %v900 = vld [vmem:[%s274 + $0x24] sm:$0xe]
        %v901 = vld [vmem:[%s274 + $0x28] sm:$0xf]
        %v902 = vld [vmem:[%s274 + $0x2c] sm:$0x1]
        %v903 = vld [vmem:[%s274 + $0x30] sm:$0xe]
        %v904 = vld [vmem:[%s274 + $0x34] sm:$0xf]
        %v905 = vld [vmem:[%s274 + $0x38] sm:$0x1]
        %v906 = vld [vmem:[%s274 + $0x3c] sm:$0xe]
        %v907 = vld [vmem:[%s274 + $0x40] sm:$0xf]
        %v908 = vld [vmem:[%s274 + $0x44] sm:$0x1]
        %v909 = vld [vmem:[%s274 + $0x48] sm:$0xe]
        %v910 = vld [vmem:[%s274 + $0x4c] sm:$0xf]
        %v911 = vld [vmem:[%s274 + $0x50] sm:$0x1]
        %v912 = vld [vmem:[%s274 + $0x54] sm:$0xe]
        %v913 = vld [vmem:[%s274 + $0x58] sm:$0xf]
        %v914 = vld [vmem:[%s274 + $0x5c] sm:$0x1]
        %vm939 = vcmask 1042432
        %vm940 = vcmask 1046532
        %vm941 = vmor %vm939, %vm940
        %v942 = vrot.slane %v891, 5
        %v943 = vrot.slane %v942, 4
        %v944 = vrot.slane %v892, 5
        %v945 = vsel %vm941, %v943, %v944
        %v946 = vrot.slane %v944, 4
        %v947 = vrot.slane %v893, 5
        %v948 = vsel %vm941, %v946, %v947
        %v949 = vrot.slane %v894, 5
        %v950 = vrot.slane %v949, 4
        %v951 = vrot.slane %v895, 5
        %v952 = vsel %vm941, %v950, %v951
        %v953 = vrot.slane %v951, 4
        %v954 = vrot.slane %v896, 5
        %v955 = vsel %vm941, %v953, %v954
        %v956 = vrot.slane %v897, 5
        %v957 = vrot.slane %v956, 4
        %v958 = vrot.slane %v898, 5
        %v959 = vsel %vm941, %v957, %v958
        %v960 = vrot.slane %v958, 4
        %v961 = vrot.slane %v899, 5
        %v962 = vsel %vm941, %v960, %v961
        %v963 = vrot.slane %v900, 5
        %v964 = vrot.slane %v963, 4
        %v965 = vrot.slane %v901, 5
        %v966 = vsel %vm941, %v964, %v965
        %v967 = vrot.slane %v965, 4
        %v968 = vrot.slane %v902, 5
        %v969 = vsel %vm941, %v967, %v968
        %v970 = vrot.slane %v903, 5
        %v971 = vrot.slane %v970, 4
        %v972 = vrot.slane %v904, 5
        %v973 = vsel %vm941, %v971, %v972
        %v974 = vrot.slane %v972, 4
        %v975 = vrot.slane %v905, 5
        %v976 = vsel %vm941, %v974, %v975
        %v977 = vrot.slane %v906, 5
        %v978 = vrot.slane %v977, 4
        %v979 = vrot.slane %v907, 5
        %v980 = vsel %vm941, %v978, %v979
        %v981 = vrot.slane %v979, 4
        %v982 = vrot.slane %v908, 5
        %v983 = vsel %vm941, %v981, %v982
        %v984 = vrot.slane %v909, 5
        %v985 = vrot.slane %v984, 4
        %v986 = vrot.slane %v910, 5
        %v987 = vsel %vm941, %v985, %v986
        %v988 = vrot.slane %v986, 4
        %v989 = vrot.slane %v911, 5
        %v990 = vsel %vm941, %v988, %v989
        %v991 = vrot.slane %v912, 5
        %v992 = vrot.slane %v991, 4
        %v993 = vrot.slane %v913, 5
        %v994 = vsel %vm941, %v992, %v993
        %v995 = vrot.slane %v993, 4
        %v996 = vrot.slane %v914, 5
        %v997 = vsel %vm941, %v995, %v996
        %s998 = scalar_lea.vmem %s263, 4
        %v999 = vld [vmem:[%s998] sm:$0x3]
        %v1000 = vunpack.c.l.b16 %v945
        %v1001 = vunpack.c.l.b16 %v948
        %v1002 = vunpack.c.l.b16 %v952
        %v1003 = vunpack.c.l.b16 %v955
        %v1004 = vunpack.c.l.b16 %v959
        %v1005 = vunpack.c.l.b16 %v962
        %v1006 = vunpack.c.l.b16 %v966
        %v1007 = vunpack.c.l.b16 %v969
        %v1008 = vunpack.c.l.b16 %v973
        %v1009 = vunpack.c.l.b16 %v976
        %v1010 = vunpack.c.l.b16 %v980
        %v1011 = vunpack.c.l.b16 %v983
        %v1012 = vunpack.c.l.b16 %v987
        %v1013 = vunpack.c.l.b16 %v990
        %v1014 = vunpack.c.l.b16 %v994
        %v1015 = vunpack.c.l.b16 %v997
        %v1016 = vpack.c.b16 %v1001, %v1000
        %v1017 = vpack.c.b16 %v1003, %v1002
        %v1018 = vpack.c.b16 %v1005, %v1004
        %v1019 = vpack.c.b16 %v1007, %v1006
        %v1020 = vpack.c.b16 %v1009, %v1008
        %v1021 = vpack.c.b16 %v1011, %v1010
        %v1022 = vpack.c.b16 %v1013, %v1012
        %v1023 = vpack.c.b16 %v1015, %v1014
        %v1025 = vsel %vm332, %v1016, 0
        %v1028 = vsel %vm332, %v1017, 0
        %v1031 = vsel %vm332, %v1018, 0
        %v1034 = vsel %vm332, %v1019, 0
        %v1037 = vsel %vm332, %v1020, 0
        %v1040 = vsel %vm332, %v1021, 0
        %v1043 = vsel %vm332, %v1022, 0
        %v1046 = vsel %vm332, %v1023, 0
        %v1049 = vsel %vm357, %v999, 0
        %1051 = vmatprep.subr.bf16.mxu0 0
        %1052 = vmatpush1.bf16.msra.mxu0 0
        %1053 = vmatprep.subr.bf16.mxu0 0
        %1054 = vmatpush1.bf16.msra.mxu0 0
        %1055 = vmatprep.subr.bf16.mxu0 0
        %1056 = vmatpush1.bf16.msra.mxu0 0
        %1057 = vmatprep.subr.bf16.mxu0 0
        %1058 = vmatpush1.bf16.msra.mxu0 0
        %1059 = vmatprep.subr.bf16.mxu0 0
        %1060 = vmatpush1.bf16.msra.mxu0 0
        %1061 = vmatprep.subr.bf16.mxu0 0
        %1062 = vmatpush1.bf16.msra.mxu0 0
        %1063 = vmatprep.subr.bf16.mxu0 0
        %1064 = vmatpush1.bf16.msra.mxu0 0
        %1065 = vmatprep.subr.bf16.mxu0 0
        %1066 = vmatpush1.bf16.msra.mxu0 %v1049
        %1067 = vmatprep.subr.bf16.mxu0 0
        %1068 = vmatpush2.bf16.msra.mxu0 0
        %1069 = vmatprep.subr.bf16.mxu0 0
        %1070 = vmatpush2.bf16.msra.mxu0 0
        %1071 = vmatprep.subr.bf16.mxu0 0
        %1072 = vmatpush2.bf16.msra.mxu0 0
        %1073 = vmatprep.subr.bf16.mxu0 0
        %1074 = vmatpush2.bf16.msra.mxu0 0
        %1075 = vmatprep.subr.bf16.mxu0 0
        %1076 = vmatpush2.bf16.msra.mxu0 0
        %1077 = vmatprep.subr.bf16.mxu0 0
        %1078 = vmatpush2.bf16.msra.mxu0 0
        %1079 = vmatprep.subr.bf16.mxu0 0
        %1080 = vmatpush2.bf16.msra.mxu0 0
        %1081 = vmatprep.subr.bf16.mxu0 0
        %1082 = vmatpush2.bf16.msra.mxu0 0
        %1083 = vmatprep.mubr.bf16.mxu0 0
        %1084 = vmatmul.mubr.bf16.gmra.mxu0 %v1025
        %v1085 = vpop.f32.mrf.mxu0
        %v1086 = vadd.f32 0.0, %v1085
        %v1087 = vpop.f32.mrf.mxu0
        %v1088 = vpop.f32.mrf.mxu0
        %v1089 = vadd.f32 0.0, %v1088
        %v1090 = vpop.f32.mrf.mxu0
        %1091 = vmatprep.mubr.bf16.mxu0 0
        %1092 = vmatmul.mubr.bf16.gmra.mxu0 %v1028
        %v1093 = vpop.f32.mrf.mxu0
        %v1094 = vadd.f32 0.0, %v1093
        %v1095 = vpop.f32.mrf.mxu0
        %v1096 = vpop.f32.mrf.mxu0
        %v1097 = vadd.f32 0.0, %v1096
        %v1098 = vpop.f32.mrf.mxu0
        %1099 = vmatprep.mubr.bf16.mxu0 0
        %1100 = vmatmul.mubr.bf16.gmra.mxu0 %v1031
        %v1101 = vpop.f32.mrf.mxu0
        %v1102 = vadd.f32 0.0, %v1101
        %v1103 = vpop.f32.mrf.mxu0
        %v1104 = vpop.f32.mrf.mxu0
        %v1105 = vadd.f32 0.0, %v1104
        %v1106 = vpop.f32.mrf.mxu0
        %1107 = vmatprep.mubr.bf16.mxu0 0
        %1108 = vmatmul.mubr.bf16.gmra.mxu0 %v1034
        %v1109 = vpop.f32.mrf.mxu0
        %v1110 = vadd.f32 0.0, %v1109
        %v1111 = vpop.f32.mrf.mxu0
        %v1112 = vpop.f32.mrf.mxu0
        %v1113 = vadd.f32 0.0, %v1112
        %v1114 = vpop.f32.mrf.mxu0
        %1115 = vmatprep.mubr.bf16.mxu0 0
        %1116 = vmatmul.mubr.bf16.gmra.mxu0 %v1037
        %v1117 = vpop.f32.mrf.mxu0
        %v1118 = vadd.f32 0.0, %v1117
        %v1119 = vpop.f32.mrf.mxu0
        %v1120 = vpop.f32.mrf.mxu0
        %v1121 = vadd.f32 0.0, %v1120
        %v1122 = vpop.f32.mrf.mxu0
        %1123 = vmatprep.mubr.bf16.mxu0 0
        %1124 = vmatmul.mubr.bf16.gmra.mxu0 %v1040
        %v1125 = vpop.f32.mrf.mxu0
        %v1126 = vadd.f32 0.0, %v1125
        %v1127 = vpop.f32.mrf.mxu0
        %v1128 = vpop.f32.mrf.mxu0
        %v1129 = vadd.f32 0.0, %v1128
        %v1130 = vpop.f32.mrf.mxu0
        %1131 = vmatprep.mubr.bf16.mxu0 0
        %1132 = vmatmul.mubr.bf16.gmra.mxu0 %v1043
        %v1133 = vpop.f32.mrf.mxu0
        %v1134 = vadd.f32 0.0, %v1133
        %v1135 = vpop.f32.mrf.mxu0
        %v1136 = vpop.f32.mrf.mxu0
        %v1137 = vadd.f32 0.0, %v1136
        %v1138 = vpop.f32.mrf.mxu0
        %1139 = vmatprep.mubr.bf16.mxu0 0
        %1140 = vmatmul.mubr.bf16.gmra.mxu0 %v1046
        %v1141 = vpop.f32.mrf.mxu0
        %v1142 = vadd.f32 0.0, %v1141
        %v1143 = vpop.f32.mrf.mxu0
        %v1144 = vpop.f32.mrf.mxu0
        %v1145 = vadd.f32 0.0, %v1144
        %v1146 = vpop.f32.mrf.mxu0
        %1147 = vdwg.mxu0
        %v1148 = vld [vmem:[#allocation2] sm:$0xff]
        %v1149 = vld [vmem:[#allocation2 + $0x8] sm:$0xff]
        %v1150 = vld [vmem:[#allocation2 + $0x10] sm:$0xff]
        %v1151 = vld [vmem:[#allocation2 + $0x18] sm:$0xff]
        %v1152 = vld [vmem:[#allocation2 + $0x20] sm:$0xff]
        %v1153 = vld [vmem:[#allocation2 + $0x28] sm:$0xff]
        %v1154 = vld [vmem:[#allocation2 + $0x30] sm:$0xff]
        %v1155 = vld [vmem:[#allocation2 + $0x38] sm:$0xff]
        %v1156 = vld [vmem:[#allocation2 + $0x40] sm:$0xff]
        %v1157 = vld [vmem:[#allocation2 + $0x48] sm:$0xff]
        %v1158 = vld [vmem:[#allocation2 + $0x50] sm:$0xff]
        %v1159 = vld [vmem:[#allocation2 + $0x58] sm:$0xff]
        %v1160 = vld [vmem:[#allocation2 + $0x60] sm:$0xff]
        %v1161 = vld [vmem:[#allocation2 + $0x68] sm:$0xff]
        %v1162 = vld [vmem:[#allocation2 + $0x70] sm:$0xff]
        %v1163 = vld [vmem:[#allocation2 + $0x78] sm:$0xff]
        %v1164 = vadd.f32 %v1148, %v1086
        %v1165 = vadd.f32 %v1149, %v1089
        %v1166 = vadd.f32 %v1150, %v1094
        %v1167 = vadd.f32 %v1151, %v1097
        %v1168 = vadd.f32 %v1152, %v1102
        %v1169 = vadd.f32 %v1153, %v1105
        %v1170 = vadd.f32 %v1154, %v1110
        %v1171 = vadd.f32 %v1155, %v1113
        %v1172 = vadd.f32 %v1156, %v1118
        %v1173 = vadd.f32 %v1157, %v1121
        %v1174 = vadd.f32 %v1158, %v1126
        %v1175 = vadd.f32 %v1159, %v1129
        %v1176 = vadd.f32 %v1160, %v1134
        %v1177 = vadd.f32 %v1161, %v1137
        %v1178 = vadd.f32 %v1162, %v1142
        %v1179 = vadd.f32 %v1163, %v1145
        %1180 = vst [vmem:[#allocation2] sm:$0xff] %v1164
        %1181 = vst [vmem:[#allocation2 + $0x8] sm:$0xff] %v1165
        %1182 = vst [vmem:[#allocation2 + $0x10] sm:$0xff] %v1166
        %1183 = vst [vmem:[#allocation2 + $0x18] sm:$0xff] %v1167
        %1184 = vst [vmem:[#allocation2 + $0x20] sm:$0xff] %v1168
        %1185 = vst [vmem:[#allocation2 + $0x28] sm:$0xff] %v1169
        %1186 = vst [vmem:[#allocation2 + $0x30] sm:$0xff] %v1170
        %1187 = vst [vmem:[#allocation2 + $0x38] sm:$0xff] %v1171
        %1188 = vst [vmem:[#allocation2 + $0x40] sm:$0xff] %v1172
        %1189 = vst [vmem:[#allocation2 + $0x48] sm:$0xff] %v1173
        %1190 = vst [vmem:[#allocation2 + $0x50] sm:$0xff] %v1174
        %1191 = vst [vmem:[#allocation2 + $0x58] sm:$0xff] %v1175
        %1192 = vst [vmem:[#allocation2 + $0x60] sm:$0xff] %v1176
        %1193 = vst [vmem:[#allocation2 + $0x68] sm:$0xff] %v1177
        %1194 = vst [vmem:[#allocation2 + $0x70] sm:$0xff] %v1178
        %1195 = vst [vmem:[#allocation2 + $0x78] sm:$0xff] %v1179
        %s1196 = sadd.s32 %s271, 1
        %s1197 = smul.u32 %s1196, 3
        %s1198 = smul.addr %s1197, 4
        %s1199 = scalar_lea.vmem %s259, %s1198
        %v1200 = vld [vmem:[%s1199] sm:$0xf]
        %v1201 = vld [vmem:[%s1199 + $0x4] sm:$0xf]
        %v1202 = vld [vmem:[%s1199 + $0xc] sm:$0xf]
        %v1203 = vld [vmem:[%s1199 + $0x10] sm:$0xf]
        %v1204 = vld [vmem:[%s1199 + $0x18] sm:$0xf]
        %v1205 = vld [vmem:[%s1199 + $0x1c] sm:$0xf]
        %v1206 = vld [vmem:[%s1199 + $0x24] sm:$0xf]
        %v1207 = vld [vmem:[%s1199 + $0x28] sm:$0xf]
        %v1208 = vld [vmem:[%s1199 + $0x30] sm:$0xf]
        %v1209 = vld [vmem:[%s1199 + $0x34] sm:$0xf]
        %v1210 = vld [vmem:[%s1199 + $0x3c] sm:$0xf]
        %v1211 = vld [vmem:[%s1199 + $0x40] sm:$0xf]
        %v1212 = vld [vmem:[%s1199 + $0x48] sm:$0xf]
        %v1213 = vld [vmem:[%s1199 + $0x4c] sm:$0xf]
        %v1214 = vld [vmem:[%s1199 + $0x54] sm:$0xf]
        %v1215 = vld [vmem:[%s1199 + $0x58] sm:$0xf]
        %s1216 = scalar_lea.vmem %s263, 6
        %v1217 = vld [vmem:[%s1216] sm:$0x3]
        %v1234 = vunpack.c.l.b16 %v1200
        %v1235 = vunpack.c.l.b16 %v1201
        %v1236 = vunpack.c.l.b16 %v1202
        %v1237 = vunpack.c.l.b16 %v1203
        %v1238 = vunpack.c.l.b16 %v1204
        %v1239 = vunpack.c.l.b16 %v1205
        %v1240 = vunpack.c.l.b16 %v1206
        %v1241 = vunpack.c.l.b16 %v1207
        %v1242 = vunpack.c.l.b16 %v1208
        %v1243 = vunpack.c.l.b16 %v1209
        %v1244 = vunpack.c.l.b16 %v1210
        %v1245 = vunpack.c.l.b16 %v1211
        %v1246 = vunpack.c.l.b16 %v1212
        %v1247 = vunpack.c.l.b16 %v1213
        %v1248 = vunpack.c.l.b16 %v1214
        %v1249 = vunpack.c.l.b16 %v1215
        %v1250 = vpack.c.b16 %v1235, %v1234
        %v1251 = vpack.c.b16 %v1237, %v1236
        %v1252 = vpack.c.b16 %v1239, %v1238
        %v1253 = vpack.c.b16 %v1241, %v1240
        %v1254 = vpack.c.b16 %v1243, %v1242
        %v1255 = vpack.c.b16 %v1245, %v1244
        %v1256 = vpack.c.b16 %v1247, %v1246
        %v1257 = vpack.c.b16 %v1249, %v1248
        %v1259 = vsel %vm332, %v1250, 0
        %v1262 = vsel %vm332, %v1251, 0
        %v1265 = vsel %vm332, %v1252, 0
        %v1268 = vsel %vm332, %v1253, 0
        %v1271 = vsel %vm332, %v1254, 0
        %v1274 = vsel %vm332, %v1255, 0
        %v1277 = vsel %vm332, %v1256, 0
        %v1280 = vsel %vm332, %v1257, 0
        %v1283 = vsel %vm357, %v1217, 0
        %1285 = vmatprep.subr.bf16.mxu0 0
        %1286 = vmatpush1.bf16.msra.mxu0 0
        %1287 = vmatprep.subr.bf16.mxu0 0
        %1288 = vmatpush1.bf16.msra.mxu0 0
        %1289 = vmatprep.subr.bf16.mxu0 0
        %1290 = vmatpush1.bf16.msra.mxu0 0
        %1291 = vmatprep.subr.bf16.mxu0 0
        %1292 = vmatpush1.bf16.msra.mxu0 0
        %1293 = vmatprep.subr.bf16.mxu0 0
        %1294 = vmatpush1.bf16.msra.mxu0 0
        %1295 = vmatprep.subr.bf16.mxu0 0
        %1296 = vmatpush1.bf16.msra.mxu0 0
        %1297 = vmatprep.subr.bf16.mxu0 0
        %1298 = vmatpush1.bf16.msra.mxu0 0
        %1299 = vmatprep.subr.bf16.mxu0 0
        %1300 = vmatpush1.bf16.msra.mxu0 %v1283
        %1301 = vmatprep.subr.bf16.mxu0 0
        %1302 = vmatpush2.bf16.msra.mxu0 0
        %1303 = vmatprep.subr.bf16.mxu0 0
        %1304 = vmatpush2.bf16.msra.mxu0 0
        %1305 = vmatprep.subr.bf16.mxu0 0
        %1306 = vmatpush2.bf16.msra.mxu0 0
        %1307 = vmatprep.subr.bf16.mxu0 0
        %1308 = vmatpush2.bf16.msra.mxu0 0
        %1309 = vmatprep.subr.bf16.mxu0 0
        %1310 = vmatpush2.bf16.msra.mxu0 0
        %1311 = vmatprep.subr.bf16.mxu0 0
        %1312 = vmatpush2.bf16.msra.mxu0 0
        %1313 = vmatprep.subr.bf16.mxu0 0
        %1314 = vmatpush2.bf16.msra.mxu0 0
        %1315 = vmatprep.subr.bf16.mxu0 0
        %1316 = vmatpush2.bf16.msra.mxu0 0
        %1317 = vmatprep.mubr.bf16.mxu0 0
        %1318 = vmatmul.mubr.bf16.gmra.mxu0 %v1259
        %v1319 = vpop.f32.mrf.mxu0
        %v1320 = vadd.f32 0.0, %v1319
        %v1321 = vpop.f32.mrf.mxu0
        %v1322 = vpop.f32.mrf.mxu0
        %v1323 = vadd.f32 0.0, %v1322
        %v1324 = vpop.f32.mrf.mxu0
        %1325 = vmatprep.mubr.bf16.mxu0 0
        %1326 = vmatmul.mubr.bf16.gmra.mxu0 %v1262
        %v1327 = vpop.f32.mrf.mxu0
        %v1328 = vadd.f32 0.0, %v1327
        %v1329 = vpop.f32.mrf.mxu0
        %v1330 = vpop.f32.mrf.mxu0
        %v1331 = vadd.f32 0.0, %v1330
        %v1332 = vpop.f32.mrf.mxu0
        %1333 = vmatprep.mubr.bf16.mxu0 0
        %1334 = vmatmul.mubr.bf16.gmra.mxu0 %v1265
        %v1335 = vpop.f32.mrf.mxu0
        %v1336 = vadd.f32 0.0, %v1335
        %v1337 = vpop.f32.mrf.mxu0
        %v1338 = vpop.f32.mrf.mxu0
        %v1339 = vadd.f32 0.0, %v1338
        %v1340 = vpop.f32.mrf.mxu0
        %1341 = vmatprep.mubr.bf16.mxu0 0
        %1342 = vmatmul.mubr.bf16.gmra.mxu0 %v1268
        %v1343 = vpop.f32.mrf.mxu0
        %v1344 = vadd.f32 0.0, %v1343
        %v1345 = vpop.f32.mrf.mxu0
        %v1346 = vpop.f32.mrf.mxu0
        %v1347 = vadd.f32 0.0, %v1346
        %v1348 = vpop.f32.mrf.mxu0
        %1349 = vmatprep.mubr.bf16.mxu0 0
        %1350 = vmatmul.mubr.bf16.gmra.mxu0 %v1271
        %v1351 = vpop.f32.mrf.mxu0
        %v1352 = vadd.f32 0.0, %v1351
        %v1353 = vpop.f32.mrf.mxu0
        %v1354 = vpop.f32.mrf.mxu0
        %v1355 = vadd.f32 0.0, %v1354
        %v1356 = vpop.f32.mrf.mxu0
        %1357 = vmatprep.mubr.bf16.mxu0 0
        %1358 = vmatmul.mubr.bf16.gmra.mxu0 %v1274
        %v1359 = vpop.f32.mrf.mxu0
        %v1360 = vadd.f32 0.0, %v1359
        %v1361 = vpop.f32.mrf.mxu0
        %v1362 = vpop.f32.mrf.mxu0
        %v1363 = vadd.f32 0.0, %v1362
        %v1364 = vpop.f32.mrf.mxu0
        %1365 = vmatprep.mubr.bf16.mxu0 0
        %1366 = vmatmul.mubr.bf16.gmra.mxu0 %v1277
        %v1367 = vpop.f32.mrf.mxu0
        %v1368 = vadd.f32 0.0, %v1367
        %v1369 = vpop.f32.mrf.mxu0
        %v1370 = vpop.f32.mrf.mxu0
        %v1371 = vadd.f32 0.0, %v1370
        %v1372 = vpop.f32.mrf.mxu0
        %1373 = vmatprep.mubr.bf16.mxu0 0
        %1374 = vmatmul.mubr.bf16.gmra.mxu0 %v1280
        %v1375 = vpop.f32.mrf.mxu0
        %v1376 = vadd.f32 0.0, %v1375
        %v1377 = vpop.f32.mrf.mxu0
        %v1378 = vpop.f32.mrf.mxu0
        %v1379 = vadd.f32 0.0, %v1378
        %v1380 = vpop.f32.mrf.mxu0
        %1381 = vdwg.mxu0
        %v1382 = vld [vmem:[#allocation2] sm:$0xff]
        %v1383 = vld [vmem:[#allocation2 + $0x8] sm:$0xff]
        %v1384 = vld [vmem:[#allocation2 + $0x10] sm:$0xff]
        %v1385 = vld [vmem:[#allocation2 + $0x18] sm:$0xff]
        %v1386 = vld [vmem:[#allocation2 + $0x20] sm:$0xff]
        %v1387 = vld [vmem:[#allocation2 + $0x28] sm:$0xff]
        %v1388 = vld [vmem:[#allocation2 + $0x30] sm:$0xff]
        %v1389 = vld [vmem:[#allocation2 + $0x38] sm:$0xff]
        %v1390 = vld [vmem:[#allocation2 + $0x40] sm:$0xff]
        %v1391 = vld [vmem:[#allocation2 + $0x48] sm:$0xff]
        %v1392 = vld [vmem:[#allocation2 + $0x50] sm:$0xff]
        %v1393 = vld [vmem:[#allocation2 + $0x58] sm:$0xff]
        %v1394 = vld [vmem:[#allocation2 + $0x60] sm:$0xff]
        %v1395 = vld [vmem:[#allocation2 + $0x68] sm:$0xff]
        %v1396 = vld [vmem:[#allocation2 + $0x70] sm:$0xff]
        %v1397 = vld [vmem:[#allocation2 + $0x78] sm:$0xff]
        %v1398 = vadd.f32 %v1382, %v1320
        %v1399 = vadd.f32 %v1383, %v1323
        %v1400 = vadd.f32 %v1384, %v1328
        %v1401 = vadd.f32 %v1385, %v1331
        %v1402 = vadd.f32 %v1386, %v1336
        %v1403 = vadd.f32 %v1387, %v1339
        %v1404 = vadd.f32 %v1388, %v1344
        %v1405 = vadd.f32 %v1389, %v1347
        %v1406 = vadd.f32 %v1390, %v1352
        %v1407 = vadd.f32 %v1391, %v1355
        %v1408 = vadd.f32 %v1392, %v1360
        %v1409 = vadd.f32 %v1393, %v1363
        %v1410 = vadd.f32 %v1394, %v1368
        %v1411 = vadd.f32 %v1395, %v1371
        %v1412 = vadd.f32 %v1396, %v1376
        %v1413 = vadd.f32 %v1397, %v1379
        %1414 = vst [vmem:[#allocation2] sm:$0xff] %v1398
        %1415 = vst [vmem:[#allocation2 + $0x8] sm:$0xff] %v1399
        %1416 = vst [vmem:[#allocation2 + $0x10] sm:$0xff] %v1400
        %1417 = vst [vmem:[#allocation2 + $0x18] sm:$0xff] %v1401
        %1418 = vst [vmem:[#allocation2 + $0x20] sm:$0xff] %v1402
        %1419 = vst [vmem:[#allocation2 + $0x28] sm:$0xff] %v1403
        %1420 = vst [vmem:[#allocation2 + $0x30] sm:$0xff] %v1404
        %1421 = vst [vmem:[#allocation2 + $0x38] sm:$0xff] %v1405
        %1422 = vst [vmem:[#allocation2 + $0x40] sm:$0xff] %v1406
        %1423 = vst [vmem:[#allocation2 + $0x48] sm:$0xff] %v1407
        %1424 = vst [vmem:[#allocation2 + $0x50] sm:$0xff] %v1408
        %1425 = vst [vmem:[#allocation2 + $0x58] sm:$0xff] %v1409
        %1426 = vst [vmem:[#allocation2 + $0x60] sm:$0xff] %v1410
        %1427 = vst [vmem:[#allocation2 + $0x68] sm:$0xff] %v1411
        %1428 = vst [vmem:[#allocation2 + $0x70] sm:$0xff] %v1412
        %1429 = vst [vmem:[#allocation2 + $0x78] sm:$0xff] %v1413
        %v1430 = vld [vmem:[%s1199] sm:$0xf]
        %v1431 = vld [vmem:[%s1199 + $0x4] sm:$0xf]
        %v1432 = vld [vmem:[%s1199 + $0x8] sm:$0x1]
        %v1433 = vld [vmem:[%s1199 + $0xc] sm:$0xf]
        %v1434 = vld [vmem:[%s1199 + $0x10] sm:$0xf]
        %v1435 = vld [vmem:[%s1199 + $0x14] sm:$0x1]
        %v1436 = vld [vmem:[%s1199 + $0x18] sm:$0xf]
        %v1437 = vld [vmem:[%s1199 + $0x1c] sm:$0xf]
        %v1438 = vld [vmem:[%s1199 + $0x20] sm:$0x1]
        %v1439 = vld [vmem:[%s1199 + $0x24] sm:$0xf]
        %v1440 = vld [vmem:[%s1199 + $0x28] sm:$0xf]
        %v1441 = vld [vmem:[%s1199 + $0x2c] sm:$0x1]
        %v1442 = vld [vmem:[%s1199 + $0x30] sm:$0xf]
        %v1443 = vld [vmem:[%s1199 + $0x34] sm:$0xf]
        %v1444 = vld [vmem:[%s1199 + $0x38] sm:$0x1]
        %v1445 = vld [vmem:[%s1199 + $0x3c] sm:$0xf]
        %v1446 = vld [vmem:[%s1199 + $0x40] sm:$0xf]
        %v1447 = vld [vmem:[%s1199 + $0x44] sm:$0x1]
        %v1448 = vld [vmem:[%s1199 + $0x48] sm:$0xf]
        %v1449 = vld [vmem:[%s1199 + $0x4c] sm:$0xf]
        %v1450 = vld [vmem:[%s1199 + $0x50] sm:$0x1]
        %v1451 = vld [vmem:[%s1199 + $0x54] sm:$0xf]
        %v1452 = vld [vmem:[%s1199 + $0x58] sm:$0xf]
        %v1453 = vld [vmem:[%s1199 + $0x5c] sm:$0x1]
        %v1455 = vshrl.u32 %v1430, 16
        %v1457 = vrot.slane %v1455, 4
        %v1458 = vshll.u32 %v1430, 16
        %v1460 = vrot.slane %v1458, 5
        %v1461 = vor.u32 %v1457, %v1460
        %v1462 = vrot.slane %v1461, 4
        %v1464 = vshll.u32 %v1431, 16
        %v1466 = vrot.slane %v1464, 5
        %v1467 = vsel %vm500, %v1462, %v1466
        %v1468 = vshrl.u32 %v1431, 16
        %v1470 = vrot.slane %v1468, 4
        %v1471 = vor.u32 %v1470, %v1466
        %v1472 = vrot.slane %v1471, 4
        %v1474 = vshll.u32 %v1432, 16
        %v1476 = vrot.slane %v1474, 5
        %v1477 = vsel %vm500, %v1472, %v1476
        %v1479 = vshrl.u32 %v1433, 16
        %v1481 = vrot.slane %v1479, 4
        %v1482 = vshll.u32 %v1433, 16
        %v1484 = vrot.slane %v1482, 5
        %v1485 = vor.u32 %v1481, %v1484
        %v1486 = vrot.slane %v1485, 4
        %v1488 = vshll.u32 %v1434, 16
        %v1490 = vrot.slane %v1488, 5
        %v1491 = vsel %vm500, %v1486, %v1490
        %v1492 = vshrl.u32 %v1434, 16
        %v1494 = vrot.slane %v1492, 4
        %v1495 = vor.u32 %v1494, %v1490
        %v1496 = vrot.slane %v1495, 4
        %v1498 = vshll.u32 %v1435, 16
        %v1500 = vrot.slane %v1498, 5
        %v1501 = vsel %vm500, %v1496, %v1500
        %v1503 = vshrl.u32 %v1436, 16
        %v1505 = vrot.slane %v1503, 4
        %v1506 = vshll.u32 %v1436, 16
        %v1508 = vrot.slane %v1506, 5
        %v1509 = vor.u32 %v1505, %v1508
        %v1510 = vrot.slane %v1509, 4
        %v1512 = vshll.u32 %v1437, 16
        %v1514 = vrot.slane %v1512, 5
        %v1515 = vsel %vm500, %v1510, %v1514
        %v1516 = vshrl.u32 %v1437, 16
        %v1518 = vrot.slane %v1516, 4
        %v1519 = vor.u32 %v1518, %v1514
        %v1520 = vrot.slane %v1519, 4
        %v1522 = vshll.u32 %v1438, 16
        %v1524 = vrot.slane %v1522, 5
        %v1525 = vsel %vm500, %v1520, %v1524
        %v1527 = vshrl.u32 %v1439, 16
        %v1529 = vrot.slane %v1527, 4
        %v1530 = vshll.u32 %v1439, 16
        %v1532 = vrot.slane %v1530, 5
        %v1533 = vor.u32 %v1529, %v1532
        %v1534 = vrot.slane %v1533, 4
        %v1536 = vshll.u32 %v1440, 16
        %v1538 = vrot.slane %v1536, 5
        %v1539 = vsel %vm500, %v1534, %v1538
        %v1540 = vshrl.u32 %v1440, 16
        %v1542 = vrot.slane %v1540, 4
        %v1543 = vor.u32 %v1542, %v1538
        %v1544 = vrot.slane %v1543, 4
        %v1546 = vshll.u32 %v1441, 16
        %v1548 = vrot.slane %v1546, 5
        %v1549 = vsel %vm500, %v1544, %v1548
        %v1551 = vshrl.u32 %v1442, 16
        %v1553 = vrot.slane %v1551, 4
        %v1554 = vshll.u32 %v1442, 16
        %v1556 = vrot.slane %v1554, 5
        %v1557 = vor.u32 %v1553, %v1556
        %v1558 = vrot.slane %v1557, 4
        %v1560 = vshll.u32 %v1443, 16
        %v1562 = vrot.slane %v1560, 5
        %v1563 = vsel %vm500, %v1558, %v1562
        %v1564 = vshrl.u32 %v1443, 16
        %v1566 = vrot.slane %v1564, 4
        %v1567 = vor.u32 %v1566, %v1562
        %v1568 = vrot.slane %v1567, 4
        %v1570 = vshll.u32 %v1444, 16
        %v1572 = vrot.slane %v1570, 5
        %v1573 = vsel %vm500, %v1568, %v1572
        %v1575 = vshrl.u32 %v1445, 16
        %v1577 = vrot.slane %v1575, 4
        %v1578 = vshll.u32 %v1445, 16
        %v1580 = vrot.slane %v1578, 5
        %v1581 = vor.u32 %v1577, %v1580
        %v1582 = vrot.slane %v1581, 4
        %v1584 = vshll.u32 %v1446, 16
        %v1586 = vrot.slane %v1584, 5
        %v1587 = vsel %vm500, %v1582, %v1586
        %v1588 = vshrl.u32 %v1446, 16
        %v1590 = vrot.slane %v1588, 4
        %v1591 = vor.u32 %v1590, %v1586
        %v1592 = vrot.slane %v1591, 4
        %v1594 = vshll.u32 %v1447, 16
        %v1596 = vrot.slane %v1594, 5
        %v1597 = vsel %vm500, %v1592, %v1596
        %v1599 = vshrl.u32 %v1448, 16
        %v1601 = vrot.slane %v1599, 4
        %v1602 = vshll.u32 %v1448, 16
        %v1604 = vrot.slane %v1602, 5
        %v1605 = vor.u32 %v1601, %v1604
        %v1606 = vrot.slane %v1605, 4
        %v1608 = vshll.u32 %v1449, 16
        %v1610 = vrot.slane %v1608, 5
        %v1611 = vsel %vm500, %v1606, %v1610
        %v1612 = vshrl.u32 %v1449, 16
        %v1614 = vrot.slane %v1612, 4
        %v1615 = vor.u32 %v1614, %v1610
        %v1616 = vrot.slane %v1615, 4
        %v1618 = vshll.u32 %v1450, 16
        %v1620 = vrot.slane %v1618, 5
        %v1621 = vsel %vm500, %v1616, %v1620
        %v1623 = vshrl.u32 %v1451, 16
        %v1625 = vrot.slane %v1623, 4
        %v1626 = vshll.u32 %v1451, 16
        %v1628 = vrot.slane %v1626, 5
        %v1629 = vor.u32 %v1625, %v1628
        %v1630 = vrot.slane %v1629, 4
        %v1632 = vshll.u32 %v1452, 16
        %v1634 = vrot.slane %v1632, 5
        %v1635 = vsel %vm500, %v1630, %v1634
        %v1636 = vshrl.u32 %v1452, 16
        %v1638 = vrot.slane %v1636, 4
        %v1639 = vor.u32 %v1638, %v1634
        %v1640 = vrot.slane %v1639, 4
        %v1642 = vshll.u32 %v1453, 16
        %v1644 = vrot.slane %v1642, 5
        %v1645 = vsel %vm500, %v1640, %v1644
        %s1646 = scalar_lea.vmem %s263, 8
        %v1647 = vld [vmem:[%s1646] sm:$0x3]
        %v1648 = vunpack.c.l.b16 %v1467
        %v1649 = vunpack.c.l.b16 %v1477
        %v1650 = vunpack.c.l.b16 %v1491
        %v1651 = vunpack.c.l.b16 %v1501
        %v1652 = vunpack.c.l.b16 %v1515
        %v1653 = vunpack.c.l.b16 %v1525
        %v1654 = vunpack.c.l.b16 %v1539
        %v1655 = vunpack.c.l.b16 %v1549
        %v1656 = vunpack.c.l.b16 %v1563
        %v1657 = vunpack.c.l.b16 %v1573
        %v1658 = vunpack.c.l.b16 %v1587
        %v1659 = vunpack.c.l.b16 %v1597
        %v1660 = vunpack.c.l.b16 %v1611
        %v1661 = vunpack.c.l.b16 %v1621
        %v1662 = vunpack.c.l.b16 %v1635
        %v1663 = vunpack.c.l.b16 %v1645
        %v1664 = vpack.c.b16 %v1649, %v1648
        %v1665 = vpack.c.b16 %v1651, %v1650
        %v1666 = vpack.c.b16 %v1653, %v1652
        %v1667 = vpack.c.b16 %v1655, %v1654
        %v1668 = vpack.c.b16 %v1657, %v1656
        %v1669 = vpack.c.b16 %v1659, %v1658
        %v1670 = vpack.c.b16 %v1661, %v1660
        %v1671 = vpack.c.b16 %v1663, %v1662
        %v1673 = vsel %vm332, %v1664, 0
        %v1676 = vsel %vm332, %v1665, 0
        %v1679 = vsel %vm332, %v1666, 0
        %v1682 = vsel %vm332, %v1667, 0
        %v1685 = vsel %vm332, %v1668, 0
        %v1688 = vsel %vm332, %v1669, 0
        %v1691 = vsel %vm332, %v1670, 0
        %v1694 = vsel %vm332, %v1671, 0
        %v1697 = vsel %vm357, %v1647, 0
        %1699 = vmatprep.subr.bf16.mxu0 0
        %1700 = vmatpush1.bf16.msra.mxu0 0
        %1701 = vmatprep.subr.bf16.mxu0 0
        %1702 = vmatpush1.bf16.msra.mxu0 0
        %1703 = vmatprep.subr.bf16.mxu0 0
        %1704 = vmatpush1.bf16.msra.mxu0 0
        %1705 = vmatprep.subr.bf16.mxu0 0
        %1706 = vmatpush1.bf16.msra.mxu0 0
        %1707 = vmatprep.subr.bf16.mxu0 0
        %1708 = vmatpush1.bf16.msra.mxu0 0
        %1709 = vmatprep.subr.bf16.mxu0 0
        %1710 = vmatpush1.bf16.msra.mxu0 0
        %1711 = vmatprep.subr.bf16.mxu0 0
        %1712 = vmatpush1.bf16.msra.mxu0 0
        %1713 = vmatprep.subr.bf16.mxu0 0
        %1714 = vmatpush1.bf16.msra.mxu0 %v1697
        %1715 = vmatprep.subr.bf16.mxu0 0
        %1716 = vmatpush2.bf16.msra.mxu0 0
        %1717 = vmatprep.subr.bf16.mxu0 0
        %1718 = vmatpush2.bf16.msra.mxu0 0
        %1719 = vmatprep.subr.bf16.mxu0 0
        %1720 = vmatpush2.bf16.msra.mxu0 0
        %1721 = vmatprep.subr.bf16.mxu0 0
        %1722 = vmatpush2.bf16.msra.mxu0 0
        %1723 = vmatprep.subr.bf16.mxu0 0
        %1724 = vmatpush2.bf16.msra.mxu0 0
        %1725 = vmatprep.subr.bf16.mxu0 0
        %1726 = vmatpush2.bf16.msra.mxu0 0
        %1727 = vmatprep.subr.bf16.mxu0 0
        %1728 = vmatpush2.bf16.msra.mxu0 0
        %1729 = vmatprep.subr.bf16.mxu0 0
        %1730 = vmatpush2.bf16.msra.mxu0 0
        %1731 = vmatprep.mubr.bf16.mxu0 0
        %1732 = vmatmul.mubr.bf16.gmra.mxu0 %v1673
        %v1733 = vpop.f32.mrf.mxu0
        %v1734 = vadd.f32 0.0, %v1733
        %v1735 = vpop.f32.mrf.mxu0
        %v1736 = vpop.f32.mrf.mxu0
        %v1737 = vadd.f32 0.0, %v1736
        %v1738 = vpop.f32.mrf.mxu0
        %1739 = vmatprep.mubr.bf16.mxu0 0
        %1740 = vmatmul.mubr.bf16.gmra.mxu0 %v1676
        %v1741 = vpop.f32.mrf.mxu0
        %v1742 = vadd.f32 0.0, %v1741
        %v1743 = vpop.f32.mrf.mxu0
        %v1744 = vpop.f32.mrf.mxu0
        %v1745 = vadd.f32 0.0, %v1744
        %v1746 = vpop.f32.mrf.mxu0
        %1747 = vmatprep.mubr.bf16.mxu0 0
        %1748 = vmatmul.mubr.bf16.gmra.mxu0 %v1679
        %v1749 = vpop.f32.mrf.mxu0
        %v1750 = vadd.f32 0.0, %v1749
        %v1751 = vpop.f32.mrf.mxu0
        %v1752 = vpop.f32.mrf.mxu0
        %v1753 = vadd.f32 0.0, %v1752
        %v1754 = vpop.f32.mrf.mxu0
        %1755 = vmatprep.mubr.bf16.mxu0 0
        %1756 = vmatmul.mubr.bf16.gmra.mxu0 %v1682
        %v1757 = vpop.f32.mrf.mxu0
        %v1758 = vadd.f32 0.0, %v1757
        %v1759 = vpop.f32.mrf.mxu0
        %v1760 = vpop.f32.mrf.mxu0
        %v1761 = vadd.f32 0.0, %v1760
        %v1762 = vpop.f32.mrf.mxu0
        %1763 = vmatprep.mubr.bf16.mxu0 0
        %1764 = vmatmul.mubr.bf16.gmra.mxu0 %v1685
        %v1765 = vpop.f32.mrf.mxu0
        %v1766 = vadd.f32 0.0, %v1765
        %v1767 = vpop.f32.mrf.mxu0
        %v1768 = vpop.f32.mrf.mxu0
        %v1769 = vadd.f32 0.0, %v1768
        %v1770 = vpop.f32.mrf.mxu0
        %1771 = vmatprep.mubr.bf16.mxu0 0
        %1772 = vmatmul.mubr.bf16.gmra.mxu0 %v1688
        %v1773 = vpop.f32.mrf.mxu0
        %v1774 = vadd.f32 0.0, %v1773
        %v1775 = vpop.f32.mrf.mxu0
        %v1776 = vpop.f32.mrf.mxu0
        %v1777 = vadd.f32 0.0, %v1776
        %v1778 = vpop.f32.mrf.mxu0
        %1779 = vmatprep.mubr.bf16.mxu0 0
        %1780 = vmatmul.mubr.bf16.gmra.mxu0 %v1691
        %v1781 = vpop.f32.mrf.mxu0
        %v1782 = vadd.f32 0.0, %v1781
        %v1783 = vpop.f32.mrf.mxu0
        %v1784 = vpop.f32.mrf.mxu0
        %v1785 = vadd.f32 0.0, %v1784
        %v1786 = vpop.f32.mrf.mxu0
        %1787 = vmatprep.mubr.bf16.mxu0 0
        %1788 = vmatmul.mubr.bf16.gmra.mxu0 %v1694
        %v1789 = vpop.f32.mrf.mxu0
        %v1790 = vadd.f32 0.0, %v1789
        %v1791 = vpop.f32.mrf.mxu0
        %v1792 = vpop.f32.mrf.mxu0
        %v1793 = vadd.f32 0.0, %v1792
        %v1794 = vpop.f32.mrf.mxu0
        %1795 = vdwg.mxu0
        %v1796 = vld [vmem:[#allocation2] sm:$0xff]
        %v1797 = vld [vmem:[#allocation2 + $0x8] sm:$0xff]
        %v1798 = vld [vmem:[#allocation2 + $0x10] sm:$0xff]
        %v1799 = vld [vmem:[#allocation2 + $0x18] sm:$0xff]
        %v1800 = vld [vmem:[#allocation2 + $0x20] sm:$0xff]
        %v1801 = vld [vmem:[#allocation2 + $0x28] sm:$0xff]
        %v1802 = vld [vmem:[#allocation2 + $0x30] sm:$0xff]
        %v1803 = vld [vmem:[#allocation2 + $0x38] sm:$0xff]
        %v1804 = vld [vmem:[#allocation2 + $0x40] sm:$0xff]
        %v1805 = vld [vmem:[#allocation2 + $0x48] sm:$0xff]
        %v1806 = vld [vmem:[#allocation2 + $0x50] sm:$0xff]
        %v1807 = vld [vmem:[#allocation2 + $0x58] sm:$0xff]
        %v1808 = vld [vmem:[#allocation2 + $0x60] sm:$0xff]
        %v1809 = vld [vmem:[#allocation2 + $0x68] sm:$0xff]
        %v1810 = vld [vmem:[#allocation2 + $0x70] sm:$0xff]
        %v1811 = vld [vmem:[#allocation2 + $0x78] sm:$0xff]
        %v1812 = vadd.f32 %v1796, %v1734
        %v1813 = vadd.f32 %v1797, %v1737
        %v1814 = vadd.f32 %v1798, %v1742
        %v1815 = vadd.f32 %v1799, %v1745
        %v1816 = vadd.f32 %v1800, %v1750
        %v1817 = vadd.f32 %v1801, %v1753
        %v1818 = vadd.f32 %v1802, %v1758
        %v1819 = vadd.f32 %v1803, %v1761
        %v1820 = vadd.f32 %v1804, %v1766
        %v1821 = vadd.f32 %v1805, %v1769
        %v1822 = vadd.f32 %v1806, %v1774
        %v1823 = vadd.f32 %v1807, %v1777
        %v1824 = vadd.f32 %v1808, %v1782
        %v1825 = vadd.f32 %v1809, %v1785
        %v1826 = vadd.f32 %v1810, %v1790
        %v1827 = vadd.f32 %v1811, %v1793
        %1828 = vst [vmem:[#allocation2] sm:$0xff] %v1812
        %1829 = vst [vmem:[#allocation2 + $0x8] sm:$0xff] %v1813
        %1830 = vst [vmem:[#allocation2 + $0x10] sm:$0xff] %v1814
        %1831 = vst [vmem:[#allocation2 + $0x18] sm:$0xff] %v1815
        %1832 = vst [vmem:[#allocation2 + $0x20] sm:$0xff] %v1816
        %1833 = vst [vmem:[#allocation2 + $0x28] sm:$0xff] %v1817
        %1834 = vst [vmem:[#allocation2 + $0x30] sm:$0xff] %v1818
        %1835 = vst [vmem:[#allocation2 + $0x38] sm:$0xff] %v1819
        %1836 = vst [vmem:[#allocation2 + $0x40] sm:$0xff] %v1820
        %1837 = vst [vmem:[#allocation2 + $0x48] sm:$0xff] %v1821
        %1838 = vst [vmem:[#allocation2 + $0x50] sm:$0xff] %v1822
        %1839 = vst [vmem:[#allocation2 + $0x58] sm:$0xff] %v1823
        %1840 = vst [vmem:[#allocation2 + $0x60] sm:$0xff] %v1824
        %1841 = vst [vmem:[#allocation2 + $0x68] sm:$0xff] %v1825
        %1842 = vst [vmem:[#allocation2 + $0x70] sm:$0xff] %v1826
        %1843 = vst [vmem:[#allocation2 + $0x78] sm:$0xff] %v1827
        %v1844 = vld [vmem:[%s1199] sm:$0xe]
        %v1845 = vld [vmem:[%s1199 + $0x4] sm:$0xf]
        %v1846 = vld [vmem:[%s1199 + $0x8] sm:$0x1]
        %v1847 = vld [vmem:[%s1199 + $0xc] sm:$0xe]
        %v1848 = vld [vmem:[%s1199 + $0x10] sm:$0xf]
        %v1849 = vld [vmem:[%s1199 + $0x14] sm:$0x1]
        %v1850 = vld [vmem:[%s1199 + $0x18] sm:$0xe]
        %v1851 = vld [vmem:[%s1199 + $0x1c] sm:$0xf]
        %v1852 = vld [vmem:[%s1199 + $0x20] sm:$0x1]
        %v1853 = vld [vmem:[%s1199 + $0x24] sm:$0xe]
        %v1854 = vld [vmem:[%s1199 + $0x28] sm:$0xf]
        %v1855 = vld [vmem:[%s1199 + $0x2c] sm:$0x1]
        %v1856 = vld [vmem:[%s1199 + $0x30] sm:$0xe]
        %v1857 = vld [vmem:[%s1199 + $0x34] sm:$0xf]
        %v1858 = vld [vmem:[%s1199 + $0x38] sm:$0x1]
        %v1859 = vld [vmem:[%s1199 + $0x3c] sm:$0xe]
        %v1860 = vld [vmem:[%s1199 + $0x40] sm:$0xf]
        %v1861 = vld [vmem:[%s1199 + $0x44] sm:$0x1]
        %v1862 = vld [vmem:[%s1199 + $0x48] sm:$0xe]
        %v1863 = vld [vmem:[%s1199 + $0x4c] sm:$0xf]
        %v1864 = vld [vmem:[%s1199 + $0x50] sm:$0x1]
        %v1865 = vld [vmem:[%s1199 + $0x54] sm:$0xe]
        %v1866 = vld [vmem:[%s1199 + $0x58] sm:$0xf]
        %v1867 = vld [vmem:[%s1199 + $0x5c] sm:$0x1]
        %v1892 = vrot.slane %v1844, 5
        %v1893 = vrot.slane %v1892, 4
        %v1894 = vrot.slane %v1845, 5
        %v1895 = vsel %vm941, %v1893, %v1894
        %v1896 = vrot.slane %v1894, 4
        %v1897 = vrot.slane %v1846, 5
        %v1898 = vsel %vm941, %v1896, %v1897
        %v1899 = vrot.slane %v1847, 5
        %v1900 = vrot.slane %v1899, 4
        %v1901 = vrot.slane %v1848, 5
        %v1902 = vsel %vm941, %v1900, %v1901
        %v1903 = vrot.slane %v1901, 4
        %v1904 = vrot.slane %v1849, 5
        %v1905 = vsel %vm941, %v1903, %v1904
        %v1906 = vrot.slane %v1850, 5
        %v1907 = vrot.slane %v1906, 4
        %v1908 = vrot.slane %v1851, 5
        %v1909 = vsel %vm941, %v1907, %v1908
        %v1910 = vrot.slane %v1908, 4
        %v1911 = vrot.slane %v1852, 5
        %v1912 = vsel %vm941, %v1910, %v1911
        %v1913 = vrot.slane %v1853, 5
        %v1914 = vrot.slane %v1913, 4
        %v1915 = vrot.slane %v1854, 5
        %v1916 = vsel %vm941, %v1914, %v1915
        %v1917 = vrot.slane %v1915, 4
        %v1918 = vrot.slane %v1855, 5
        %v1919 = vsel %vm941, %v1917, %v1918
        %v1920 = vrot.slane %v1856, 5
        %v1921 = vrot.slane %v1920, 4
        %v1922 = vrot.slane %v1857, 5
        %v1923 = vsel %vm941, %v1921, %v1922
        %v1924 = vrot.slane %v1922, 4
        %v1925 = vrot.slane %v1858, 5
        %v1926 = vsel %vm941, %v1924, %v1925
        %v1927 = vrot.slane %v1859, 5
        %v1928 = vrot.slane %v1927, 4
        %v1929 = vrot.slane %v1860, 5
        %v1930 = vsel %vm941, %v1928, %v1929
        %v1931 = vrot.slane %v1929, 4
        %v1932 = vrot.slane %v1861, 5
        %v1933 = vsel %vm941, %v1931, %v1932
        %v1934 = vrot.slane %v1862, 5
        %v1935 = vrot.slane %v1934, 4
        %v1936 = vrot.slane %v1863, 5
        %v1937 = vsel %vm941, %v1935, %v1936
        %v1938 = vrot.slane %v1936, 4
        %v1939 = vrot.slane %v1864, 5
        %v1940 = vsel %vm941, %v1938, %v1939
        %v1941 = vrot.slane %v1865, 5
        %v1942 = vrot.slane %v1941, 4
        %v1943 = vrot.slane %v1866, 5
        %v1944 = vsel %vm941, %v1942, %v1943
        %v1945 = vrot.slane %v1943, 4
        %v1946 = vrot.slane %v1867, 5
        %v1947 = vsel %vm941, %v1945, %v1946
        %s1948 = scalar_lea.vmem %s263, 10
        %v1949 = vld [vmem:[%s1948] sm:$0x3]
        %v1950 = vunpack.c.l.b16 %v1895
        %v1951 = vunpack.c.l.b16 %v1898
        %v1952 = vunpack.c.l.b16 %v1902
        %v1953 = vunpack.c.l.b16 %v1905
        %v1954 = vunpack.c.l.b16 %v1909
        %v1955 = vunpack.c.l.b16 %v1912
        %v1956 = vunpack.c.l.b16 %v1916
        %v1957 = vunpack.c.l.b16 %v1919
        %v1958 = vunpack.c.l.b16 %v1923
        %v1959 = vunpack.c.l.b16 %v1926
        %v1960 = vunpack.c.l.b16 %v1930
        %v1961 = vunpack.c.l.b16 %v1933
        %v1962 = vunpack.c.l.b16 %v1937
        %v1963 = vunpack.c.l.b16 %v1940
        %v1964 = vunpack.c.l.b16 %v1944
        %v1965 = vunpack.c.l.b16 %v1947
        %v1966 = vpack.c.b16 %v1951, %v1950
        %v1967 = vpack.c.b16 %v1953, %v1952
        %v1968 = vpack.c.b16 %v1955, %v1954
        %v1969 = vpack.c.b16 %v1957, %v1956
        %v1970 = vpack.c.b16 %v1959, %v1958
        %v1971 = vpack.c.b16 %v1961, %v1960
        %v1972 = vpack.c.b16 %v1963, %v1962
        %v1973 = vpack.c.b16 %v1965, %v1964
        %v1975 = vsel %vm332, %v1966, 0
        %v1978 = vsel %vm332, %v1967, 0
        %v1981 = vsel %vm332, %v1968, 0
        %v1984 = vsel %vm332, %v1969, 0
        %v1987 = vsel %vm332, %v1970, 0
        %v1990 = vsel %vm332, %v1971, 0
        %v1993 = vsel %vm332, %v1972, 0
        %v1996 = vsel %vm332, %v1973, 0
        %v1999 = vsel %vm357, %v1949, 0
        %2001 = vmatprep.subr.bf16.mxu0 0
        %2002 = vmatpush1.bf16.msra.mxu0 0
        %2003 = vmatprep.subr.bf16.mxu0 0
        %2004 = vmatpush1.bf16.msra.mxu0 0
        %2005 = vmatprep.subr.bf16.mxu0 0
        %2006 = vmatpush1.bf16.msra.mxu0 0
        %2007 = vmatprep.subr.bf16.mxu0 0
        %2008 = vmatpush1.bf16.msra.mxu0 0
        %2009 = vmatprep.subr.bf16.mxu0 0
        %2010 = vmatpush1.bf16.msra.mxu0 0
        %2011 = vmatprep.subr.bf16.mxu0 0
        %2012 = vmatpush1.bf16.msra.mxu0 0
        %2013 = vmatprep.subr.bf16.mxu0 0
        %2014 = vmatpush1.bf16.msra.mxu0 0
        %2015 = vmatprep.subr.bf16.mxu0 0
        %2016 = vmatpush1.bf16.msra.mxu0 %v1999
        %2017 = vmatprep.subr.bf16.mxu0 0
        %2018 = vmatpush2.bf16.msra.mxu0 0
        %2019 = vmatprep.subr.bf16.mxu0 0
        %2020 = vmatpush2.bf16.msra.mxu0 0
        %2021 = vmatprep.subr.bf16.mxu0 0
        %2022 = vmatpush2.bf16.msra.mxu0 0
        %2023 = vmatprep.subr.bf16.mxu0 0
        %2024 = vmatpush2.bf16.msra.mxu0 0
        %2025 = vmatprep.subr.bf16.mxu0 0
        %2026 = vmatpush2.bf16.msra.mxu0 0
        %2027 = vmatprep.subr.bf16.mxu0 0
        %2028 = vmatpush2.bf16.msra.mxu0 0
        %2029 = vmatprep.subr.bf16.mxu0 0
        %2030 = vmatpush2.bf16.msra.mxu0 0
        %2031 = vmatprep.subr.bf16.mxu0 0
        %2032 = vmatpush2.bf16.msra.mxu0 0
        %2033 = vmatprep.mubr.bf16.mxu0 0
        %2034 = vmatmul.mubr.bf16.gmra.mxu0 %v1975
        %v2035 = vpop.f32.mrf.mxu0
        %v2036 = vadd.f32 0.0, %v2035
        %v2037 = vpop.f32.mrf.mxu0
        %v2038 = vpop.f32.mrf.mxu0
        %v2039 = vadd.f32 0.0, %v2038
        %v2040 = vpop.f32.mrf.mxu0
        %2041 = vmatprep.mubr.bf16.mxu0 0
        %2042 = vmatmul.mubr.bf16.gmra.mxu0 %v1978
        %v2043 = vpop.f32.mrf.mxu0
        %v2044 = vadd.f32 0.0, %v2043
        %v2045 = vpop.f32.mrf.mxu0
        %v2046 = vpop.f32.mrf.mxu0
        %v2047 = vadd.f32 0.0, %v2046
        %v2048 = vpop.f32.mrf.mxu0
        %2049 = vmatprep.mubr.bf16.mxu0 0
        %2050 = vmatmul.mubr.bf16.gmra.mxu0 %v1981
        %v2051 = vpop.f32.mrf.mxu0
        %v2052 = vadd.f32 0.0, %v2051
        %v2053 = vpop.f32.mrf.mxu0
        %v2054 = vpop.f32.mrf.mxu0
        %v2055 = vadd.f32 0.0, %v2054
        %v2056 = vpop.f32.mrf.mxu0
        %2057 = vmatprep.mubr.bf16.mxu0 0
        %2058 = vmatmul.mubr.bf16.gmra.mxu0 %v1984
        %v2059 = vpop.f32.mrf.mxu0
        %v2060 = vadd.f32 0.0, %v2059
        %v2061 = vpop.f32.mrf.mxu0
        %v2062 = vpop.f32.mrf.mxu0
        %v2063 = vadd.f32 0.0, %v2062
        %v2064 = vpop.f32.mrf.mxu0
        %2065 = vmatprep.mubr.bf16.mxu0 0
        %2066 = vmatmul.mubr.bf16.gmra.mxu0 %v1987
        %v2067 = vpop.f32.mrf.mxu0
        %v2068 = vadd.f32 0.0, %v2067
        %v2069 = vpop.f32.mrf.mxu0
        %v2070 = vpop.f32.mrf.mxu0
        %v2071 = vadd.f32 0.0, %v2070
        %v2072 = vpop.f32.mrf.mxu0
        %2073 = vmatprep.mubr.bf16.mxu0 0
        %2074 = vmatmul.mubr.bf16.gmra.mxu0 %v1990
        %v2075 = vpop.f32.mrf.mxu0
        %v2076 = vadd.f32 0.0, %v2075
        %v2077 = vpop.f32.mrf.mxu0
        %v2078 = vpop.f32.mrf.mxu0
        %v2079 = vadd.f32 0.0, %v2078
        %v2080 = vpop.f32.mrf.mxu0
        %2081 = vmatprep.mubr.bf16.mxu0 0
        %2082 = vmatmul.mubr.bf16.gmra.mxu0 %v1993
        %v2083 = vpop.f32.mrf.mxu0
        %v2084 = vadd.f32 0.0, %v2083
        %v2085 = vpop.f32.mrf.mxu0
        %v2086 = vpop.f32.mrf.mxu0
        %v2087 = vadd.f32 0.0, %v2086
        %v2088 = vpop.f32.mrf.mxu0
        %2089 = vmatprep.mubr.bf16.mxu0 0
        %2090 = vmatmul.mubr.bf16.gmra.mxu0 %v1996
        %v2091 = vpop.f32.mrf.mxu0
        %v2092 = vadd.f32 0.0, %v2091
        %v2093 = vpop.f32.mrf.mxu0
        %v2094 = vpop.f32.mrf.mxu0
        %v2095 = vadd.f32 0.0, %v2094
        %v2096 = vpop.f32.mrf.mxu0
        %2097 = vdwg.mxu0
        %v2098 = vld [vmem:[#allocation2] sm:$0xff]
        %v2099 = vld [vmem:[#allocation2 + $0x8] sm:$0xff]
        %v2100 = vld [vmem:[#allocation2 + $0x10] sm:$0xff]
        %v2101 = vld [vmem:[#allocation2 + $0x18] sm:$0xff]
        %v2102 = vld [vmem:[#allocation2 + $0x20] sm:$0xff]
        %v2103 = vld [vmem:[#allocation2 + $0x28] sm:$0xff]
        %v2104 = vld [vmem:[#allocation2 + $0x30] sm:$0xff]
        %v2105 = vld [vmem:[#allocation2 + $0x38] sm:$0xff]
        %v2106 = vld [vmem:[#allocation2 + $0x40] sm:$0xff]
        %v2107 = vld [vmem:[#allocation2 + $0x48] sm:$0xff]
        %v2108 = vld [vmem:[#allocation2 + $0x50] sm:$0xff]
        %v2109 = vld [vmem:[#allocation2 + $0x58] sm:$0xff]
        %v2110 = vld [vmem:[#allocation2 + $0x60] sm:$0xff]
        %v2111 = vld [vmem:[#allocation2 + $0x68] sm:$0xff]
        %v2112 = vld [vmem:[#allocation2 + $0x70] sm:$0xff]
        %v2113 = vld [vmem:[#allocation2 + $0x78] sm:$0xff]
        %v2114 = vadd.f32 %v2098, %v2036
        %v2115 = vadd.f32 %v2099, %v2039
        %v2116 = vadd.f32 %v2100, %v2044
        %v2117 = vadd.f32 %v2101, %v2047
        %v2118 = vadd.f32 %v2102, %v2052
        %v2119 = vadd.f32 %v2103, %v2055
        %v2120 = vadd.f32 %v2104, %v2060
        %v2121 = vadd.f32 %v2105, %v2063
        %v2122 = vadd.f32 %v2106, %v2068
        %v2123 = vadd.f32 %v2107, %v2071
        %v2124 = vadd.f32 %v2108, %v2076
        %v2125 = vadd.f32 %v2109, %v2079
        %v2126 = vadd.f32 %v2110, %v2084
        %v2127 = vadd.f32 %v2111, %v2087
        %v2128 = vadd.f32 %v2112, %v2092
        %v2129 = vadd.f32 %v2113, %v2095
        %2130 = vst [vmem:[#allocation2] sm:$0xff] %v2114
        %2131 = vst [vmem:[#allocation2 + $0x8] sm:$0xff] %v2115
        %2132 = vst [vmem:[#allocation2 + $0x10] sm:$0xff] %v2116
        %2133 = vst [vmem:[#allocation2 + $0x18] sm:$0xff] %v2117
        %2134 = vst [vmem:[#allocation2 + $0x20] sm:$0xff] %v2118
        %2135 = vst [vmem:[#allocation2 + $0x28] sm:$0xff] %v2119
        %2136 = vst [vmem:[#allocation2 + $0x30] sm:$0xff] %v2120
        %2137 = vst [vmem:[#allocation2 + $0x38] sm:$0xff] %v2121
        %2138 = vst [vmem:[#allocation2 + $0x40] sm:$0xff] %v2122
        %2139 = vst [vmem:[#allocation2 + $0x48] sm:$0xff] %v2123
        %2140 = vst [vmem:[#allocation2 + $0x50] sm:$0xff] %v2124
        %2141 = vst [vmem:[#allocation2 + $0x58] sm:$0xff] %v2125
        %2142 = vst [vmem:[#allocation2 + $0x60] sm:$0xff] %v2126
        %2143 = vst [vmem:[#allocation2 + $0x68] sm:$0xff] %v2127
        %2144 = vst [vmem:[#allocation2 + $0x70] sm:$0xff] %v2128
        %2145 = vst [vmem:[#allocation2 + $0x78] sm:$0xff] %v2129
        %s2146 = sadd.s32 %s271, 2
        %s2147 = smul.u32 %s2146, 3
        %s2148 = smul.addr %s2147, 4
        %s2149 = scalar_lea.vmem %s259, %s2148
        %v2150 = vld [vmem:[%s2149] sm:$0xf]
        %v2151 = vld [vmem:[%s2149 + $0x4] sm:$0xf]
        %v2152 = vld [vmem:[%s2149 + $0xc] sm:$0xf]
        %v2153 = vld [vmem:[%s2149 + $0x10] sm:$0xf]
        %v2154 = vld [vmem:[%s2149 + $0x18] sm:$0xf]
        %v2155 = vld [vmem:[%s2149 + $0x1c] sm:$0xf]
        %v2156 = vld [vmem:[%s2149 + $0x24] sm:$0xf]
        %v2157 = vld [vmem:[%s2149 + $0x28] sm:$0xf]
        %v2158 = vld [vmem:[%s2149 + $0x30] sm:$0xf]
        %v2159 = vld [vmem:[%s2149 + $0x34] sm:$0xf]
        %v2160 = vld [vmem:[%s2149 + $0x3c] sm:$0xf]
        %v2161 = vld [vmem:[%s2149 + $0x40] sm:$0xf]
        %v2162 = vld [vmem:[%s2149 + $0x48] sm:$0xf]
        %v2163 = vld [vmem:[%s2149 + $0x4c] sm:$0xf]
        %v2164 = vld [vmem:[%s2149 + $0x54] sm:$0xf]
        %v2165 = vld [vmem:[%s2149 + $0x58] sm:$0xf]
        %s2166 = scalar_lea.vmem %s263, 12
        %v2167 = vld [vmem:[%s2166] sm:$0x3]
        %v2184 = vunpack.c.l.b16 %v2150
        %v2185 = vunpack.c.l.b16 %v2151
        %v2186 = vunpack.c.l.b16 %v2152
        %v2187 = vunpack.c.l.b16 %v2153
        %v2188 = vunpack.c.l.b16 %v2154
        %v2189 = vunpack.c.l.b16 %v2155
        %v2190 = vunpack.c.l.b16 %v2156
        %v2191 = vunpack.c.l.b16 %v2157
        %v2192 = vunpack.c.l.b16 %v2158
        %v2193 = vunpack.c.l.b16 %v2159
        %v2194 = vunpack.c.l.b16 %v2160
        %v2195 = vunpack.c.l.b16 %v2161
        %v2196 = vunpack.c.l.b16 %v2162
        %v2197 = vunpack.c.l.b16 %v2163
        %v2198 = vunpack.c.l.b16 %v2164
        %v2199 = vunpack.c.l.b16 %v2165
        %v2200 = vpack.c.b16 %v2185, %v2184
        %v2201 = vpack.c.b16 %v2187, %v2186
        %v2202 = vpack.c.b16 %v2189, %v2188
        %v2203 = vpack.c.b16 %v2191, %v2190
        %v2204 = vpack.c.b16 %v2193, %v2192
        %v2205 = vpack.c.b16 %v2195, %v2194
        %v2206 = vpack.c.b16 %v2197, %v2196
        %v2207 = vpack.c.b16 %v2199, %v2198
        %v2209 = vsel %vm332, %v2200, 0
        %v2212 = vsel %vm332, %v2201, 0
        %v2215 = vsel %vm332, %v2202, 0
        %v2218 = vsel %vm332, %v2203, 0
        %v2221 = vsel %vm332, %v2204, 0
        %v2224 = vsel %vm332, %v2205, 0
        %v2227 = vsel %vm332, %v2206, 0
        %v2230 = vsel %vm332, %v2207, 0
        %v2233 = vsel %vm357, %v2167, 0
        %2235 = vmatprep.subr.bf16.mxu0 0
        %2236 = vmatpush1.bf16.msra.mxu0 0
        %2237 = vmatprep.subr.bf16.mxu0 0
        %2238 = vmatpush1.bf16.msra.mxu0 0
        %2239 = vmatprep.subr.bf16.mxu0 0
        %2240 = vmatpush1.bf16.msra.mxu0 0
        %2241 = vmatprep.subr.bf16.mxu0 0
        %2242 = vmatpush1.bf16.msra.mxu0 0
        %2243 = vmatprep.subr.bf16.mxu0 0
        %2244 = vmatpush1.bf16.msra.mxu0 0
        %2245 = vmatprep.subr.bf16.mxu0 0
        %2246 = vmatpush1.bf16.msra.mxu0 0
        %2247 = vmatprep.subr.bf16.mxu0 0
        %2248 = vmatpush1.bf16.msra.mxu0 0
        %2249 = vmatprep.subr.bf16.mxu0 0
        %2250 = vmatpush1.bf16.msra.mxu0 %v2233
        %2251 = vmatprep.subr.bf16.mxu0 0
        %2252 = vmatpush2.bf16.msra.mxu0 0
        %2253 = vmatprep.subr.bf16.mxu0 0
        %2254 = vmatpush2.bf16.msra.mxu0 0
        %2255 = vmatprep.subr.bf16.mxu0 0
        %2256 = vmatpush2.bf16.msra.mxu0 0
        %2257 = vmatprep.subr.bf16.mxu0 0
        %2258 = vmatpush2.bf16.msra.mxu0 0
        %2259 = vmatprep.subr.bf16.mxu0 0
        %2260 = vmatpush2.bf16.msra.mxu0 0
        %2261 = vmatprep.subr.bf16.mxu0 0
        %2262 = vmatpush2.bf16.msra.mxu0 0
        %2263 = vmatprep.subr.bf16.mxu0 0
        %2264 = vmatpush2.bf16.msra.mxu0 0
        %2265 = vmatprep.subr.bf16.mxu0 0
        %2266 = vmatpush2.bf16.msra.mxu0 0
        %2267 = vmatprep.mubr.bf16.mxu0 0
        %2268 = vmatmul.mubr.bf16.gmra.mxu0 %v2209
        %v2269 = vpop.f32.mrf.mxu0
        %v2270 = vadd.f32 0.0, %v2269
        %v2271 = vpop.f32.mrf.mxu0
        %v2272 = vpop.f32.mrf.mxu0
        %v2273 = vadd.f32 0.0, %v2272
        %v2274 = vpop.f32.mrf.mxu0
        %2275 = vmatprep.mubr.bf16.mxu0 0
        %2276 = vmatmul.mubr.bf16.gmra.mxu0 %v2212
        %v2277 = vpop.f32.mrf.mxu0
        %v2278 = vadd.f32 0.0, %v2277
        %v2279 = vpop.f32.mrf.mxu0
        %v2280 = vpop.f32.mrf.mxu0
        %v2281 = vadd.f32 0.0, %v2280
        %v2282 = vpop.f32.mrf.mxu0
        %2283 = vmatprep.mubr.bf16.mxu0 0
        %2284 = vmatmul.mubr.bf16.gmra.mxu0 %v2215
        %v2285 = vpop.f32.mrf.mxu0
        %v2286 = vadd.f32 0.0, %v2285
        %v2287 = vpop.f32.mrf.mxu0
        %v2288 = vpop.f32.mrf.mxu0
        %v2289 = vadd.f32 0.0, %v2288
        %v2290 = vpop.f32.mrf.mxu0
        %2291 = vmatprep.mubr.bf16.mxu0 0
        %2292 = vmatmul.mubr.bf16.gmra.mxu0 %v2218
        %v2293 = vpop.f32.mrf.mxu0
        %v2294 = vadd.f32 0.0, %v2293
        %v2295 = vpop.f32.mrf.mxu0
        %v2296 = vpop.f32.mrf.mxu0
        %v2297 = vadd.f32 0.0, %v2296
        %v2298 = vpop.f32.mrf.mxu0
        %2299 = vmatprep.mubr.bf16.mxu0 0
        %2300 = vmatmul.mubr.bf16.gmra.mxu0 %v2221
        %v2301 = vpop.f32.mrf.mxu0
        %v2302 = vadd.f32 0.0, %v2301
        %v2303 = vpop.f32.mrf.mxu0
        %v2304 = vpop.f32.mrf.mxu0
        %v2305 = vadd.f32 0.0, %v2304
        %v2306 = vpop.f32.mrf.mxu0
        %2307 = vmatprep.mubr.bf16.mxu0 0
        %2308 = vmatmul.mubr.bf16.gmra.mxu0 %v2224
        %v2309 = vpop.f32.mrf.mxu0
        %v2310 = vadd.f32 0.0, %v2309
        %v2311 = vpop.f32.mrf.mxu0
        %v2312 = vpop.f32.mrf.mxu0
        %v2313 = vadd.f32 0.0, %v2312
        %v2314 = vpop.f32.mrf.mxu0
        %2315 = vmatprep.mubr.bf16.mxu0 0
        %2316 = vmatmul.mubr.bf16.gmra.mxu0 %v2227
        %v2317 = vpop.f32.mrf.mxu0
        %v2318 = vadd.f32 0.0, %v2317
        %v2319 = vpop.f32.mrf.mxu0
        %v2320 = vpop.f32.mrf.mxu0
        %v2321 = vadd.f32 0.0, %v2320
        %v2322 = vpop.f32.mrf.mxu0
        %2323 = vmatprep.mubr.bf16.mxu0 0
        %2324 = vmatmul.mubr.bf16.gmra.mxu0 %v2230
        %v2325 = vpop.f32.mrf.mxu0
        %v2326 = vadd.f32 0.0, %v2325
        %v2327 = vpop.f32.mrf.mxu0
        %v2328 = vpop.f32.mrf.mxu0
        %v2329 = vadd.f32 0.0, %v2328
        %v2330 = vpop.f32.mrf.mxu0
        %2331 = vdwg.mxu0
        %v2332 = vld [vmem:[#allocation2] sm:$0xff]
        %v2333 = vld [vmem:[#allocation2 + $0x8] sm:$0xff]
        %v2334 = vld [vmem:[#allocation2 + $0x10] sm:$0xff]
        %v2335 = vld [vmem:[#allocation2 + $0x18] sm:$0xff]
        %v2336 = vld [vmem:[#allocation2 + $0x20] sm:$0xff]
        %v2337 = vld [vmem:[#allocation2 + $0x28] sm:$0xff]
        %v2338 = vld [vmem:[#allocation2 + $0x30] sm:$0xff]
        %v2339 = vld [vmem:[#allocation2 + $0x38] sm:$0xff]
        %v2340 = vld [vmem:[#allocation2 + $0x40] sm:$0xff]
        %v2341 = vld [vmem:[#allocation2 + $0x48] sm:$0xff]
        %v2342 = vld [vmem:[#allocation2 + $0x50] sm:$0xff]
        %v2343 = vld [vmem:[#allocation2 + $0x58] sm:$0xff]
        %v2344 = vld [vmem:[#allocation2 + $0x60] sm:$0xff]
        %v2345 = vld [vmem:[#allocation2 + $0x68] sm:$0xff]
        %v2346 = vld [vmem:[#allocation2 + $0x70] sm:$0xff]
        %v2347 = vld [vmem:[#allocation2 + $0x78] sm:$0xff]
        %v2348 = vadd.f32 %v2332, %v2270
        %v2349 = vadd.f32 %v2333, %v2273
        %v2350 = vadd.f32 %v2334, %v2278
        %v2351 = vadd.f32 %v2335, %v2281
        %v2352 = vadd.f32 %v2336, %v2286
        %v2353 = vadd.f32 %v2337, %v2289
        %v2354 = vadd.f32 %v2338, %v2294
        %v2355 = vadd.f32 %v2339, %v2297
        %v2356 = vadd.f32 %v2340, %v2302
        %v2357 = vadd.f32 %v2341, %v2305
        %v2358 = vadd.f32 %v2342, %v2310
        %v2359 = vadd.f32 %v2343, %v2313
        %v2360 = vadd.f32 %v2344, %v2318
        %v2361 = vadd.f32 %v2345, %v2321
        %v2362 = vadd.f32 %v2346, %v2326
        %v2363 = vadd.f32 %v2347, %v2329
        %2364 = vst [vmem:[#allocation2] sm:$0xff] %v2348
        %2365 = vst [vmem:[#allocation2 + $0x8] sm:$0xff] %v2349
        %2366 = vst [vmem:[#allocation2 + $0x10] sm:$0xff] %v2350
        %2367 = vst [vmem:[#allocation2 + $0x18] sm:$0xff] %v2351
        %2368 = vst [vmem:[#allocation2 + $0x20] sm:$0xff] %v2352
        %2369 = vst [vmem:[#allocation2 + $0x28] sm:$0xff] %v2353
        %2370 = vst [vmem:[#allocation2 + $0x30] sm:$0xff] %v2354
        %2371 = vst [vmem:[#allocation2 + $0x38] sm:$0xff] %v2355
        %2372 = vst [vmem:[#allocation2 + $0x40] sm:$0xff] %v2356
        %2373 = vst [vmem:[#allocation2 + $0x48] sm:$0xff] %v2357
        %2374 = vst [vmem:[#allocation2 + $0x50] sm:$0xff] %v2358
        %2375 = vst [vmem:[#allocation2 + $0x58] sm:$0xff] %v2359
        %2376 = vst [vmem:[#allocation2 + $0x60] sm:$0xff] %v2360
        %2377 = vst [vmem:[#allocation2 + $0x68] sm:$0xff] %v2361
        %2378 = vst [vmem:[#allocation2 + $0x70] sm:$0xff] %v2362
        %2379 = vst [vmem:[#allocation2 + $0x78] sm:$0xff] %v2363
        %v2380 = vld [vmem:[%s2149] sm:$0xf]
        %v2381 = vld [vmem:[%s2149 + $0x4] sm:$0xf]
        %v2382 = vld [vmem:[%s2149 + $0x8] sm:$0x1]
        %v2383 = vld [vmem:[%s2149 + $0xc] sm:$0xf]
        %v2384 = vld [vmem:[%s2149 + $0x10] sm:$0xf]
        %v2385 = vld [vmem:[%s2149 + $0x14] sm:$0x1]
        %v2386 = vld [vmem:[%s2149 + $0x18] sm:$0xf]
        %v2387 = vld [vmem:[%s2149 + $0x1c] sm:$0xf]
        %v2388 = vld [vmem:[%s2149 + $0x20] sm:$0x1]
        %v2389 = vld [vmem:[%s2149 + $0x24] sm:$0xf]
        %v2390 = vld [vmem:[%s2149 + $0x28] sm:$0xf]
        %v2391 = vld [vmem:[%s2149 + $0x2c] sm:$0x1]
        %v2392 = vld [vmem:[%s2149 + $0x30] sm:$0xf]
        %v2393 = vld [vmem:[%s2149 + $0x34] sm:$0xf]
        %v2394 = vld [vmem:[%s2149 + $0x38] sm:$0x1]
        %v2395 = vld [vmem:[%s2149 + $0x3c] sm:$0xf]
        %v2396 = vld [vmem:[%s2149 + $0x40] sm:$0xf]
        %v2397 = vld [vmem:[%s2149 + $0x44] sm:$0x1]
        %v2398 = vld [vmem:[%s2149 + $0x48] sm:$0xf]
        %v2399 = vld [vmem:[%s2149 + $0x4c] sm:$0xf]
        %v2400 = vld [vmem:[%s2149 + $0x50] sm:$0x1]
        %v2401 = vld [vmem:[%s2149 + $0x54] sm:$0xf]
        %v2402 = vld [vmem:[%s2149 + $0x58] sm:$0xf]
        %v2403 = vld [vmem:[%s2149 + $0x5c] sm:$0x1]
        %v2405 = vshrl.u32 %v2380, 16
        %v2407 = vrot.slane %v2405, 4
        %v2408 = vshll.u32 %v2380, 16
        %v2410 = vrot.slane %v2408, 5
        %v2411 = vor.u32 %v2407, %v2410
        %v2412 = vrot.slane %v2411, 4
        %v2414 = vshll.u32 %v2381, 16
        %v2416 = vrot.slane %v2414, 5
        %v2417 = vsel %vm500, %v2412, %v2416
        %v2418 = vshrl.u32 %v2381, 16
        %v2420 = vrot.slane %v2418, 4
        %v2421 = vor.u32 %v2420, %v2416
        %v2422 = vrot.slane %v2421, 4
        %v2424 = vshll.u32 %v2382, 16
        %v2426 = vrot.slane %v2424, 5
        %v2427 = vsel %vm500, %v2422, %v2426
        %v2429 = vshrl.u32 %v2383, 16
        %v2431 = vrot.slane %v2429, 4
        %v2432 = vshll.u32 %v2383, 16
        %v2434 = vrot.slane %v2432, 5
        %v2435 = vor.u32 %v2431, %v2434
        %v2436 = vrot.slane %v2435, 4
        %v2438 = vshll.u32 %v2384, 16
        %v2440 = vrot.slane %v2438, 5
        %v2441 = vsel %vm500, %v2436, %v2440
        %v2442 = vshrl.u32 %v2384, 16
        %v2444 = vrot.slane %v2442, 4
        %v2445 = vor.u32 %v2444, %v2440
        %v2446 = vrot.slane %v2445, 4
        %v2448 = vshll.u32 %v2385, 16
        %v2450 = vrot.slane %v2448, 5
        %v2451 = vsel %vm500, %v2446, %v2450
        %v2453 = vshrl.u32 %v2386, 16
        %v2455 = vrot.slane %v2453, 4
        %v2456 = vshll.u32 %v2386, 16
        %v2458 = vrot.slane %v2456, 5
        %v2459 = vor.u32 %v2455, %v2458
        %v2460 = vrot.slane %v2459, 4
        %v2462 = vshll.u32 %v2387, 16
        %v2464 = vrot.slane %v2462, 5
        %v2465 = vsel %vm500, %v2460, %v2464
        %v2466 = vshrl.u32 %v2387, 16
        %v2468 = vrot.slane %v2466, 4
        %v2469 = vor.u32 %v2468, %v2464
        %v2470 = vrot.slane %v2469, 4
        %v2472 = vshll.u32 %v2388, 16
        %v2474 = vrot.slane %v2472, 5
        %v2475 = vsel %vm500, %v2470, %v2474
        %v2477 = vshrl.u32 %v2389, 16
        %v2479 = vrot.slane %v2477, 4
        %v2480 = vshll.u32 %v2389, 16
        %v2482 = vrot.slane %v2480, 5
        %v2483 = vor.u32 %v2479, %v2482
        %v2484 = vrot.slane %v2483, 4
        %v2486 = vshll.u32 %v2390, 16
        %v2488 = vrot.slane %v2486, 5
        %v2489 = vsel %vm500, %v2484, %v2488
        %v2490 = vshrl.u32 %v2390, 16
        %v2492 = vrot.slane %v2490, 4
        %v2493 = vor.u32 %v2492, %v2488
        %v2494 = vrot.slane %v2493, 4
        %v2496 = vshll.u32 %v2391, 16
        %v2498 = vrot.slane %v2496, 5
        %v2499 = vsel %vm500, %v2494, %v2498
        %v2501 = vshrl.u32 %v2392, 16
        %v2503 = vrot.slane %v2501, 4
        %v2504 = vshll.u32 %v2392, 16
        %v2506 = vrot.slane %v2504, 5
        %v2507 = vor.u32 %v2503, %v2506
        %v2508 = vrot.slane %v2507, 4
        %v2510 = vshll.u32 %v2393, 16
        %v2512 = vrot.slane %v2510, 5
        %v2513 = vsel %vm500, %v2508, %v2512
        %v2514 = vshrl.u32 %v2393, 16
        %v2516 = vrot.slane %v2514, 4
        %v2517 = vor.u32 %v2516, %v2512
        %v2518 = vrot.slane %v2517, 4
        %v2520 = vshll.u32 %v2394, 16
        %v2522 = vrot.slane %v2520, 5
        %v2523 = vsel %vm500, %v2518, %v2522
        %v2525 = vshrl.u32 %v2395, 16
        %v2527 = vrot.slane %v2525, 4
        %v2528 = vshll.u32 %v2395, 16
        %v2530 = vrot.slane %v2528, 5
        %v2531 = vor.u32 %v2527, %v2530
        %v2532 = vrot.slane %v2531, 4
        %v2534 = vshll.u32 %v2396, 16
        %v2536 = vrot.slane %v2534, 5
        %v2537 = vsel %vm500, %v2532, %v2536
        %v2538 = vshrl.u32 %v2396, 16
        %v2540 = vrot.slane %v2538, 4
        %v2541 = vor.u32 %v2540, %v2536
        %v2542 = vrot.slane %v2541, 4
        %v2544 = vshll.u32 %v2397, 16
        %v2546 = vrot.slane %v2544, 5
        %v2547 = vsel %vm500, %v2542, %v2546
        %v2549 = vshrl.u32 %v2398, 16
        %v2551 = vrot.slane %v2549, 4
        %v2552 = vshll.u32 %v2398, 16
        %v2554 = vrot.slane %v2552, 5
        %v2555 = vor.u32 %v2551, %v2554
        %v2556 = vrot.slane %v2555, 4
        %v2558 = vshll.u32 %v2399, 16
        %v2560 = vrot.slane %v2558, 5
        %v2561 = vsel %vm500, %v2556, %v2560
        %v2562 = vshrl.u32 %v2399, 16
        %v2564 = vrot.slane %v2562, 4
        %v2565 = vor.u32 %v2564, %v2560
        %v2566 = vrot.slane %v2565, 4
        %v2568 = vshll.u32 %v2400, 16
        %v2570 = vrot.slane %v2568, 5
        %v2571 = vsel %vm500, %v2566, %v2570
        %v2573 = vshrl.u32 %v2401, 16
        %v2575 = vrot.slane %v2573, 4
        %v2576 = vshll.u32 %v2401, 16
        %v2578 = vrot.slane %v2576, 5
        %v2579 = vor.u32 %v2575, %v2578
        %v2580 = vrot.slane %v2579, 4
        %v2582 = vshll.u32 %v2402, 16
        %v2584 = vrot.slane %v2582, 5
        %v2585 = vsel %vm500, %v2580, %v2584
        %v2586 = vshrl.u32 %v2402, 16
        %v2588 = vrot.slane %v2586, 4
        %v2589 = vor.u32 %v2588, %v2584
        %v2590 = vrot.slane %v2589, 4
        %v2592 = vshll.u32 %v2403, 16
        %v2594 = vrot.slane %v2592, 5
        %v2595 = vsel %vm500, %v2590, %v2594
        %s2596 = scalar_lea.vmem %s263, 14
        %v2597 = vld [vmem:[%s2596] sm:$0x3]
        %v2598 = vunpack.c.l.b16 %v2417
        %v2599 = vunpack.c.l.b16 %v2427
        %v2600 = vunpack.c.l.b16 %v2441
        %v2601 = vunpack.c.l.b16 %v2451
        %v2602 = vunpack.c.l.b16 %v2465
        %v2603 = vunpack.c.l.b16 %v2475
        %v2604 = vunpack.c.l.b16 %v2489
        %v2605 = vunpack.c.l.b16 %v2499
        %v2606 = vunpack.c.l.b16 %v2513
        %v2607 = vunpack.c.l.b16 %v2523
        %v2608 = vunpack.c.l.b16 %v2537
        %v2609 = vunpack.c.l.b16 %v2547
        %v2610 = vunpack.c.l.b16 %v2561
        %v2611 = vunpack.c.l.b16 %v2571
        %v2612 = vunpack.c.l.b16 %v2585
        %v2613 = vunpack.c.l.b16 %v2595
        %v2614 = vpack.c.b16 %v2599, %v2598
        %v2615 = vpack.c.b16 %v2601, %v2600
        %v2616 = vpack.c.b16 %v2603, %v2602
        %v2617 = vpack.c.b16 %v2605, %v2604
        %v2618 = vpack.c.b16 %v2607, %v2606
        %v2619 = vpack.c.b16 %v2609, %v2608
        %v2620 = vpack.c.b16 %v2611, %v2610
        %v2621 = vpack.c.b16 %v2613, %v2612
        %v2623 = vsel %vm332, %v2614, 0
        %v2626 = vsel %vm332, %v2615, 0
        %v2629 = vsel %vm332, %v2616, 0
        %v2632 = vsel %vm332, %v2617, 0
        %v2635 = vsel %vm332, %v2618, 0
        %v2638 = vsel %vm332, %v2619, 0
        %v2641 = vsel %vm332, %v2620, 0
        %v2644 = vsel %vm332, %v2621, 0
        %v2647 = vsel %vm357, %v2597, 0
        %2649 = vmatprep.subr.bf16.mxu0 0
        %2650 = vmatpush1.bf16.msra.mxu0 0
        %2651 = vmatprep.subr.bf16.mxu0 0
        %2652 = vmatpush1.bf16.msra.mxu0 0
        %2653 = vmatprep.subr.bf16.mxu0 0
        %2654 = vmatpush1.bf16.msra.mxu0 0
        %2655 = vmatprep.subr.bf16.mxu0 0
        %2656 = vmatpush1.bf16.msra.mxu0 0
        %2657 = vmatprep.subr.bf16.mxu0 0
        %2658 = vmatpush1.bf16.msra.mxu0 0
        %2659 = vmatprep.subr.bf16.mxu0 0
        %2660 = vmatpush1.bf16.msra.mxu0 0
        %2661 = vmatprep.subr.bf16.mxu0 0
        %2662 = vmatpush1.bf16.msra.mxu0 0
        %2663 = vmatprep.subr.bf16.mxu0 0
        %2664 = vmatpush1.bf16.msra.mxu0 %v2647
        %2665 = vmatprep.subr.bf16.mxu0 0
        %2666 = vmatpush2.bf16.msra.mxu0 0
        %2667 = vmatprep.subr.bf16.mxu0 0
        %2668 = vmatpush2.bf16.msra.mxu0 0
        %2669 = vmatprep.subr.bf16.mxu0 0
        %2670 = vmatpush2.bf16.msra.mxu0 0
        %2671 = vmatprep.subr.bf16.mxu0 0
        %2672 = vmatpush2.bf16.msra.mxu0 0
        %2673 = vmatprep.subr.bf16.mxu0 0
        %2674 = vmatpush2.bf16.msra.mxu0 0
        %2675 = vmatprep.subr.bf16.mxu0 0
        %2676 = vmatpush2.bf16.msra.mxu0 0
        %2677 = vmatprep.subr.bf16.mxu0 0
        %2678 = vmatpush2.bf16.msra.mxu0 0
        %2679 = vmatprep.subr.bf16.mxu0 0
        %2680 = vmatpush2.bf16.msra.mxu0 0
        %2681 = vmatprep.mubr.bf16.mxu0 0
        %2682 = vmatmul.mubr.bf16.gmra.mxu0 %v2623
        %v2683 = vpop.f32.mrf.mxu0
        %v2684 = vadd.f32 0.0, %v2683
        %v2685 = vpop.f32.mrf.mxu0
        %v2686 = vpop.f32.mrf.mxu0
        %v2687 = vadd.f32 0.0, %v2686
        %v2688 = vpop.f32.mrf.mxu0
        %2689 = vmatprep.mubr.bf16.mxu0 0
        %2690 = vmatmul.mubr.bf16.gmra.mxu0 %v2626
        %v2691 = vpop.f32.mrf.mxu0
        %v2692 = vadd.f32 0.0, %v2691
        %v2693 = vpop.f32.mrf.mxu0
        %v2694 = vpop.f32.mrf.mxu0
        %v2695 = vadd.f32 0.0, %v2694
        %v2696 = vpop.f32.mrf.mxu0
        %2697 = vmatprep.mubr.bf16.mxu0 0
        %2698 = vmatmul.mubr.bf16.gmra.mxu0 %v2629
        %v2699 = vpop.f32.mrf.mxu0
        %v2700 = vadd.f32 0.0, %v2699
        %v2701 = vpop.f32.mrf.mxu0
        %v2702 = vpop.f32.mrf.mxu0
        %v2703 = vadd.f32 0.0, %v2702
        %v2704 = vpop.f32.mrf.mxu0
        %2705 = vmatprep.mubr.bf16.mxu0 0
        %2706 = vmatmul.mubr.bf16.gmra.mxu0 %v2632
        %v2707 = vpop.f32.mrf.mxu0
        %v2708 = vadd.f32 0.0, %v2707
        %v2709 = vpop.f32.mrf.mxu0
        %v2710 = vpop.f32.mrf.mxu0
        %v2711 = vadd.f32 0.0, %v2710
        %v2712 = vpop.f32.mrf.mxu0
        %2713 = vmatprep.mubr.bf16.mxu0 0
        %2714 = vmatmul.mubr.bf16.gmra.mxu0 %v2635
        %v2715 = vpop.f32.mrf.mxu0
        %v2716 = vadd.f32 0.0, %v2715
        %v2717 = vpop.f32.mrf.mxu0
        %v2718 = vpop.f32.mrf.mxu0
        %v2719 = vadd.f32 0.0, %v2718
        %v2720 = vpop.f32.mrf.mxu0
        %2721 = vmatprep.mubr.bf16.mxu0 0
        %2722 = vmatmul.mubr.bf16.gmra.mxu0 %v2638
        %v2723 = vpop.f32.mrf.mxu0
        %v2724 = vadd.f32 0.0, %v2723
        %v2725 = vpop.f32.mrf.mxu0
        %v2726 = vpop.f32.mrf.mxu0
        %v2727 = vadd.f32 0.0, %v2726
        %v2728 = vpop.f32.mrf.mxu0
        %2729 = vmatprep.mubr.bf16.mxu0 0
        %2730 = vmatmul.mubr.bf16.gmra.mxu0 %v2641
        %v2731 = vpop.f32.mrf.mxu0
        %v2732 = vadd.f32 0.0, %v2731
        %v2733 = vpop.f32.mrf.mxu0
        %v2734 = vpop.f32.mrf.mxu0
        %v2735 = vadd.f32 0.0, %v2734
        %v2736 = vpop.f32.mrf.mxu0
        %2737 = vmatprep.mubr.bf16.mxu0 0
        %2738 = vmatmul.mubr.bf16.gmra.mxu0 %v2644
        %v2739 = vpop.f32.mrf.mxu0
        %v2740 = vadd.f32 0.0, %v2739
        %v2741 = vpop.f32.mrf.mxu0
        %v2742 = vpop.f32.mrf.mxu0
        %v2743 = vadd.f32 0.0, %v2742
        %v2744 = vpop.f32.mrf.mxu0
        %2745 = vdwg.mxu0
        %v2746 = vld [vmem:[#allocation2] sm:$0xff]
        %v2747 = vld [vmem:[#allocation2 + $0x8] sm:$0xff]
        %v2748 = vld [vmem:[#allocation2 + $0x10] sm:$0xff]
        %v2749 = vld [vmem:[#allocation2 + $0x18] sm:$0xff]
        %v2750 = vld [vmem:[#allocation2 + $0x20] sm:$0xff]
        %v2751 = vld [vmem:[#allocation2 + $0x28] sm:$0xff]
        %v2752 = vld [vmem:[#allocation2 + $0x30] sm:$0xff]
        %v2753 = vld [vmem:[#allocation2 + $0x38] sm:$0xff]
        %v2754 = vld [vmem:[#allocation2 + $0x40] sm:$0xff]
        %v2755 = vld [vmem:[#allocation2 + $0x48] sm:$0xff]
        %v2756 = vld [vmem:[#allocation2 + $0x50] sm:$0xff]
        %v2757 = vld [vmem:[#allocation2 + $0x58] sm:$0xff]
        %v2758 = vld [vmem:[#allocation2 + $0x60] sm:$0xff]
        %v2759 = vld [vmem:[#allocation2 + $0x68] sm:$0xff]
        %v2760 = vld [vmem:[#allocation2 + $0x70] sm:$0xff]
        %v2761 = vld [vmem:[#allocation2 + $0x78] sm:$0xff]
        %v2762 = vadd.f32 %v2746, %v2684
        %v2763 = vadd.f32 %v2747, %v2687
        %v2764 = vadd.f32 %v2748, %v2692
        %v2765 = vadd.f32 %v2749, %v2695
        %v2766 = vadd.f32 %v2750, %v2700
        %v2767 = vadd.f32 %v2751, %v2703
        %v2768 = vadd.f32 %v2752, %v2708
        %v2769 = vadd.f32 %v2753, %v2711
        %v2770 = vadd.f32 %v2754, %v2716
        %v2771 = vadd.f32 %v2755, %v2719
        %v2772 = vadd.f32 %v2756, %v2724
        %v2773 = vadd.f32 %v2757, %v2727
        %v2774 = vadd.f32 %v2758, %v2732
        %v2775 = vadd.f32 %v2759, %v2735
        %v2776 = vadd.f32 %v2760, %v2740
        %v2777 = vadd.f32 %v2761, %v2743
        %2778 = vst [vmem:[#allocation2] sm:$0xff] %v2762
        %2779 = vst [vmem:[#allocation2 + $0x8] sm:$0xff] %v2763
        %2780 = vst [vmem:[#allocation2 + $0x10] sm:$0xff] %v2764
        %2781 = vst [vmem:[#allocation2 + $0x18] sm:$0xff] %v2765
        %2782 = vst [vmem:[#allocation2 + $0x20] sm:$0xff] %v2766
        %2783 = vst [vmem:[#allocation2 + $0x28] sm:$0xff] %v2767
        %2784 = vst [vmem:[#allocation2 + $0x30] sm:$0xff] %v2768
        %2785 = vst [vmem:[#allocation2 + $0x38] sm:$0xff] %v2769
        %2786 = vst [vmem:[#allocation2 + $0x40] sm:$0xff] %v2770
        %2787 = vst [vmem:[#allocation2 + $0x48] sm:$0xff] %v2771
        %2788 = vst [vmem:[#allocation2 + $0x50] sm:$0xff] %v2772
        %2789 = vst [vmem:[#allocation2 + $0x58] sm:$0xff] %v2773
        %2790 = vst [vmem:[#allocation2 + $0x60] sm:$0xff] %v2774
        %2791 = vst [vmem:[#allocation2 + $0x68] sm:$0xff] %v2775
        %2792 = vst [vmem:[#allocation2 + $0x70] sm:$0xff] %v2776
        %2793 = vst [vmem:[#allocation2 + $0x78] sm:$0xff] %v2777
        %v2794 = vld [vmem:[%s2149] sm:$0xe]
        %v2795 = vld [vmem:[%s2149 + $0x4] sm:$0xf]
        %v2796 = vld [vmem:[%s2149 + $0x8] sm:$0x1]
        %v2797 = vld [vmem:[%s2149 + $0xc] sm:$0xe]
        %v2798 = vld [vmem:[%s2149 + $0x10] sm:$0xf]
        %v2799 = vld [vmem:[%s2149 + $0x14] sm:$0x1]
        %v2800 = vld [vmem:[%s2149 + $0x18] sm:$0xe]
        %v2801 = vld [vmem:[%s2149 + $0x1c] sm:$0xf]
        %v2802 = vld [vmem:[%s2149 + $0x20] sm:$0x1]
        %v2803 = vld [vmem:[%s2149 + $0x24] sm:$0xe]
        %v2804 = vld [vmem:[%s2149 + $0x28] sm:$0xf]
        %v2805 = vld [vmem:[%s2149 + $0x2c] sm:$0x1]
        %v2806 = vld [vmem:[%s2149 + $0x30] sm:$0xe]
        %v2807 = vld [vmem:[%s2149 + $0x34] sm:$0xf]
        %v2808 = vld [vmem:[%s2149 + $0x38] sm:$0x1]
        %v2809 = vld [vmem:[%s2149 + $0x3c] sm:$0xe]
        %v2810 = vld [vmem:[%s2149 + $0x40] sm:$0xf]
        %v2811 = vld [vmem:[%s2149 + $0x44] sm:$0x1]
        %v2812 = vld [vmem:[%s2149 + $0x48] sm:$0xe]
        %v2813 = vld [vmem:[%s2149 + $0x4c] sm:$0xf]
        %v2814 = vld [vmem:[%s2149 + $0x50] sm:$0x1]
        %v2815 = vld [vmem:[%s2149 + $0x54] sm:$0xe]
        %v2816 = vld [vmem:[%s2149 + $0x58] sm:$0xf]
        %v2817 = vld [vmem:[%s2149 + $0x5c] sm:$0x1]
        %v2842 = vrot.slane %v2794, 5
        %v2843 = vrot.slane %v2842, 4
        %v2844 = vrot.slane %v2795, 5
        %v2845 = vsel %vm941, %v2843, %v2844
        %v2846 = vrot.slane %v2844, 4
        %v2847 = vrot.slane %v2796, 5
        %v2848 = vsel %vm941, %v2846, %v2847
        %v2849 = vrot.slane %v2797, 5
        %v2850 = vrot.slane %v2849, 4
        %v2851 = vrot.slane %v2798, 5
        %v2852 = vsel %vm941, %v2850, %v2851
        %v2853 = vrot.slane %v2851, 4
        %v2854 = vrot.slane %v2799, 5
        %v2855 = vsel %vm941, %v2853, %v2854
        %v2856 = vrot.slane %v2800, 5
        %v2857 = vrot.slane %v2856, 4
        %v2858 = vrot.slane %v2801, 5
        %v2859 = vsel %vm941, %v2857, %v2858
        %v2860 = vrot.slane %v2858, 4
        %v2861 = vrot.slane %v2802, 5
        %v2862 = vsel %vm941, %v2860, %v2861
        %v2863 = vrot.slane %v2803, 5
        %v2864 = vrot.slane %v2863, 4
        %v2865 = vrot.slane %v2804, 5
        %v2866 = vsel %vm941, %v2864, %v2865
        %v2867 = vrot.slane %v2865, 4
        %v2868 = vrot.slane %v2805, 5
        %v2869 = vsel %vm941, %v2867, %v2868
        %v2870 = vrot.slane %v2806, 5
        %v2871 = vrot.slane %v2870, 4
        %v2872 = vrot.slane %v2807, 5
        %v2873 = vsel %vm941, %v2871, %v2872
        %v2874 = vrot.slane %v2872, 4
        %v2875 = vrot.slane %v2808, 5
        %v2876 = vsel %vm941, %v2874, %v2875
        %v2877 = vrot.slane %v2809, 5
        %v2878 = vrot.slane %v2877, 4
        %v2879 = vrot.slane %v2810, 5
        %v2880 = vsel %vm941, %v2878, %v2879
        %v2881 = vrot.slane %v2879, 4
        %v2882 = vrot.slane %v2811, 5
        %v2883 = vsel %vm941, %v2881, %v2882
        %v2884 = vrot.slane %v2812, 5
        %v2885 = vrot.slane %v2884, 4
        %v2886 = vrot.slane %v2813, 5
        %v2887 = vsel %vm941, %v2885, %v2886
        %v2888 = vrot.slane %v2886, 4
        %v2889 = vrot.slane %v2814, 5
        %v2890 = vsel %vm941, %v2888, %v2889
        %v2891 = vrot.slane %v2815, 5
        %v2892 = vrot.slane %v2891, 4
        %v2893 = vrot.slane %v2816, 5
        %v2894 = vsel %vm941, %v2892, %v2893
        %v2895 = vrot.slane %v2893, 4
        %v2896 = vrot.slane %v2817, 5
        %v2897 = vsel %vm941, %v2895, %v2896
        %s2898 = scalar_lea.vmem %s263, 16
        %v2899 = vld [vmem:[%s2898] sm:$0x3]
        %v2900 = vunpack.c.l.b16 %v2845
        %v2901 = vunpack.c.l.b16 %v2848
        %v2902 = vunpack.c.l.b16 %v2852
        %v2903 = vunpack.c.l.b16 %v2855
        %v2904 = vunpack.c.l.b16 %v2859
        %v2905 = vunpack.c.l.b16 %v2862
        %v2906 = vunpack.c.l.b16 %v2866
        %v2907 = vunpack.c.l.b16 %v2869
        %v2908 = vunpack.c.l.b16 %v2873
        %v2909 = vunpack.c.l.b16 %v2876
        %v2910 = vunpack.c.l.b16 %v2880
        %v2911 = vunpack.c.l.b16 %v2883
        %v2912 = vunpack.c.l.b16 %v2887
        %v2913 = vunpack.c.l.b16 %v2890
        %v2914 = vunpack.c.l.b16 %v2894
        %v2915 = vunpack.c.l.b16 %v2897
        %v2916 = vpack.c.b16 %v2901, %v2900
        %v2917 = vpack.c.b16 %v2903, %v2902
        %v2918 = vpack.c.b16 %v2905, %v2904
        %v2919 = vpack.c.b16 %v2907, %v2906
        %v2920 = vpack.c.b16 %v2909, %v2908
        %v2921 = vpack.c.b16 %v2911, %v2910
        %v2922 = vpack.c.b16 %v2913, %v2912
        %v2923 = vpack.c.b16 %v2915, %v2914
        %v2925 = vsel %vm332, %v2916, 0
        %v2928 = vsel %vm332, %v2917, 0
        %v2931 = vsel %vm332, %v2918, 0
        %v2934 = vsel %vm332, %v2919, 0
        %v2937 = vsel %vm332, %v2920, 0
        %v2940 = vsel %vm332, %v2921, 0
        %v2943 = vsel %vm332, %v2922, 0
        %v2946 = vsel %vm332, %v2923, 0
        %v2949 = vsel %vm357, %v2899, 0
        %2951 = vmatprep.subr.bf16.mxu0 0
        %2952 = vmatpush1.bf16.msra.mxu0 0
        %2953 = vmatprep.subr.bf16.mxu0 0
        %2954 = vmatpush1.bf16.msra.mxu0 0
        %2955 = vmatprep.subr.bf16.mxu0 0
        %2956 = vmatpush1.bf16.msra.mxu0 0
        %2957 = vmatprep.subr.bf16.mxu0 0
        %2958 = vmatpush1.bf16.msra.mxu0 0
        %2959 = vmatprep.subr.bf16.mxu0 0
        %2960 = vmatpush1.bf16.msra.mxu0 0
        %2961 = vmatprep.subr.bf16.mxu0 0
        %2962 = vmatpush1.bf16.msra.mxu0 0
        %2963 = vmatprep.subr.bf16.mxu0 0
        %2964 = vmatpush1.bf16.msra.mxu0 0
        %2965 = vmatprep.subr.bf16.mxu0 0
        %2966 = vmatpush1.bf16.msra.mxu0 %v2949
        %2967 = vmatprep.subr.bf16.mxu0 0
        %2968 = vmatpush2.bf16.msra.mxu0 0
        %2969 = vmatprep.subr.bf16.mxu0 0
        %2970 = vmatpush2.bf16.msra.mxu0 0
        %2971 = vmatprep.subr.bf16.mxu0 0
        %2972 = vmatpush2.bf16.msra.mxu0 0
        %2973 = vmatprep.subr.bf16.mxu0 0
        %2974 = vmatpush2.bf16.msra.mxu0 0
        %2975 = vmatprep.subr.bf16.mxu0 0
        %2976 = vmatpush2.bf16.msra.mxu0 0
        %2977 = vmatprep.subr.bf16.mxu0 0
        %2978 = vmatpush2.bf16.msra.mxu0 0
        %2979 = vmatprep.subr.bf16.mxu0 0
        %2980 = vmatpush2.bf16.msra.mxu0 0
        %2981 = vmatprep.subr.bf16.mxu0 0
        %2982 = vmatpush2.bf16.msra.mxu0 0
        %2983 = vmatprep.mubr.bf16.mxu0 0
        %2984 = vmatmul.mubr.bf16.gmra.mxu0 %v2925
        %v2985 = vpop.f32.mrf.mxu0
        %v2986 = vadd.f32 0.0, %v2985
        %v2987 = vpop.f32.mrf.mxu0
        %v2988 = vpop.f32.mrf.mxu0
        %v2989 = vadd.f32 0.0, %v2988
        %v2990 = vpop.f32.mrf.mxu0
        %2991 = vmatprep.mubr.bf16.mxu0 0
        %2992 = vmatmul.mubr.bf16.gmra.mxu0 %v2928
        %v2993 = vpop.f32.mrf.mxu0
        %v2994 = vadd.f32 0.0, %v2993
        %v2995 = vpop.f32.mrf.mxu0
        %v2996 = vpop.f32.mrf.mxu0
        %v2997 = vadd.f32 0.0, %v2996
        %v2998 = vpop.f32.mrf.mxu0
        %2999 = vmatprep.mubr.bf16.mxu0 0
        %3000 = vmatmul.mubr.bf16.gmra.mxu0 %v2931
        %v3001 = vpop.f32.mrf.mxu0
        %v3002 = vadd.f32 0.0, %v3001
        %v3003 = vpop.f32.mrf.mxu0
        %v3004 = vpop.f32.mrf.mxu0
        %v3005 = vadd.f32 0.0, %v3004
        %v3006 = vpop.f32.mrf.mxu0
        %3007 = vmatprep.mubr.bf16.mxu0 0
        %3008 = vmatmul.mubr.bf16.gmra.mxu0 %v2934
        %v3009 = vpop.f32.mrf.mxu0
        %v3010 = vadd.f32 0.0, %v3009
        %v3011 = vpop.f32.mrf.mxu0
        %v3012 = vpop.f32.mrf.mxu0
        %v3013 = vadd.f32 0.0, %v3012
        %v3014 = vpop.f32.mrf.mxu0
        %3015 = vmatprep.mubr.bf16.mxu0 0
        %3016 = vmatmul.mubr.bf16.gmra.mxu0 %v2937
        %v3017 = vpop.f32.mrf.mxu0
        %v3018 = vadd.f32 0.0, %v3017
        %v3019 = vpop.f32.mrf.mxu0
        %v3020 = vpop.f32.mrf.mxu0
        %v3021 = vadd.f32 0.0, %v3020
        %v3022 = vpop.f32.mrf.mxu0
        %3023 = vmatprep.mubr.bf16.mxu0 0
        %3024 = vmatmul.mubr.bf16.gmra.mxu0 %v2940
        %v3025 = vpop.f32.mrf.mxu0
        %v3026 = vadd.f32 0.0, %v3025
        %v3027 = vpop.f32.mrf.mxu0
        %v3028 = vpop.f32.mrf.mxu0
        %v3029 = vadd.f32 0.0, %v3028
        %v3030 = vpop.f32.mrf.mxu0
        %3031 = vmatprep.mubr.bf16.mxu0 0
        %3032 = vmatmul.mubr.bf16.gmra.mxu0 %v2943
        %v3033 = vpop.f32.mrf.mxu0
        %v3034 = vadd.f32 0.0, %v3033
        %v3035 = vpop.f32.mrf.mxu0
        %v3036 = vpop.f32.mrf.mxu0
        %v3037 = vadd.f32 0.0, %v3036
        %v3038 = vpop.f32.mrf.mxu0
        %3039 = vmatprep.mubr.bf16.mxu0 0
        %3040 = vmatmul.mubr.bf16.gmra.mxu0 %v2946
        %v3041 = vpop.f32.mrf.mxu0
        %v3042 = vadd.f32 0.0, %v3041
        %v3043 = vpop.f32.mrf.mxu0
        %v3044 = vpop.f32.mrf.mxu0
        %v3045 = vadd.f32 0.0, %v3044
        %v3046 = vpop.f32.mrf.mxu0
        %3047 = vdwg.mxu0
        %v3048 = vld [vmem:[#allocation2] sm:$0xff]
        %v3049 = vld [vmem:[#allocation2 + $0x8] sm:$0xff]
        %v3050 = vld [vmem:[#allocation2 + $0x10] sm:$0xff]
        %v3051 = vld [vmem:[#allocation2 + $0x18] sm:$0xff]
        %v3052 = vld [vmem:[#allocation2 + $0x20] sm:$0xff]
        %v3053 = vld [vmem:[#allocation2 + $0x28] sm:$0xff]
        %v3054 = vld [vmem:[#allocation2 + $0x30] sm:$0xff]
        %v3055 = vld [vmem:[#allocation2 + $0x38] sm:$0xff]
        %v3056 = vld [vmem:[#allocation2 + $0x40] sm:$0xff]
        %v3057 = vld [vmem:[#allocation2 + $0x48] sm:$0xff]
        %v3058 = vld [vmem:[#allocation2 + $0x50] sm:$0xff]
        %v3059 = vld [vmem:[#allocation2 + $0x58] sm:$0xff]
        %v3060 = vld [vmem:[#allocation2 + $0x60] sm:$0xff]
        %v3061 = vld [vmem:[#allocation2 + $0x68] sm:$0xff]
        %v3062 = vld [vmem:[#allocation2 + $0x70] sm:$0xff]
        %v3063 = vld [vmem:[#allocation2 + $0x78] sm:$0xff]
        %v3064 = vadd.f32 %v3048, %v2986
        %v3065 = vadd.f32 %v3049, %v2989
        %v3066 = vadd.f32 %v3050, %v2994
        %v3067 = vadd.f32 %v3051, %v2997
        %v3068 = vadd.f32 %v3052, %v3002
        %v3069 = vadd.f32 %v3053, %v3005
        %v3070 = vadd.f32 %v3054, %v3010
        %v3071 = vadd.f32 %v3055, %v3013
        %v3072 = vadd.f32 %v3056, %v3018
        %v3073 = vadd.f32 %v3057, %v3021
        %v3074 = vadd.f32 %v3058, %v3026
        %v3075 = vadd.f32 %v3059, %v3029
        %v3076 = vadd.f32 %v3060, %v3034
        %v3077 = vadd.f32 %v3061, %v3037
        %v3078 = vadd.f32 %v3062, %v3042
        %v3079 = vadd.f32 %v3063, %v3045
        %3080 = vst [vmem:[#allocation2] sm:$0xff] %v3064
        %3081 = vst [vmem:[#allocation2 + $0x8] sm:$0xff] %v3065
        %3082 = vst [vmem:[#allocation2 + $0x10] sm:$0xff] %v3066
        %3083 = vst [vmem:[#allocation2 + $0x18] sm:$0xff] %v3067
        %3084 = vst [vmem:[#allocation2 + $0x20] sm:$0xff] %v3068
        %3085 = vst [vmem:[#allocation2 + $0x28] sm:$0xff] %v3069
        %3086 = vst [vmem:[#allocation2 + $0x30] sm:$0xff] %v3070
        %3087 = vst [vmem:[#allocation2 + $0x38] sm:$0xff] %v3071
        %3088 = vst [vmem:[#allocation2 + $0x40] sm:$0xff] %v3072
        %3089 = vst [vmem:[#allocation2 + $0x48] sm:$0xff] %v3073
        %3090 = vst [vmem:[#allocation2 + $0x50] sm:$0xff] %v3074
        %3091 = vst [vmem:[#allocation2 + $0x58] sm:$0xff] %v3075
        %3092 = vst [vmem:[#allocation2 + $0x60] sm:$0xff] %v3076
        %3093 = vst [vmem:[#allocation2 + $0x68] sm:$0xff] %v3077
        %3094 = vst [vmem:[#allocation2 + $0x70] sm:$0xff] %v3078
        %3095 = vst [vmem:[#allocation2 + $0x78] sm:$0xff] %v3079
        %v3096 = vld [vmem:[#allocation2] sm:$0xff]
        %v3097 = vld [vmem:[#allocation2 + $0x8] sm:$0xff]
        %v3098 = vld [vmem:[#allocation2 + $0x10] sm:$0xff]
        %v3099 = vld [vmem:[#allocation2 + $0x18] sm:$0xff]
        %v3100 = vld [vmem:[#allocation2 + $0x20] sm:$0xff]
        %v3101 = vld [vmem:[#allocation2 + $0x28] sm:$0xff]
        %v3102 = vld [vmem:[#allocation2 + $0x30] sm:$0xff]
        %v3103 = vld [vmem:[#allocation2 + $0x38] sm:$0xff]
        %v3104 = vld [vmem:[#allocation2 + $0x40] sm:$0xff]
        %v3105 = vld [vmem:[#allocation2 + $0x48] sm:$0xff]
        %v3106 = vld [vmem:[#allocation2 + $0x50] sm:$0xff]
        %v3107 = vld [vmem:[#allocation2 + $0x58] sm:$0xff]
        %v3108 = vld [vmem:[#allocation2 + $0x60] sm:$0xff]
        %v3109 = vld [vmem:[#allocation2 + $0x68] sm:$0xff]
        %v3110 = vld [vmem:[#allocation2 + $0x70] sm:$0xff]
        %v3111 = vld [vmem:[#allocation2 + $0x78] sm:$0xff]
        %3112 = vst [vmem:[%s247] sm:$0xff] %v3096
        %3113 = vst [vmem:[%s247 + $0x8] sm:$0xff] %v3097
        %3114 = vst [vmem:[%s247 + $0x10] sm:$0xff] %v3098
        %3115 = vst [vmem:[%s247 + $0x18] sm:$0xff] %v3099
        %3116 = vst [vmem:[%s247 + $0x20] sm:$0xff] %v3100
        %3117 = vst [vmem:[%s247 + $0x28] sm:$0xff] %v3101
        %3118 = vst [vmem:[%s247 + $0x30] sm:$0xff] %v3102
        %3119 = vst [vmem:[%s247 + $0x38] sm:$0xff] %v3103
        %3120 = vst [vmem:[%s247 + $0x40] sm:$0xff] %v3104
        %3121 = vst [vmem:[%s247 + $0x48] sm:$0xff] %v3105
        %3122 = vst [vmem:[%s247 + $0x50] sm:$0xff] %v3106
        %3123 = vst [vmem:[%s247 + $0x58] sm:$0xff] %v3107
        %3124 = vst [vmem:[%s247 + $0x60] sm:$0xff] %v3108
        %3125 = vst [vmem:[%s247 + $0x68] sm:$0xff] %v3109
        %3126 = vst [vmem:[%s247 + $0x70] sm:$0xff] %v3110
        %3127 = vst [vmem:[%s247 + $0x78] sm:$0xff] %v3111
        %v3128 = vadd.f32 %v3096, %v3097
        %v3129 = vadd.f32 %v3128, %v3098
        %v3130 = vadd.f32 %v3129, %v3099
        %v3131 = vadd.f32 %v3130, %v3100
        %v3132 = vadd.f32 %v3131, %v3101
        %v3133 = vadd.f32 %v3132, %v3102
        %v3134 = vadd.f32 %v3133, %v3103
        %v3135 = vadd.f32 %v3134, %v3104
        %v3136 = vadd.f32 %v3135, %v3105
        %v3137 = vadd.f32 %v3136, %v3106
        %v3138 = vadd.f32 %v3137, %v3107
        %v3139 = vadd.f32 %v3138, %v3108
        %v3140 = vadd.f32 %v3139, %v3109
        %v3141 = vadd.f32 %v3140, %v3110
        %v3142 = vadd.f32 %v3141, %v3111
        %v3143 = vrot.slane %v3142, 4
        %v3144 = vadd.f32 %v3142, %v3143
        %v3145 = vrot.slane %v3144, 2
        %v3146 = vadd.f32 %v3144, %v3145
        %v3147 = vrot.slane %v3146, 1
        %v3148 = vadd.f32 %v3146, %v3147
        %v3149 = vmul.f32 %v3096, %v3096
        %v3150 = vmul.f32 %v3097, %v3097
        %v3151 = vmul.f32 %v3098, %v3098
        %v3152 = vmul.f32 %v3099, %v3099
        %v3153 = vmul.f32 %v3100, %v3100
        %v3154 = vmul.f32 %v3101, %v3101
        %v3155 = vmul.f32 %v3102, %v3102
        %v3156 = vmul.f32 %v3103, %v3103
        %v3157 = vmul.f32 %v3104, %v3104
        %v3158 = vmul.f32 %v3105, %v3105
        %v3159 = vmul.f32 %v3106, %v3106
        %v3160 = vmul.f32 %v3107, %v3107
        %v3161 = vmul.f32 %v3108, %v3108
        %v3162 = vmul.f32 %v3109, %v3109
        %v3163 = vmul.f32 %v3110, %v3110
        %v3164 = vmul.f32 %v3111, %v3111
        %v3165 = vadd.f32 %v3149, %v3150
        %v3166 = vadd.f32 %v3165, %v3151
        %v3167 = vadd.f32 %v3166, %v3152
        %v3168 = vadd.f32 %v3167, %v3153
        %v3169 = vadd.f32 %v3168, %v3154
        %v3170 = vadd.f32 %v3169, %v3155
        %v3171 = vadd.f32 %v3170, %v3156
        %v3172 = vadd.f32 %v3171, %v3157
        %v3173 = vadd.f32 %v3172, %v3158
        %v3174 = vadd.f32 %v3173, %v3159
        %v3175 = vadd.f32 %v3174, %v3160
        %v3176 = vadd.f32 %v3175, %v3161
        %v3177 = vadd.f32 %v3176, %v3162
        %v3178 = vadd.f32 %v3177, %v3163
        %v3179 = vadd.f32 %v3178, %v3164
        %v3180 = vrot.slane %v3179, 4
        %v3181 = vadd.f32 %v3179, %v3180
        %v3182 = vrot.slane %v3181, 2
        %v3183 = vadd.f32 %v3181, %v3182
        %v3184 = vrot.slane %v3183, 1
        %v3185 = vadd.f32 %v3183, %v3184
        %v3186 = vlaneseq
        %v3187 = vshrl.u32 %v3186, 7
        %vm3188 = vcmp.eq.s32.totalorder %v3187, 0
        %vm3189 = vcmp.eq.s32.totalorder %v3187, 1
        %v3190 = vsel %vm3189, %v3185, 0.0
        %v3191 = vsel %vm3188, %v3148, %v3190
        %3192 = vst [vmem:[%s254] sm:$0xff] %v3191
        %s3193 = sand.u32 %s131, 1
        %s3194 = scalar_lea.sflag [#allocation4], %s3193
        %s3195 = sand.u32 %s131, 1
        %s3196 = smul.addr %s3195, 128
        %s3197 = scalar_lea.vmem [#allocation3], %s3196
        %s3198 = sand.u32 %s163, 1
        %s3199 = scalar_lea.sflag [#allocation6], %s3198
        %s3200 = sand.u32 %s163, 1
        %s3201 = smul.addr %s3200, 8
        %s3202 = scalar_lea.vmem [#allocation5], %s3201
        // Predicated region
        $region33: #{tpu_custom_call.1} parent=31 // pred_check
          %p3203 = pneg %p141
        $region34: #{tpu_custom_call.1} parent=31 // pred_check_branch
          %3205 = sbr.rel (%p3203) target = $region36
        $region35: #{tpu_custom_call.1} parent=31 // pred_region
          %s3206 = smul.u32 8, %s29
          %s3208 = ssub.s32 2048, 2048
          %3209 = vsyncadd %s3194, %s3208
          %s3210 = smul.addr %s3206, 2
          %s3211 = sadd.s32 %s28, %s3210
          %s3212 = smul.addr %s27, 32
          %s3213 = sadd.s32 %s3211, %s3212
          %s3214 = smul.addr %s3213, 128
          %s3215 = scalar_lea.hbm %s3, %s3214
          %s3216 = sshll.u32 %s3197, 4
          %s3217 = int_to_ptr.vmem [resolvable:$true] %s3216
          %3222 = dma.vmem_to_hbm [thread:$0]  %s3217, 2048, %s3215, %s3194, 128, 128, 8
        $region36: #{tpu_custom_call.1} parent=31 // pred_fallthru
          _
        // Predicated region
        $region37: #{tpu_custom_call.1} parent=31 // pred_check
          %p3223 = pneg %p173
        $region38: #{tpu_custom_call.1} parent=31 // pred_check_branch
          %3225 = sbr.rel (%p3223) target = $region40
        $region39: #{tpu_custom_call.1} parent=31 // pred_region
          %s3226 = smul.u32 %s27, 2
          %s3227 = sadd.s32 %s3226, %s29
          %s3229 = ssub.s32 128, 128
          %3230 = vsyncadd %s3199, %s3229
          %s3231 = sadd.s32 %s28, %s3227
          %s3232 = smul.addr %s3231, 128
          %s3233 = scalar_lea.hbm %s4, %s3232
          %s3235 = sshll.u32 %s3202, 4
          %s3236 = int_to_ptr.vmem [resolvable:$true] %s3235
          %3238 = dma.vmem_to_hbm [thread:$0]  %s3236, 128, %s3233, %s3199
        $region40: #{tpu_custom_call.1} parent=31 // pred_fallthru
          _
      $region32: #{tpu_custom_call.1} parent=5 // pred_fallthru
        _
      %p3239 = scmp.le.s32.totalorder 2, %s17
      // Predicated region
      $region41: #{tpu_custom_call.1} parent=5 // pred_check
        %p3240 = pneg %p3239
      $region42: #{tpu_custom_call.1} parent=5 // pred_check_branch
        %3242 = sbr.rel (%p3240) target = $region44
      $region43: #{tpu_custom_call.1} parent=5 // pred_region
        %s3243 = ssub.s32 %s17, 2
        // Predicated region
        $region45: #{tpu_custom_call.1} parent=43 // pred_check
          %p3244 = pneg %p147
        $region46: #{tpu_custom_call.1} parent=43 // pred_check_branch
          %3246 = sbr.rel (%p3244) target = $region48
        $region47: #{tpu_custom_call.1} parent=43 // pred_region
          %s3247 = sand.u32 %s132, 1
          %s3248 = scalar_lea.sflag [#allocation4], %s3247
          %s3249 = sand.u32 %s132, 1
          %s3250 = smul.addr %s3249, 128
          %s3251 = scalar_lea.vmem [#allocation3], %s3250
          %3252 = dma.done %s3248, 2048
        $region48: #{tpu_custom_call.1} parent=43 // pred_fallthru
          _
        // Predicated region
        $region49: #{tpu_custom_call.1} parent=43 // pred_check
          %p3253 = pneg %p179
        $region50: #{tpu_custom_call.1} parent=43 // pred_check_branch
          %3255 = sbr.rel (%p3253) target = $region52
        $region51: #{tpu_custom_call.1} parent=43 // pred_region
          %s3256 = sand.u32 %s164, 1
          %s3257 = scalar_lea.sflag [#allocation6], %s3256
          %s3258 = sand.u32 %s164, 1
          %s3259 = smul.addr %s3258, 8
          %s3260 = scalar_lea.vmem [#allocation5], %s3259
          %3261 = dma.done %s3257, 128
        $region52: #{tpu_custom_call.1} parent=43 // pred_fallthru
          _
      $region44: #{tpu_custom_call.1} parent=5 // pred_fallthru
        _
    $region6: #{tpu_custom_call.1} parent=1 // loop_footer
      %s21 = sadd.s32 1, %s17
    $region7: #{tpu_custom_call.1} parent=1 // loop_footer_branch
      %16 = sbr.rel target = $region3
    $region8: #{tpu_custom_call.1} parent=1 // loop_exit
      _
    %3262 = vsyncpa [#allocation4], 1
    %s3263 = scalar_lea.sflag [#allocation4], 1
    %3264 = vsyncpa %s3263, 1
    %3265 = vsyncpa [#allocation6], 1
    %s3266 = scalar_lea.sflag [#allocation6], 1
    %3267 = vsyncpa %s3266, 1

</llo_original>
